<compile_context>
chip_gen: v7x
topology: tpu7x:2x2x1
jax: 0.10.0
libtpu: 0.0.40
codegen_flags: <defaults>
</compile_context>

<pallas_src>
import functools

import jax
import jax.numpy as jnp
from jax.experimental import pallas as pl
from jax.experimental.pallas import tpu as pltpu

LANE = 128
SUBLANE = 8


# ---------------------------------------------------------------------------
# Fused Pallas kernel: 2x LSTM layer (wavefront) + Linear + log_softmax
# ---------------------------------------------------------------------------

def fused_lstm_kernel(x_ref, w_ih1_ref, w_hh1_ref, b1_ref,
                      w_ih2_ref, w_hh2_ref, b2_ref,
                      w_lin_ref, b_lin_ref,
                      out_ref,
                      gx1_scr,
                      *, seq_len, batch, hidden_pad):
    """x_ref: (T*B, D) time-major rows; weights pre-transposed (in, 4*Hp).

    gx1_scr: (T*B, 4*Hp) VMEM scratch holding the hoisted layer-1 input
    projections.  Hp (padded hidden) is a multiple of 128 lanes.
    """
    T, B, H = seq_len, batch, hidden_pad

    def gate_step(gates, c_prev):
        # PyTorch gate order [i, f, g, o].  H is a multiple of 128, so each
        # slice is a full lane-aligned vreg block -> slicing is free.
        i_g = jax.nn.sigmoid(gates[:, 0 * H:1 * H])
        f_g = jax.nn.sigmoid(gates[:, 1 * H:2 * H])
        g_g = jnp.tanh(gates[:, 2 * H:3 * H])
        o_g = jax.nn.sigmoid(gates[:, 3 * H:4 * H])
        c_new = f_g * c_prev + i_g * g_g
        h_new = o_g * jnp.tanh(c_new)
        return h_new, c_new

    zeros = jnp.zeros((B, H), jnp.float32)

    # Hoisted layer-1 input projection: one batched (T*B, D) @ (D, 4H) matmul.
    gx1_scr[...] = (jnp.dot(x_ref[...], w_ih1_ref[...],
                            preferred_element_type=jnp.float32)
                    + b1_ref[...])

    w_hh1 = w_hh1_ref[...]
    w_ih2 = w_ih2_ref[...]
    w_hh2 = w_hh2_ref[...]
    b2 = b2_ref[...]

    def layer1_step(t, h1, c1):
        row = pl.multiple_of(t * B, B)
        gates = (gx1_scr[pl.ds(row, B), :]
                 + jnp.dot(h1, w_hh1, preferred_element_type=jnp.float32))
        return gate_step(gates, c1)

    def layer2_step(h1_in, h2, c2):
        # Layer-2 input projection fused into the step; independent of the
        # layer-2 recurrent matmul, so both overlap on the MXU.
        gates = (jnp.dot(h1_in, w_ih2, preferred_element_type=jnp.float32)
                 + b2
                 + jnp.dot(h2, w_hh2, preferred_element_type=jnp.float32))
        return gate_step(gates, c2)

    # ---------------- Wavefront recurrence ----------------
    # Layer-2 lags layer-1 by one timestep; inside an iteration the two
    # steps only depend on the *previous* iteration's carry, so their
    # matmuls are independent and can be in flight simultaneously.
    h1, c1 = layer1_step(0, zeros, zeros)              # prologue: layer-1 t=0

    def body(t, carry):
        h1, c1, h2, c2 = carry
        h1n, c1n = layer1_step(t, h1, c1)              # layer-1 step t
        h2n, c2n = layer2_step(h1, h2, c2)             # layer-2 step t-1
        return h1n, c1n, h2n, c2n

    h1, c1, h2, c2 = jax.lax.fori_loop(1, T, body, (h1, c1, zeros, zeros),
                                       unroll=True)

    h_last, _ = layer2_step(h1, h2, c2)                # epilogue: layer-2 T-1

    # ---------------- Linear head + log_softmax ----------------
    logits = (jnp.dot(h_last, w_lin_ref[...],
                      preferred_element_type=jnp.float32)
              + b_lin_ref[...])
    m = jnp.max(logits, axis=-1, keepdims=True)
    shifted = logits - m
    lse = jnp.log(jnp.sum(jnp.exp(shifted), axis=-1, keepdims=True))
    out_ref[...] = shifted - lse


# ---------------------------------------------------------------------------
# Wrapper
# ---------------------------------------------------------------------------

def _pad_gate_cols(w, h, hp):
    """Pad (..., 4*h) -> (..., 4*hp), padding each [i|f|g|o] block with zeros."""
    lead = w.shape[:-1]
    w = w.reshape(lead + (4, h))
    pad = [(0, 0)] * len(lead) + [(0, 0), (0, hp - h)]
    return jnp.pad(w, pad).reshape(lead + (4 * hp,))


def _pad_rows(w, h, hp):
    return jnp.pad(w, [(0, hp - h), (0, 0)])


def lstm_forward(x, params):
    """Full forward pass of the PyTorch `LSTM` module.

    x: (T, B, D) time-major (PyTorch nn.LSTM default batch_first=False).
    Returns (B, OUT) log-probabilities.
    """
    T, B, D = x.shape
    layers = params["lstm_layers"]
    assert len(layers) == 2, "kernel is specialized for num_layers=2"
    (w_ih1, w_hh1, b1), (w_ih2, w_hh2, b2) = layers
    w_lin, b_lin = params["lin_w_t"], params["lin_b"]
    H = w_hh1.shape[0]
    OUT = w_lin.shape[1]

    # Zero-pad the hidden dim to a full lane width so gate slices are
    # lane-aligned vregs (exact: padded h/c remain 0 throughout).
    Hp = ((H + LANE - 1) // LANE) * LANE
    # Zero-pad the batch to a sublane multiple (rows are independent).
    Bp = ((B + SUBLANE - 1) // SUBLANE) * SUBLANE

    w_ih1_p = _pad_gate_cols(w_ih1, H, Hp)                          # (D,  4Hp)
    w_hh1_p = _pad_rows(_pad_gate_cols(w_hh1, H, Hp), H, Hp)        # (Hp, 4Hp)
    b1_p = _pad_gate_cols(b1, H, Hp)                                # (1,  4Hp)
    w_ih2_p = _pad_rows(_pad_gate_cols(w_ih2, H, Hp), H, Hp)        # (Hp, 4Hp)
    w_hh2_p = _pad_rows(_pad_gate_cols(w_hh2, H, Hp), H, Hp)        # (Hp, 4Hp)
    b2_p = _pad_gate_cols(b2, H, Hp)                                # (1,  4Hp)
    w_lin_p = _pad_rows(w_lin, H, Hp)                               # (Hp, OUT)

    x_p = jnp.pad(x, [(0, 0), (0, Bp - B), (0, 0)]).reshape(T * Bp, D)

    kernel = functools.partial(fused_lstm_kernel,
                               seq_len=T, batch=Bp, hidden_pad=Hp)

    vmem_spec = pl.BlockSpec(memory_space=pltpu.MemorySpace.VMEM)
    out = pl.pallas_call(
        kernel,
        out_shape=jax.ShapeDtypeStruct((Bp, OUT), jnp.float32),
        in_specs=[vmem_spec] * 9,
        out_specs=vmem_spec,
        scratch_shapes=[
            pltpu.VMEM((T * Bp, 4 * Hp), jnp.float32),  # hoisted layer-1 gates
        ],
    )(x_p, w_ih1_p, w_hh1_p, b1_p, w_ih2_p, w_hh2_p, b2_p, w_lin_p, b_lin)
    return out[:B]


# ---------------------------------------------------------------------------
# Pure-JAX reference (for correctness check)
# ---------------------------------------------------------------------------

def lstm_forward_ref(x, params):
    def layer(xs, w_ih_t, w_hh_t, b):
        B = xs.shape[1]
        H = w_hh_t.shape[0]

        def step(carry, x_t):
            h, c = carry
            gates = x_t @ w_ih_t + h @ w_hh_t + b
            i = jax.nn.sigmoid(gates[:, 0 * H:1 * H])
            f = jax.nn.sigmoid(gates[:, 1 * H:2 * H])
            g = jnp.tanh(gates[:, 2 * H:3 * H])
            o = jax.nn.sigmoid(gates[:, 3 * H:4 * H])
            c = f * c + i * g
            h = o * jnp.tanh(c)
            return (h, c), h

        init = (jnp.zeros((B, H), jnp.float32), jnp.zeros((B, H), jnp.float32))
        _, ys = jax.lax.scan(step, init, xs)
        return ys

    h = x
    for (w_ih_t, w_hh_t, b) in params["lstm_layers"]:
        h = layer(h, w_ih_t, w_hh_t, b)
    logits = h[-1] @ params["lin_w_t"] + params["lin_b"]
    return jax.nn.log_softmax(logits, axis=1)


# ---------------------------------------------------------------------------
# Deterministic parameter init (PyTorch-style uniform(-1/sqrt(H), 1/sqrt(H)))
# ---------------------------------------------------------------------------

def init_params(key, input_dim, hidden_dim, output_dim, num_layers):
    k = 1.0 / jnp.sqrt(hidden_dim)
    params = {"lstm_layers": []}
    for layer in range(num_layers):
        in_dim = input_dim if layer == 0 else hidden_dim
        key, k1, k2, k3, k4 = jax.random.split(key, 5)
        w_ih = jax.random.uniform(k1, (4 * hidden_dim, in_dim),
                                  jnp.float32, -k, k)
        w_hh = jax.random.uniform(k2, (4 * hidden_dim, hidden_dim),
                                  jnp.float32, -k, k)
        b_ih = jax.random.uniform(k3, (4 * hidden_dim,), jnp.float32, -k, k)
        b_hh = jax.random.uniform(k4, (4 * hidden_dim,), jnp.float32, -k, k)
        params["lstm_layers"].append(
            (w_ih.T, w_hh.T, (b_ih + b_hh)[None, :]))
    key, k5, k6 = jax.random.split(key, 3)
    lin_w = jax.random.uniform(k5, (output_dim, hidden_dim), jnp.float32, -k, k)
    lin_b = jax.random.uniform(k6, (output_dim,), jnp.float32, -k, k)
    params["lin_w_t"] = lin_w.T
    params["lin_b"] = lin_b[None, :]
    return params


# ---------------------------------------------------------------------------
# Main
# ---------------------------------------------------------------------------

if __name__ == "__main__":
    # (seq, batch, feat); hidden=32, 8 output classes, 2 LSTM layers.
    T, B, D, H, OUT, LAYERS = 8, 8, 16, 32, 8, 2

    key = jax.random.PRNGKey(0)
    key, xk = jax.random.split(key)
    x = jax.random.normal(xk, (T, B, D), jnp.float32)

    params = init_params(key, D, H, OUT, LAYERS)

    out = jax.block_until_ready(lstm_forward(x, params))
    ref = jax.block_until_ready(lstm_forward_ref(x, params))

    assert out.shape == (B, OUT)
    assert jnp.allclose(out, ref, atol=1e-4, rtol=1e-4), "mismatch vs reference"
    print("KERNEL_OK")
</pallas_src>

<mosaic_0001>
module attributes {stable_mosaic.version = 11 : i64} {
  func.func @fused_lstm_kernel(%arg0: memref<64x16xf32, #tpu.memory_space<vmem>>, %arg1: memref<16x512xf32, #tpu.memory_space<vmem>>, %arg2: memref<128x512xf32, #tpu.memory_space<vmem>>, %arg3: memref<1x512xf32, #tpu.memory_space<vmem>>, %arg4: memref<128x512xf32, #tpu.memory_space<vmem>>, %arg5: memref<128x512xf32, #tpu.memory_space<vmem>>, %arg6: memref<1x512xf32, #tpu.memory_space<vmem>>, %arg7: memref<128x8xf32, #tpu.memory_space<vmem>>, %arg8: memref<1x8xf32, #tpu.memory_space<vmem>>, %arg9: memref<8x8xf32, #tpu.memory_space<vmem>>, %arg10: memref<64x512xf32, #tpu.memory_space<vmem>>) attributes {dimension_semantics = [], scalar_prefetch = 0 : i64, scratch_operands = 1 : i64, tpu.core_type = #tpu.core_type<tc>} {
    %cst = arith.constant 0.000000e+00 : f32
    %0 = vector.broadcast %cst : f32 to vector<8x128xf32>
    %c0 = arith.constant 0 : index
    %c0_0 = arith.constant 0 : index
    %1 = vector.load %arg0[%c0, %c0_0] : memref<64x16xf32, #tpu.memory_space<vmem>>, vector<64x16xf32>
    %c0_1 = arith.constant 0 : index
    %c0_2 = arith.constant 0 : index
    %2 = vector.load %arg1[%c0_1, %c0_2] : memref<16x512xf32, #tpu.memory_space<vmem>>, vector<16x512xf32>
    %cst_3 = arith.constant dense<0.000000e+00> : vector<64x512xf32>
    %3 = tpu.matmul %1, %2, %cst_3 {dimension_numbers = #tpu.dot_dimension_numbers<[1], [0], [0], [1], [0, 0, 1, 1], [], []>} : vector<64x16xf32>, vector<16x512xf32>, vector<64x512xf32> -> vector<64x512xf32>
    %c0_4 = arith.constant 0 : index
    %c0_5 = arith.constant 0 : index
    %4 = vector.load %arg3[%c0_4, %c0_5] : memref<1x512xf32, #tpu.memory_space<vmem>>, vector<1x512xf32>
    %5 = vector.broadcast %4 : vector<1x512xf32> to vector<64x512xf32>
    %6 = arith.addf %3, %5 : vector<64x512xf32>
    %c0_6 = arith.constant 0 : index
    %c0_7 = arith.constant 0 : index
    %7 = vector.load %arg10[%c0_6, %c0_7] : memref<64x512xf32, #tpu.memory_space<vmem>>, vector<64x512xf32>
    tpu.vector_store %arg10[%c0_6, %c0_7], %6 {strides = array<i32>} : memref<64x512xf32, #tpu.memory_space<vmem>>, vector<64x512xf32>,
    %c0_8 = arith.constant 0 : index
    %c0_9 = arith.constant 0 : index
    %8 = vector.load %arg2[%c0_8, %c0_9] : memref<128x512xf32, #tpu.memory_space<vmem>>, vector<128x512xf32>
    %c0_10 = arith.constant 0 : index
    %c0_11 = arith.constant 0 : index
    %9 = vector.load %arg4[%c0_10, %c0_11] : memref<128x512xf32, #tpu.memory_space<vmem>>, vector<128x512xf32>
    %c0_12 = arith.constant 0 : index
    %c0_13 = arith.constant 0 : index
    %10 = vector.load %arg5[%c0_12, %c0_13] : memref<128x512xf32, #tpu.memory_space<vmem>>, vector<128x512xf32>
    %c0_14 = arith.constant 0 : index
    %c0_15 = arith.constant 0 : index
    %11 = vector.load %arg6[%c0_14, %c0_15] : memref<1x512xf32, #tpu.memory_space<vmem>>, vector<1x512xf32>
    %c0_i32 = arith.constant 0 : i32
    %12 = tpu.assume_multiple %c0_i32, 8 : i32
    %13 = arith.index_cast %12 : i32 to index
    %c0_16 = arith.constant 0 : index
    %14 = vector.load %arg10[%13, %c0_16] : memref<64x512xf32, #tpu.memory_space<vmem>>, vector<8x512xf32>
    %cst_17 = arith.constant dense<0.000000e+00> : vector<8x512xf32>
    %15 = tpu.matmul %0, %8, %cst_17 {dimension_numbers = #tpu.dot_dimension_numbers<[1], [0], [0], [1], [0, 0, 1, 1], [], []>} : vector<8x128xf32>, vector<128x512xf32>, vector<8x512xf32> -> vector<8x512xf32>
    %16 = arith.addf %14, %15 : vector<8x512xf32>
    %17 = vector.extract_strided_slice %16 {offsets = [0, 0], sizes = [8, 128], strides = [1, 1]} : vector<8x512xf32> to vector<8x128xf32>
    %18 = arith.negf %17 : vector<8x128xf32>
    %19 = math.exp %18 : vector<8x128xf32>
    %cst_18 = arith.constant 1.000000e+00 : f32
    %20 = vector.broadcast %cst_18 : f32 to vector<8x128xf32>
    %21 = arith.addf %20, %19 : vector<8x128xf32>
    %22 = arith.divf %20, %21 : vector<8x128xf32>
    %23 = vector.extract_strided_slice %16 {offsets = [0, 128], sizes = [8, 128], strides = [1, 1]} : vector<8x512xf32> to vector<8x128xf32>
    %24 = arith.negf %23 : vector<8x128xf32>
    %25 = math.exp %24 : vector<8x128xf32>
    %cst_19 = arith.constant 1.000000e+00 : f32
    %26 = vector.broadcast %cst_19 : f32 to vector<8x128xf32>
    %27 = arith.addf %26, %25 : vector<8x128xf32>
    %28 = arith.divf %26, %27 : vector<8x128xf32>
    %29 = vector.extract_strided_slice %16 {offsets = [0, 256], sizes = [8, 128], strides = [1, 1]} : vector<8x512xf32> to vector<8x128xf32>
    %30 = math.tanh %29 : vector<8x128xf32>
    %31 = vector.extract_strided_slice %16 {offsets = [0, 384], sizes = [8, 128], strides = [1, 1]} : vector<8x512xf32> to vector<8x128xf32>
    %32 = arith.negf %31 : vector<8x128xf32>
    %33 = math.exp %32 : vector<8x128xf32>
    %cst_20 = arith.constant 1.000000e+00 : f32
    %34 = vector.broadcast %cst_20 : f32 to vector<8x128xf32>
    %35 = arith.addf %34, %33 : vector<8x128xf32>
    %36 = arith.divf %34, %35 : vector<8x128xf32>
    %37 = arith.mulf %28, %0 : vector<8x128xf32>
    %38 = arith.mulf %22, %30 : vector<8x128xf32>
    %39 = arith.addf %37, %38 : vector<8x128xf32>
    %40 = math.tanh %39 : vector<8x128xf32>
    %41 = arith.mulf %36, %40 : vector<8x128xf32>
    %c1_i32 = arith.constant 1 : i32
    %c8_i32 = arith.constant 8 : i32
    %42 = arith.muli %c1_i32, %c8_i32 : i32
    %43 = tpu.assume_multiple %42, 8 : i32
    %44 = arith.index_cast %43 : i32 to index
    %c0_21 = arith.constant 0 : index
    %45 = vector.load %arg10[%44, %c0_21] : memref<64x512xf32, #tpu.memory_space<vmem>>, vector<8x512xf32>
    %cst_22 = arith.constant dense<0.000000e+00> : vector<8x512xf32>
    %46 = tpu.matmul %41, %8, %cst_22 {dimension_numbers = #tpu.dot_dimension_numbers<[1], [0], [0], [1], [0, 0, 1, 1], [], []>} : vector<8x128xf32>, vector<128x512xf32>, vector<8x512xf32> -> vector<8x512xf32>
    %47 = arith.addf %45, %46 : vector<8x512xf32>
    %48 = vector.extract_strided_slice %47 {offsets = [0, 0], sizes = [8, 128], strides = [1, 1]} : vector<8x512xf32> to vector<8x128xf32>
    %49 = arith.negf %48 : vector<8x128xf32>
    %50 = math.exp %49 : vector<8x128xf32>
    %cst_23 = arith.constant 1.000000e+00 : f32
    %51 = vector.broadcast %cst_23 : f32 to vector<8x128xf32>
    %52 = arith.addf %51, %50 : vector<8x128xf32>
    %53 = arith.divf %51, %52 : vector<8x128xf32>
    %54 = vector.extract_strided_slice %47 {offsets = [0, 128], sizes = [8, 128], strides = [1, 1]} : vector<8x512xf32> to vector<8x128xf32>
    %55 = arith.negf %54 : vector<8x128xf32>
    %56 = math.exp %55 : vector<8x128xf32>
    %cst_24 = arith.constant 1.000000e+00 : f32
    %57 = vector.broadcast %cst_24 : f32 to vector<8x128xf32>
    %58 = arith.addf %57, %56 : vector<8x128xf32>
    %59 = arith.divf %57, %58 : vector<8x128xf32>
    %60 = vector.extract_strided_slice %47 {offsets = [0, 256], sizes = [8, 128], strides = [1, 1]} : vector<8x512xf32> to vector<8x128xf32>
    %61 = math.tanh %60 : vector<8x128xf32>
    %62 = vector.extract_strided_slice %47 {offsets = [0, 384], sizes = [8, 128], strides = [1, 1]} : vector<8x512xf32> to vector<8x128xf32>
    %63 = arith.negf %62 : vector<8x128xf32>
    %64 = math.exp %63 : vector<8x128xf32>
    %cst_25 = arith.constant 1.000000e+00 : f32
    %65 = vector.broadcast %cst_25 : f32 to vector<8x128xf32>
    %66 = arith.addf %65, %64 : vector<8x128xf32>
    %67 = arith.divf %65, %66 : vector<8x128xf32>
    %68 = arith.mulf %59, %39 : vector<8x128xf32>
    %69 = arith.mulf %53, %61 : vector<8x128xf32>
    %70 = arith.addf %68, %69 : vector<8x128xf32>
    %71 = math.tanh %70 : vector<8x128xf32>
    %72 = arith.mulf %67, %71 : vector<8x128xf32>
    %cst_26 = arith.constant dense<0.000000e+00> : vector<8x512xf32>
    %73 = tpu.matmul %41, %9, %cst_26 {dimension_numbers = #tpu.dot_dimension_numbers<[1], [0], [0], [1], [0, 0, 1, 1], [], []>} : vector<8x128xf32>, vector<128x512xf32>, vector<8x512xf32> -> vector<8x512xf32>
    %74 = vector.broadcast %11 : vector<1x512xf32> to vector<8x512xf32>
    %75 = arith.addf %73, %74 : vector<8x512xf32>
    %cst_27 = arith.constant dense<0.000000e+00> : vector<8x512xf32>
    %76 = tpu.matmul %0, %10, %cst_27 {dimension_numbers = #tpu.dot_dimension_numbers<[1], [0], [0], [1], [0, 0, 1, 1], [], []>} : vector<8x128xf32>, vector<128x512xf32>, vector<8x512xf32> -> vector<8x512xf32>
    %77 = arith.addf %75, %76 : vector<8x512xf32>
    %78 = vector.extract_strided_slice %77 {offsets = [0, 0], sizes = [8, 128], strides = [1, 1]} : vector<8x512xf32> to vector<8x128xf32>
    %79 = arith.negf %78 : vector<8x128xf32>
    %80 = math.exp %79 : vector<8x128xf32>
    %cst_28 = arith.constant 1.000000e+00 : f32
    %81 = vector.broadcast %cst_28 : f32 to vector<8x128xf32>
    %82 = arith.addf %81, %80 : vector<8x128xf32>
    %83 = arith.divf %81, %82 : vector<8x128xf32>
    %84 = vector.extract_strided_slice %77 {offsets = [0, 128], sizes = [8, 128], strides = [1, 1]} : vector<8x512xf32> to vector<8x128xf32>
    %85 = arith.negf %84 : vector<8x128xf32>
    %86 = math.exp %85 : vector<8x128xf32>
    %cst_29 = arith.constant 1.000000e+00 : f32
    %87 = vector.broadcast %cst_29 : f32 to vector<8x128xf32>
    %88 = arith.addf %87, %86 : vector<8x128xf32>
    %89 = arith.divf %87, %88 : vector<8x128xf32>
    %90 = vector.extract_strided_slice %77 {offsets = [0, 256], sizes = [8, 128], strides = [1, 1]} : vector<8x512xf32> to vector<8x128xf32>
    %91 = math.tanh %90 : vector<8x128xf32>
    %92 = vector.extract_strided_slice %77 {offsets = [0, 384], sizes = [8, 128], strides = [1, 1]} : vector<8x512xf32> to vector<8x128xf32>
    %93 = arith.negf %92 : vector<8x128xf32>
    %94 = math.exp %93 : vector<8x128xf32>
    %cst_30 = arith.constant 1.000000e+00 : f32
    %95 = vector.broadcast %cst_30 : f32 to vector<8x128xf32>
    %96 = arith.addf %95, %94 : vector<8x128xf32>
    %97 = arith.divf %95, %96 : vector<8x128xf32>
    %98 = arith.mulf %89, %0 : vector<8x128xf32>
    %99 = arith.mulf %83, %91 : vector<8x128xf32>
    %100 = arith.addf %98, %99 : vector<8x128xf32>
    %101 = math.tanh %100 : vector<8x128xf32>
    %102 = arith.mulf %97, %101 : vector<8x128xf32>
    %c2_i32 = arith.constant 2 : i32
    %c8_i32_31 = arith.constant 8 : i32
    %103 = arith.muli %c2_i32, %c8_i32_31 : i32
    %104 = tpu.assume_multiple %103, 8 : i32
    %105 = arith.index_cast %104 : i32 to index
    %c0_32 = arith.constant 0 : index
    %106 = vector.load %arg10[%105, %c0_32] : memref<64x512xf32, #tpu.memory_space<vmem>>, vector<8x512xf32>
    %cst_33 = arith.constant dense<0.000000e+00> : vector<8x512xf32>
    %107 = tpu.matmul %72, %8, %cst_33 {dimension_numbers = #tpu.dot_dimension_numbers<[1], [0], [0], [1], [0, 0, 1, 1], [], []>} : vector<8x128xf32>, vector<128x512xf32>, vector<8x512xf32> -> vector<8x512xf32>
    %108 = arith.addf %106, %107 : vector<8x512xf32>
    %109 = vector.extract_strided_slice %108 {offsets = [0, 0], sizes = [8, 128], strides = [1, 1]} : vector<8x512xf32> to vector<8x128xf32>
    %110 = arith.negf %109 : vector<8x128xf32>
    %111 = math.exp %110 : vector<8x128xf32>
    %cst_34 = arith.constant 1.000000e+00 : f32
    %112 = vector.broadcast %cst_34 : f32 to vector<8x128xf32>
    %113 = arith.addf %112, %111 : vector<8x128xf32>
    %114 = arith.divf %112, %113 : vector<8x128xf32>
    %115 = vector.extract_strided_slice %108 {offsets = [0, 128], sizes = [8, 128], strides = [1, 1]} : vector<8x512xf32> to vector<8x128xf32>
    %116 = arith.negf %115 : vector<8x128xf32>
    %117 = math.exp %116 : vector<8x128xf32>
    %cst_35 = arith.constant 1.000000e+00 : f32
    %118 = vector.broadcast %cst_35 : f32 to vector<8x128xf32>
    %119 = arith.addf %118, %117 : vector<8x128xf32>
    %120 = arith.divf %118, %119 : vector<8x128xf32>
    %121 = vector.extract_strided_slice %108 {offsets = [0, 256], sizes = [8, 128], strides = [1, 1]} : vector<8x512xf32> to vector<8x128xf32>
    %122 = math.tanh %121 : vector<8x128xf32>
    %123 = vector.extract_strided_slice %108 {offsets = [0, 384], sizes = [8, 128], strides = [1, 1]} : vector<8x512xf32> to vector<8x128xf32>
    %124 = arith.negf %123 : vector<8x128xf32>
    %125 = math.exp %124 : vector<8x128xf32>
    %cst_36 = arith.constant 1.000000e+00 : f32
    %126 = vector.broadcast %cst_36 : f32 to vector<8x128xf32>
    %127 = arith.addf %126, %125 : vector<8x128xf32>
    %128 = arith.divf %126, %127 : vector<8x128xf32>
    %129 = arith.mulf %120, %70 : vector<8x128xf32>
    %130 = arith.mulf %114, %122 : vector<8x128xf32>
    %131 = arith.addf %129, %130 : vector<8x128xf32>
    %132 = math.tanh %131 : vector<8x128xf32>
    %133 = arith.mulf %128, %132 : vector<8x128xf32>
    %cst_37 = arith.constant dense<0.000000e+00> : vector<8x512xf32>
    %134 = tpu.matmul %72, %9, %cst_37 {dimension_numbers = #tpu.dot_dimension_numbers<[1], [0], [0], [1], [0, 0, 1, 1], [], []>} : vector<8x128xf32>, vector<128x512xf32>, vector<8x512xf32> -> vector<8x512xf32>
    %135 = vector.broadcast %11 : vector<1x512xf32> to vector<8x512xf32>
    %136 = arith.addf %134, %135 : vector<8x512xf32>
    %cst_38 = arith.constant dense<0.000000e+00> : vector<8x512xf32>
    %137 = tpu.matmul %102, %10, %cst_38 {dimension_numbers = #tpu.dot_dimension_numbers<[1], [0], [0], [1], [0, 0, 1, 1], [], []>} : vector<8x128xf32>, vector<128x512xf32>, vector<8x512xf32> -> vector<8x512xf32>
    %138 = arith.addf %136, %137 : vector<8x512xf32>
    %139 = vector.extract_strided_slice %138 {offsets = [0, 0], sizes = [8, 128], strides = [1, 1]} : vector<8x512xf32> to vector<8x128xf32>
    %140 = arith.negf %139 : vector<8x128xf32>
    %141 = math.exp %140 : vector<8x128xf32>
    %cst_39 = arith.constant 1.000000e+00 : f32
    %142 = vector.broadcast %cst_39 : f32 to vector<8x128xf32>
    %143 = arith.addf %142, %141 : vector<8x128xf32>
    %144 = arith.divf %142, %143 : vector<8x128xf32>
    %145 = vector.extract_strided_slice %138 {offsets = [0, 128], sizes = [8, 128], strides = [1, 1]} : vector<8x512xf32> to vector<8x128xf32>
    %146 = arith.negf %145 : vector<8x128xf32>
    %147 = math.exp %146 : vector<8x128xf32>
    %cst_40 = arith.constant 1.000000e+00 : f32
    %148 = vector.broadcast %cst_40 : f32 to vector<8x128xf32>
    %149 = arith.addf %148, %147 : vector<8x128xf32>
    %150 = arith.divf %148, %149 : vector<8x128xf32>
    %151 = vector.extract_strided_slice %138 {offsets = [0, 256], sizes = [8, 128], strides = [1, 1]} : vector<8x512xf32> to vector<8x128xf32>
    %152 = math.tanh %151 : vector<8x128xf32>
    %153 = vector.extract_strided_slice %138 {offsets = [0, 384], sizes = [8, 128], strides = [1, 1]} : vector<8x512xf32> to vector<8x128xf32>
    %154 = arith.negf %153 : vector<8x128xf32>
    %155 = math.exp %154 : vector<8x128xf32>
    %cst_41 = arith.constant 1.000000e+00 : f32
    %156 = vector.broadcast %cst_41 : f32 to vector<8x128xf32>
    %157 = arith.addf %156, %155 : vector<8x128xf32>
    %158 = arith.divf %156, %157 : vector<8x128xf32>
    %159 = arith.mulf %150, %100 : vector<8x128xf32>
    %160 = arith.mulf %144, %152 : vector<8x128xf32>
    %161 = arith.addf %159, %160 : vector<8x128xf32>
    %162 = math.tanh %161 : vector<8x128xf32>
    %163 = arith.mulf %158, %162 : vector<8x128xf32>
    %c3_i32 = arith.constant 3 : i32
    %c8_i32_42 = arith.constant 8 : i32
    %164 = arith.muli %c3_i32, %c8_i32_42 : i32
    %165 = tpu.assume_multiple %164, 8 : i32
    %166 = arith.index_cast %165 : i32 to index
    %c0_43 = arith.constant 0 : index
    %167 = vector.load %arg10[%166, %c0_43] : memref<64x512xf32, #tpu.memory_space<vmem>>, vector<8x512xf32>
    %cst_44 = arith.constant dense<0.000000e+00> : vector<8x512xf32>
    %168 = tpu.matmul %133, %8, %cst_44 {dimension_numbers = #tpu.dot_dimension_numbers<[1], [0], [0], [1], [0, 0, 1, 1], [], []>} : vector<8x128xf32>, vector<128x512xf32>, vector<8x512xf32> -> vector<8x512xf32>
    %169 = arith.addf %167, %168 : vector<8x512xf32>
    %170 = vector.extract_strided_slice %169 {offsets = [0, 0], sizes = [8, 128], strides = [1, 1]} : vector<8x512xf32> to vector<8x128xf32>
    %171 = arith.negf %170 : vector<8x128xf32>
    %172 = math.exp %171 : vector<8x128xf32>
    %cst_45 = arith.constant 1.000000e+00 : f32
    %173 = vector.broadcast %cst_45 : f32 to vector<8x128xf32>
    %174 = arith.addf %173, %172 : vector<8x128xf32>
    %175 = arith.divf %173, %174 : vector<8x128xf32>
    %176 = vector.extract_strided_slice %169 {offsets = [0, 128], sizes = [8, 128], strides = [1, 1]} : vector<8x512xf32> to vector<8x128xf32>
    %177 = arith.negf %176 : vector<8x128xf32>
    %178 = math.exp %177 : vector<8x128xf32>
    %cst_46 = arith.constant 1.000000e+00 : f32
    %179 = vector.broadcast %cst_46 : f32 to vector<8x128xf32>
    %180 = arith.addf %179, %178 : vector<8x128xf32>
    %181 = arith.divf %179, %180 : vector<8x128xf32>
    %182 = vector.extract_strided_slice %169 {offsets = [0, 256], sizes = [8, 128], strides = [1, 1]} : vector<8x512xf32> to vector<8x128xf32>
    %183 = math.tanh %182 : vector<8x128xf32>
    %184 = vector.extract_strided_slice %169 {offsets = [0, 384], sizes = [8, 128], strides = [1, 1]} : vector<8x512xf32> to vector<8x128xf32>
    %185 = arith.negf %184 : vector<8x128xf32>
    %186 = math.exp %185 : vector<8x128xf32>
    %cst_47 = arith.constant 1.000000e+00 : f32
    %187 = vector.broadcast %cst_47 : f32 to vector<8x128xf32>
    %188 = arith.addf %187, %186 : vector<8x128xf32>
    %189 = arith.divf %187, %188 : vector<8x128xf32>
    %190 = arith.mulf %181, %131 : vector<8x128xf32>
    %191 = arith.mulf %175, %183 : vector<8x128xf32>
    %192 = arith.addf %190, %191 : vector<8x128xf32>
    %193 = math.tanh %192 : vector<8x128xf32>
    %194 = arith.mulf %189, %193 : vector<8x128xf32>
    %cst_48 = arith.constant dense<0.000000e+00> : vector<8x512xf32>
    %195 = tpu.matmul %133, %9, %cst_48 {dimension_numbers = #tpu.dot_dimension_numbers<[1], [0], [0], [1], [0, 0, 1, 1], [], []>} : vector<8x128xf32>, vector<128x512xf32>, vector<8x512xf32> -> vector<8x512xf32>
    %196 = vector.broadcast %11 : vector<1x512xf32> to vector<8x512xf32>
    %197 = arith.addf %195, %196 : vector<8x512xf32>
    %cst_49 = arith.constant dense<0.000000e+00> : vector<8x512xf32>
    %198 = tpu.matmul %163, %10, %cst_49 {dimension_numbers = #tpu.dot_dimension_numbers<[1], [0], [0], [1], [0, 0, 1, 1], [], []>} : vector<8x128xf32>, vector<128x512xf32>, vector<8x512xf32> -> vector<8x512xf32>
    %199 = arith.addf %197, %198 : vector<8x512xf32>
    %200 = vector.extract_strided_slice %199 {offsets = [0, 0], sizes = [8, 128], strides = [1, 1]} : vector<8x512xf32> to vector<8x128xf32>
    %201 = arith.negf %200 : vector<8x128xf32>
    %202 = math.exp %201 : vector<8x128xf32>
    %cst_50 = arith.constant 1.000000e+00 : f32
    %203 = vector.broadcast %cst_50 : f32 to vector<8x128xf32>
    %204 = arith.addf %203, %202 : vector<8x128xf32>
    %205 = arith.divf %203, %204 : vector<8x128xf32>
    %206 = vector.extract_strided_slice %199 {offsets = [0, 128], sizes = [8, 128], strides = [1, 1]} : vector<8x512xf32> to vector<8x128xf32>
    %207 = arith.negf %206 : vector<8x128xf32>
    %208 = math.exp %207 : vector<8x128xf32>
    %cst_51 = arith.constant 1.000000e+00 : f32
    %209 = vector.broadcast %cst_51 : f32 to vector<8x128xf32>
    %210 = arith.addf %209, %208 : vector<8x128xf32>
    %211 = arith.divf %209, %210 : vector<8x128xf32>
    %212 = vector.extract_strided_slice %199 {offsets = [0, 256], sizes = [8, 128], strides = [1, 1]} : vector<8x512xf32> to vector<8x128xf32>
    %213 = math.tanh %212 : vector<8x128xf32>
    %214 = vector.extract_strided_slice %199 {offsets = [0, 384], sizes = [8, 128], strides = [1, 1]} : vector<8x512xf32> to vector<8x128xf32>
    %215 = arith.negf %214 : vector<8x128xf32>
    %216 = math.exp %215 : vector<8x128xf32>
    %cst_52 = arith.constant 1.000000e+00 : f32
    %217 = vector.broadcast %cst_52 : f32 to vector<8x128xf32>
    %218 = arith.addf %217, %216 : vector<8x128xf32>
    %219 = arith.divf %217, %218 : vector<8x128xf32>
    %220 = arith.mulf %211, %161 : vector<8x128xf32>
    %221 = arith.mulf %205, %213 : vector<8x128xf32>
    %222 = arith.addf %220, %221 : vector<8x128xf32>
    %223 = math.tanh %222 : vector<8x128xf32>
    %224 = arith.mulf %219, %223 : vector<8x128xf32>
    %c4_i32 = arith.constant 4 : i32
    %c8_i32_53 = arith.constant 8 : i32
    %225 = arith.muli %c4_i32, %c8_i32_53 : i32
    %226 = tpu.assume_multiple %225, 8 : i32
    %227 = arith.index_cast %226 : i32 to index
    %c0_54 = arith.constant 0 : index
    %228 = vector.load %arg10[%227, %c0_54] : memref<64x512xf32, #tpu.memory_space<vmem>>, vector<8x512xf32>
    %cst_55 = arith.constant dense<0.000000e+00> : vector<8x512xf32>
    %229 = tpu.matmul %194, %8, %cst_55 {dimension_numbers = #tpu.dot_dimension_numbers<[1], [0], [0], [1], [0, 0, 1, 1], [], []>} : vector<8x128xf32>, vector<128x512xf32>, vector<8x512xf32> -> vector<8x512xf32>
    %230 = arith.addf %228, %229 : vector<8x512xf32>
    %231 = vector.extract_strided_slice %230 {offsets = [0, 0], sizes = [8, 128], strides = [1, 1]} : vector<8x512xf32> to vector<8x128xf32>
    %232 = arith.negf %231 : vector<8x128xf32>
    %233 = math.exp %232 : vector<8x128xf32>
    %cst_56 = arith.constant 1.000000e+00 : f32
    %234 = vector.broadcast %cst_56 : f32 to vector<8x128xf32>
    %235 = arith.addf %234, %233 : vector<8x128xf32>
    %236 = arith.divf %234, %235 : vector<8x128xf32>
    %237 = vector.extract_strided_slice %230 {offsets = [0, 128], sizes = [8, 128], strides = [1, 1]} : vector<8x512xf32> to vector<8x128xf32>
    %238 = arith.negf %237 : vector<8x128xf32>
    %239 = math.exp %238 : vector<8x128xf32>
    %cst_57 = arith.constant 1.000000e+00 : f32
    %240 = vector.broadcast %cst_57 : f32 to vector<8x128xf32>
    %241 = arith.addf %240, %239 : vector<8x128xf32>
    %242 = arith.divf %240, %241 : vector<8x128xf32>
    %243 = vector.extract_strided_slice %230 {offsets = [0, 256], sizes = [8, 128], strides = [1, 1]} : vector<8x512xf32> to vector<8x128xf32>
    %244 = math.tanh %243 : vector<8x128xf32>
    %245 = vector.extract_strided_slice %230 {offsets = [0, 384], sizes = [8, 128], strides = [1, 1]} : vector<8x512xf32> to vector<8x128xf32>
    %246 = arith.negf %245 : vector<8x128xf32>
    %247 = math.exp %246 : vector<8x128xf32>
    %cst_58 = arith.constant 1.000000e+00 : f32
    %248 = vector.broadcast %cst_58 : f32 to vector<8x128xf32>
    %249 = arith.addf %248, %247 : vector<8x128xf32>
    %250 = arith.divf %248, %249 : vector<8x128xf32>
    %251 = arith.mulf %242, %192 : vector<8x128xf32>
    %252 = arith.mulf %236, %244 : vector<8x128xf32>
    %253 = arith.addf %251, %252 : vector<8x128xf32>
    %254 = math.tanh %253 : vector<8x128xf32>
    %255 = arith.mulf %250, %254 : vector<8x128xf32>
    %cst_59 = arith.constant dense<0.000000e+00> : vector<8x512xf32>
    %256 = tpu.matmul %194, %9, %cst_59 {dimension_numbers = #tpu.dot_dimension_numbers<[1], [0], [0], [1], [0, 0, 1, 1], [], []>} : vector<8x128xf32>, vector<128x512xf32>, vector<8x512xf32> -> vector<8x512xf32>
    %257 = vector.broadcast %11 : vector<1x512xf32> to vector<8x512xf32>
    %258 = arith.addf %256, %257 : vector<8x512xf32>
    %cst_60 = arith.constant dense<0.000000e+00> : vector<8x512xf32>
    %259 = tpu.matmul %224, %10, %cst_60 {dimension_numbers = #tpu.dot_dimension_numbers<[1], [0], [0], [1], [0, 0, 1, 1], [], []>} : vector<8x128xf32>, vector<128x512xf32>, vector<8x512xf32> -> vector<8x512xf32>
    %260 = arith.addf %258, %259 : vector<8x512xf32>
    %261 = vector.extract_strided_slice %260 {offsets = [0, 0], sizes = [8, 128], strides = [1, 1]} : vector<8x512xf32> to vector<8x128xf32>
    %262 = arith.negf %261 : vector<8x128xf32>
    %263 = math.exp %262 : vector<8x128xf32>
    %cst_61 = arith.constant 1.000000e+00 : f32
    %264 = vector.broadcast %cst_61 : f32 to vector<8x128xf32>
    %265 = arith.addf %264, %263 : vector<8x128xf32>
    %266 = arith.divf %264, %265 : vector<8x128xf32>
    %267 = vector.extract_strided_slice %260 {offsets = [0, 128], sizes = [8, 128], strides = [1, 1]} : vector<8x512xf32> to vector<8x128xf32>
    %268 = arith.negf %267 : vector<8x128xf32>
    %269 = math.exp %268 : vector<8x128xf32>
    %cst_62 = arith.constant 1.000000e+00 : f32
    %270 = vector.broadcast %cst_62 : f32 to vector<8x128xf32>
    %271 = arith.addf %270, %269 : vector<8x128xf32>
    %272 = arith.divf %270, %271 : vector<8x128xf32>
    %273 = vector.extract_strided_slice %260 {offsets = [0, 256], sizes = [8, 128], strides = [1, 1]} : vector<8x512xf32> to vector<8x128xf32>
    %274 = math.tanh %273 : vector<8x128xf32>
    %275 = vector.extract_strided_slice %260 {offsets = [0, 384], sizes = [8, 128], strides = [1, 1]} : vector<8x512xf32> to vector<8x128xf32>
    %276 = arith.negf %275 : vector<8x128xf32>
    %277 = math.exp %276 : vector<8x128xf32>
    %cst_63 = arith.constant 1.000000e+00 : f32
    %278 = vector.broadcast %cst_63 : f32 to vector<8x128xf32>
    %279 = arith.addf %278, %277 : vector<8x128xf32>
    %280 = arith.divf %278, %279 : vector<8x128xf32>
    %281 = arith.mulf %272, %222 : vector<8x128xf32>
    %282 = arith.mulf %266, %274 : vector<8x128xf32>
    %283 = arith.addf %281, %282 : vector<8x128xf32>
    %284 = math.tanh %283 : vector<8x128xf32>
    %285 = arith.mulf %280, %284 : vector<8x128xf32>
    %c5_i32 = arith.constant 5 : i32
    %c8_i32_64 = arith.constant 8 : i32
    %286 = arith.muli %c5_i32, %c8_i32_64 : i32
    %287 = tpu.assume_multiple %286, 8 : i32
    %288 = arith.index_cast %287 : i32 to index
    %c0_65 = arith.constant 0 : index
    %289 = vector.load %arg10[%288, %c0_65] : memref<64x512xf32, #tpu.memory_space<vmem>>, vector<8x512xf32>
    %cst_66 = arith.constant dense<0.000000e+00> : vector<8x512xf32>
    %290 = tpu.matmul %255, %8, %cst_66 {dimension_numbers = #tpu.dot_dimension_numbers<[1], [0], [0], [1], [0, 0, 1, 1], [], []>} : vector<8x128xf32>, vector<128x512xf32>, vector<8x512xf32> -> vector<8x512xf32>
    %291 = arith.addf %289, %290 : vector<8x512xf32>
    %292 = vector.extract_strided_slice %291 {offsets = [0, 0], sizes = [8, 128], strides = [1, 1]} : vector<8x512xf32> to vector<8x128xf32>
    %293 = arith.negf %292 : vector<8x128xf32>
    %294 = math.exp %293 : vector<8x128xf32>
    %cst_67 = arith.constant 1.000000e+00 : f32
    %295 = vector.broadcast %cst_67 : f32 to vector<8x128xf32>
    %296 = arith.addf %295, %294 : vector<8x128xf32>
    %297 = arith.divf %295, %296 : vector<8x128xf32>
    %298 = vector.extract_strided_slice %291 {offsets = [0, 128], sizes = [8, 128], strides = [1, 1]} : vector<8x512xf32> to vector<8x128xf32>
    %299 = arith.negf %298 : vector<8x128xf32>
    %300 = math.exp %299 : vector<8x128xf32>
    %cst_68 = arith.constant 1.000000e+00 : f32
    %301 = vector.broadcast %cst_68 : f32 to vector<8x128xf32>
    %302 = arith.addf %301, %300 : vector<8x128xf32>
    %303 = arith.divf %301, %302 : vector<8x128xf32>
    %304 = vector.extract_strided_slice %291 {offsets = [0, 256], sizes = [8, 128], strides = [1, 1]} : vector<8x512xf32> to vector<8x128xf32>
    %305 = math.tanh %304 : vector<8x128xf32>
    %306 = vector.extract_strided_slice %291 {offsets = [0, 384], sizes = [8, 128], strides = [1, 1]} : vector<8x512xf32> to vector<8x128xf32>
    %307 = arith.negf %306 : vector<8x128xf32>
    %308 = math.exp %307 : vector<8x128xf32>
    %cst_69 = arith.constant 1.000000e+00 : f32
    %309 = vector.broadcast %cst_69 : f32 to vector<8x128xf32>
    %310 = arith.addf %309, %308 : vector<8x128xf32>
    %311 = arith.divf %309, %310 : vector<8x128xf32>
    %312 = arith.mulf %303, %253 : vector<8x128xf32>
    %313 = arith.mulf %297, %305 : vector<8x128xf32>
    %314 = arith.addf %312, %313 : vector<8x128xf32>
    %315 = math.tanh %314 : vector<8x128xf32>
    %316 = arith.mulf %311, %315 : vector<8x128xf32>
    %cst_70 = arith.constant dense<0.000000e+00> : vector<8x512xf32>
    %317 = tpu.matmul %255, %9, %cst_70 {dimension_numbers = #tpu.dot_dimension_numbers<[1], [0], [0], [1], [0, 0, 1, 1], [], []>} : vector<8x128xf32>, vector<128x512xf32>, vector<8x512xf32> -> vector<8x512xf32>
    %318 = vector.broadcast %11 : vector<1x512xf32> to vector<8x512xf32>
    %319 = arith.addf %317, %318 : vector<8x512xf32>
    %cst_71 = arith.constant dense<0.000000e+00> : vector<8x512xf32>
    %320 = tpu.matmul %285, %10, %cst_71 {dimension_numbers = #tpu.dot_dimension_numbers<[1], [0], [0], [1], [0, 0, 1, 1], [], []>} : vector<8x128xf32>, vector<128x512xf32>, vector<8x512xf32> -> vector<8x512xf32>
    %321 = arith.addf %319, %320 : vector<8x512xf32>
    %322 = vector.extract_strided_slice %321 {offsets = [0, 0], sizes = [8, 128], strides = [1, 1]} : vector<8x512xf32> to vector<8x128xf32>
    %323 = arith.negf %322 : vector<8x128xf32>
    %324 = math.exp %323 : vector<8x128xf32>
    %cst_72 = arith.constant 1.000000e+00 : f32
    %325 = vector.broadcast %cst_72 : f32 to vector<8x128xf32>
    %326 = arith.addf %325, %324 : vector<8x128xf32>
    %327 = arith.divf %325, %326 : vector<8x128xf32>
    %328 = vector.extract_strided_slice %321 {offsets = [0, 128], sizes = [8, 128], strides = [1, 1]} : vector<8x512xf32> to vector<8x128xf32>
    %329 = arith.negf %328 : vector<8x128xf32>
    %330 = math.exp %329 : vector<8x128xf32>
    %cst_73 = arith.constant 1.000000e+00 : f32
    %331 = vector.broadcast %cst_73 : f32 to vector<8x128xf32>
    %332 = arith.addf %331, %330 : vector<8x128xf32>
    %333 = arith.divf %331, %332 : vector<8x128xf32>
    %334 = vector.extract_strided_slice %321 {offsets = [0, 256], sizes = [8, 128], strides = [1, 1]} : vector<8x512xf32> to vector<8x128xf32>
    %335 = math.tanh %334 : vector<8x128xf32>
    %336 = vector.extract_strided_slice %321 {offsets = [0, 384], sizes = [8, 128], strides = [1, 1]} : vector<8x512xf32> to vector<8x128xf32>
    %337 = arith.negf %336 : vector<8x128xf32>
    %338 = math.exp %337 : vector<8x128xf32>
    %cst_74 = arith.constant 1.000000e+00 : f32
    %339 = vector.broadcast %cst_74 : f32 to vector<8x128xf32>
    %340 = arith.addf %339, %338 : vector<8x128xf32>
    %341 = arith.divf %339, %340 : vector<8x128xf32>
    %342 = arith.mulf %333, %283 : vector<8x128xf32>
    %343 = arith.mulf %327, %335 : vector<8x128xf32>
    %344 = arith.addf %342, %343 : vector<8x128xf32>
    %345 = math.tanh %344 : vector<8x128xf32>
    %346 = arith.mulf %341, %345 : vector<8x128xf32>
    %c6_i32 = arith.constant 6 : i32
    %c8_i32_75 = arith.constant 8 : i32
    %347 = arith.muli %c6_i32, %c8_i32_75 : i32
    %348 = tpu.assume_multiple %347, 8 : i32
    %349 = arith.index_cast %348 : i32 to index
    %c0_76 = arith.constant 0 : index
    %350 = vector.load %arg10[%349, %c0_76] : memref<64x512xf32, #tpu.memory_space<vmem>>, vector<8x512xf32>
    %cst_77 = arith.constant dense<0.000000e+00> : vector<8x512xf32>
    %351 = tpu.matmul %316, %8, %cst_77 {dimension_numbers = #tpu.dot_dimension_numbers<[1], [0], [0], [1], [0, 0, 1, 1], [], []>} : vector<8x128xf32>, vector<128x512xf32>, vector<8x512xf32> -> vector<8x512xf32>
    %352 = arith.addf %350, %351 : vector<8x512xf32>
    %353 = vector.extract_strided_slice %352 {offsets = [0, 0], sizes = [8, 128], strides = [1, 1]} : vector<8x512xf32> to vector<8x128xf32>
    %354 = arith.negf %353 : vector<8x128xf32>
    %355 = math.exp %354 : vector<8x128xf32>
    %cst_78 = arith.constant 1.000000e+00 : f32
    %356 = vector.broadcast %cst_78 : f32 to vector<8x128xf32>
    %357 = arith.addf %356, %355 : vector<8x128xf32>
    %358 = arith.divf %356, %357 : vector<8x128xf32>
    %359 = vector.extract_strided_slice %352 {offsets = [0, 128], sizes = [8, 128], strides = [1, 1]} : vector<8x512xf32> to vector<8x128xf32>
    %360 = arith.negf %359 : vector<8x128xf32>
    %361 = math.exp %360 : vector<8x128xf32>
    %cst_79 = arith.constant 1.000000e+00 : f32
    %362 = vector.broadcast %cst_79 : f32 to vector<8x128xf32>
    %363 = arith.addf %362, %361 : vector<8x128xf32>
    %364 = arith.divf %362, %363 : vector<8x128xf32>
    %365 = vector.extract_strided_slice %352 {offsets = [0, 256], sizes = [8, 128], strides = [1, 1]} : vector<8x512xf32> to vector<8x128xf32>
    %366 = math.tanh %365 : vector<8x128xf32>
    %367 = vector.extract_strided_slice %352 {offsets = [0, 384], sizes = [8, 128], strides = [1, 1]} : vector<8x512xf32> to vector<8x128xf32>
    %368 = arith.negf %367 : vector<8x128xf32>
    %369 = math.exp %368 : vector<8x128xf32>
    %cst_80 = arith.constant 1.000000e+00 : f32
    %370 = vector.broadcast %cst_80 : f32 to vector<8x128xf32>
    %371 = arith.addf %370, %369 : vector<8x128xf32>
    %372 = arith.divf %370, %371 : vector<8x128xf32>
    %373 = arith.mulf %364, %314 : vector<8x128xf32>
    %374 = arith.mulf %358, %366 : vector<8x128xf32>
    %375 = arith.addf %373, %374 : vector<8x128xf32>
    %376 = math.tanh %375 : vector<8x128xf32>
    %377 = arith.mulf %372, %376 : vector<8x128xf32>
    %cst_81 = arith.constant dense<0.000000e+00> : vector<8x512xf32>
    %378 = tpu.matmul %316, %9, %cst_81 {dimension_numbers = #tpu.dot_dimension_numbers<[1], [0], [0], [1], [0, 0, 1, 1], [], []>} : vector<8x128xf32>, vector<128x512xf32>, vector<8x512xf32> -> vector<8x512xf32>
    %379 = vector.broadcast %11 : vector<1x512xf32> to vector<8x512xf32>
    %380 = arith.addf %378, %379 : vector<8x512xf32>
    %cst_82 = arith.constant dense<0.000000e+00> : vector<8x512xf32>
    %381 = tpu.matmul %346, %10, %cst_82 {dimension_numbers = #tpu.dot_dimension_numbers<[1], [0], [0], [1], [0, 0, 1, 1], [], []>} : vector<8x128xf32>, vector<128x512xf32>, vector<8x512xf32> -> vector<8x512xf32>
    %382 = arith.addf %380, %381 : vector<8x512xf32>
    %383 = vector.extract_strided_slice %382 {offsets = [0, 0], sizes = [8, 128], strides = [1, 1]} : vector<8x512xf32> to vector<8x128xf32>
    %384 = arith.negf %383 : vector<8x128xf32>
    %385 = math.exp %384 : vector<8x128xf32>
    %cst_83 = arith.constant 1.000000e+00 : f32
    %386 = vector.broadcast %cst_83 : f32 to vector<8x128xf32>
    %387 = arith.addf %386, %385 : vector<8x128xf32>
    %388 = arith.divf %386, %387 : vector<8x128xf32>
    %389 = vector.extract_strided_slice %382 {offsets = [0, 128], sizes = [8, 128], strides = [1, 1]} : vector<8x512xf32> to vector<8x128xf32>
    %390 = arith.negf %389 : vector<8x128xf32>
    %391 = math.exp %390 : vector<8x128xf32>
    %cst_84 = arith.constant 1.000000e+00 : f32
    %392 = vector.broadcast %cst_84 : f32 to vector<8x128xf32>
    %393 = arith.addf %392, %391 : vector<8x128xf32>
    %394 = arith.divf %392, %393 : vector<8x128xf32>
    %395 = vector.extract_strided_slice %382 {offsets = [0, 256], sizes = [8, 128], strides = [1, 1]} : vector<8x512xf32> to vector<8x128xf32>
    %396 = math.tanh %395 : vector<8x128xf32>
    %397 = vector.extract_strided_slice %382 {offsets = [0, 384], sizes = [8, 128], strides = [1, 1]} : vector<8x512xf32> to vector<8x128xf32>
    %398 = arith.negf %397 : vector<8x128xf32>
    %399 = math.exp %398 : vector<8x128xf32>
    %cst_85 = arith.constant 1.000000e+00 : f32
    %400 = vector.broadcast %cst_85 : f32 to vector<8x128xf32>
    %401 = arith.addf %400, %399 : vector<8x128xf32>
    %402 = arith.divf %400, %401 : vector<8x128xf32>
    %403 = arith.mulf %394, %344 : vector<8x128xf32>
    %404 = arith.mulf %388, %396 : vector<8x128xf32>
    %405 = arith.addf %403, %404 : vector<8x128xf32>
    %406 = math.tanh %405 : vector<8x128xf32>
    %407 = arith.mulf %402, %406 : vector<8x128xf32>
    %c7_i32 = arith.constant 7 : i32
    %c8_i32_86 = arith.constant 8 : i32
    %408 = arith.muli %c7_i32, %c8_i32_86 : i32
    %409 = tpu.assume_multiple %408, 8 : i32
    %410 = arith.index_cast %409 : i32 to index
    %c0_87 = arith.constant 0 : index
    %411 = vector.load %arg10[%410, %c0_87] : memref<64x512xf32, #tpu.memory_space<vmem>>, vector<8x512xf32>
    %cst_88 = arith.constant dense<0.000000e+00> : vector<8x512xf32>
    %412 = tpu.matmul %377, %8, %cst_88 {dimension_numbers = #tpu.dot_dimension_numbers<[1], [0], [0], [1], [0, 0, 1, 1], [], []>} : vector<8x128xf32>, vector<128x512xf32>, vector<8x512xf32> -> vector<8x512xf32>
    %413 = arith.addf %411, %412 : vector<8x512xf32>
    %414 = vector.extract_strided_slice %413 {offsets = [0, 0], sizes = [8, 128], strides = [1, 1]} : vector<8x512xf32> to vector<8x128xf32>
    %415 = arith.negf %414 : vector<8x128xf32>
    %416 = math.exp %415 : vector<8x128xf32>
    %cst_89 = arith.constant 1.000000e+00 : f32
    %417 = vector.broadcast %cst_89 : f32 to vector<8x128xf32>
    %418 = arith.addf %417, %416 : vector<8x128xf32>
    %419 = arith.divf %417, %418 : vector<8x128xf32>
    %420 = vector.extract_strided_slice %413 {offsets = [0, 128], sizes = [8, 128], strides = [1, 1]} : vector<8x512xf32> to vector<8x128xf32>
    %421 = arith.negf %420 : vector<8x128xf32>
    %422 = math.exp %421 : vector<8x128xf32>
    %cst_90 = arith.constant 1.000000e+00 : f32
    %423 = vector.broadcast %cst_90 : f32 to vector<8x128xf32>
    %424 = arith.addf %423, %422 : vector<8x128xf32>
    %425 = arith.divf %423, %424 : vector<8x128xf32>
    %426 = vector.extract_strided_slice %413 {offsets = [0, 256], sizes = [8, 128], strides = [1, 1]} : vector<8x512xf32> to vector<8x128xf32>
    %427 = math.tanh %426 : vector<8x128xf32>
    %428 = vector.extract_strided_slice %413 {offsets = [0, 384], sizes = [8, 128], strides = [1, 1]} : vector<8x512xf32> to vector<8x128xf32>
    %429 = arith.negf %428 : vector<8x128xf32>
    %430 = math.exp %429 : vector<8x128xf32>
    %cst_91 = arith.constant 1.000000e+00 : f32
    %431 = vector.broadcast %cst_91 : f32 to vector<8x128xf32>
    %432 = arith.addf %431, %430 : vector<8x128xf32>
    %433 = arith.divf %431, %432 : vector<8x128xf32>
    %434 = arith.mulf %425, %375 : vector<8x128xf32>
    %435 = arith.mulf %419, %427 : vector<8x128xf32>
    %436 = arith.addf %434, %435 : vector<8x128xf32>
    %437 = math.tanh %436 : vector<8x128xf32>
    %438 = arith.mulf %433, %437 : vector<8x128xf32>
    %cst_92 = arith.constant dense<0.000000e+00> : vector<8x512xf32>
    %439 = tpu.matmul %377, %9, %cst_92 {dimension_numbers = #tpu.dot_dimension_numbers<[1], [0], [0], [1], [0, 0, 1, 1], [], []>} : vector<8x128xf32>, vector<128x512xf32>, vector<8x512xf32> -> vector<8x512xf32>
    %440 = vector.broadcast %11 : vector<1x512xf32> to vector<8x512xf32>
    %441 = arith.addf %439, %440 : vector<8x512xf32>
    %cst_93 = arith.constant dense<0.000000e+00> : vector<8x512xf32>
    %442 = tpu.matmul %407, %10, %cst_93 {dimension_numbers = #tpu.dot_dimension_numbers<[1], [0], [0], [1], [0, 0, 1, 1], [], []>} : vector<8x128xf32>, vector<128x512xf32>, vector<8x512xf32> -> vector<8x512xf32>
    %443 = arith.addf %441, %442 : vector<8x512xf32>
    %444 = vector.extract_strided_slice %443 {offsets = [0, 0], sizes = [8, 128], strides = [1, 1]} : vector<8x512xf32> to vector<8x128xf32>
    %445 = arith.negf %444 : vector<8x128xf32>
    %446 = math.exp %445 : vector<8x128xf32>
    %cst_94 = arith.constant 1.000000e+00 : f32
    %447 = vector.broadcast %cst_94 : f32 to vector<8x128xf32>
    %448 = arith.addf %447, %446 : vector<8x128xf32>
    %449 = arith.divf %447, %448 : vector<8x128xf32>
    %450 = vector.extract_strided_slice %443 {offsets = [0, 128], sizes = [8, 128], strides = [1, 1]} : vector<8x512xf32> to vector<8x128xf32>
    %451 = arith.negf %450 : vector<8x128xf32>
    %452 = math.exp %451 : vector<8x128xf32>
    %cst_95 = arith.constant 1.000000e+00 : f32
    %453 = vector.broadcast %cst_95 : f32 to vector<8x128xf32>
    %454 = arith.addf %453, %452 : vector<8x128xf32>
    %455 = arith.divf %453, %454 : vector<8x128xf32>
    %456 = vector.extract_strided_slice %443 {offsets = [0, 256], sizes = [8, 128], strides = [1, 1]} : vector<8x512xf32> to vector<8x128xf32>
    %457 = math.tanh %456 : vector<8x128xf32>
    %458 = vector.extract_strided_slice %443 {offsets = [0, 384], sizes = [8, 128], strides = [1, 1]} : vector<8x512xf32> to vector<8x128xf32>
    %459 = arith.negf %458 : vector<8x128xf32>
    %460 = math.exp %459 : vector<8x128xf32>
    %cst_96 = arith.constant 1.000000e+00 : f32
    %461 = vector.broadcast %cst_96 : f32 to vector<8x128xf32>
    %462 = arith.addf %461, %460 : vector<8x128xf32>
    %463 = arith.divf %461, %462 : vector<8x128xf32>
    %464 = arith.mulf %455, %405 : vector<8x128xf32>
    %465 = arith.mulf %449, %457 : vector<8x128xf32>
    %466 = arith.addf %464, %465 : vector<8x128xf32>
    %467 = math.tanh %466 : vector<8x128xf32>
    %468 = arith.mulf %463, %467 : vector<8x128xf32>
    %c7_i32_97 = arith.constant 7 : i32
    %cst_98 = arith.constant dense<0.000000e+00> : vector<8x512xf32>
    %469 = tpu.matmul %438, %9, %cst_98 {dimension_numbers = #tpu.dot_dimension_numbers<[1], [0], [0], [1], [0, 0, 1, 1], [], []>} : vector<8x128xf32>, vector<128x512xf32>, vector<8x512xf32> -> vector<8x512xf32>
    %470 = vector.broadcast %11 : vector<1x512xf32> to vector<8x512xf32>
    %471 = arith.addf %469, %470 : vector<8x512xf32>
    %cst_99 = arith.constant dense<0.000000e+00> : vector<8x512xf32>
    %472 = tpu.matmul %468, %10, %cst_99 {dimension_numbers = #tpu.dot_dimension_numbers<[1], [0], [0], [1], [0, 0, 1, 1], [], []>} : vector<8x128xf32>, vector<128x512xf32>, vector<8x512xf32> -> vector<8x512xf32>
    %473 = arith.addf %471, %472 : vector<8x512xf32>
    %474 = vector.extract_strided_slice %473 {offsets = [0, 0], sizes = [8, 128], strides = [1, 1]} : vector<8x512xf32> to vector<8x128xf32>
    %475 = arith.negf %474 : vector<8x128xf32>
    %476 = math.exp %475 : vector<8x128xf32>
    %cst_100 = arith.constant 1.000000e+00 : f32
    %477 = vector.broadcast %cst_100 : f32 to vector<8x128xf32>
    %478 = arith.addf %477, %476 : vector<8x128xf32>
    %479 = arith.divf %477, %478 : vector<8x128xf32>
    %480 = vector.extract_strided_slice %473 {offsets = [0, 128], sizes = [8, 128], strides = [1, 1]} : vector<8x512xf32> to vector<8x128xf32>
    %481 = arith.negf %480 : vector<8x128xf32>
    %482 = math.exp %481 : vector<8x128xf32>
    %cst_101 = arith.constant 1.000000e+00 : f32
    %483 = vector.broadcast %cst_101 : f32 to vector<8x128xf32>
    %484 = arith.addf %483, %482 : vector<8x128xf32>
    %485 = arith.divf %483, %484 : vector<8x128xf32>
    %486 = vector.extract_strided_slice %473 {offsets = [0, 256], sizes = [8, 128], strides = [1, 1]} : vector<8x512xf32> to vector<8x128xf32>
    %487 = math.tanh %486 : vector<8x128xf32>
    %488 = vector.extract_strided_slice %473 {offsets = [0, 384], sizes = [8, 128], strides = [1, 1]} : vector<8x512xf32> to vector<8x128xf32>
    %489 = arith.negf %488 : vector<8x128xf32>
    %490 = math.exp %489 : vector<8x128xf32>
    %cst_102 = arith.constant 1.000000e+00 : f32
    %491 = vector.broadcast %cst_102 : f32 to vector<8x128xf32>
    %492 = arith.addf %491, %490 : vector<8x128xf32>
    %493 = arith.divf %491, %492 : vector<8x128xf32>
    %494 = arith.mulf %485, %466 : vector<8x128xf32>
    %495 = arith.mulf %479, %487 : vector<8x128xf32>
    %496 = arith.addf %494, %495 : vector<8x128xf32>
    %497 = math.tanh %496 : vector<8x128xf32>
    %498 = arith.mulf %493, %497 : vector<8x128xf32>
    %c0_103 = arith.constant 0 : index
    %c0_104 = arith.constant 0 : index
    %499 = vector.load %arg7[%c0_103, %c0_104] : memref<128x8xf32, #tpu.memory_space<vmem>>, vector<128x8xf32>
    %cst_105 = arith.constant dense<0.000000e+00> : vector<8x8xf32>
    %500 = tpu.matmul %498, %499, %cst_105 {dimension_numbers = #tpu.dot_dimension_numbers<[1], [0], [0], [1], [0, 0, 1, 1], [], []>} : vector<8x128xf32>, vector<128x8xf32>, vector<8x8xf32> -> vector<8x8xf32>
    %c0_106 = arith.constant 0 : index
    %c0_107 = arith.constant 0 : index
    %501 = vector.load %arg8[%c0_106, %c0_107] : memref<1x8xf32, #tpu.memory_space<vmem>>, vector<1x8xf32>
    %502 = vector.broadcast %501 : vector<1x8xf32> to vector<8x8xf32>
    %503 = arith.addf %500, %502 : vector<8x8xf32>
    %cst_108 = arith.constant dense<0xFF800000> : vector<8xf32>
    %504 = vector.multi_reduction <maximumf>, %503, %cst_108 [1] : vector<8x8xf32> to vector<8xf32>
    %505 = vector.shape_cast %504 : vector<8xf32> to vector<8x1xf32>
    %506 = vector.broadcast %505 : vector<8x1xf32> to vector<8x8xf32>
    %507 = arith.subf %503, %506 : vector<8x8xf32>
    %508 = math.exp %507 : vector<8x8xf32>
    %cst_109 = arith.constant dense<0.000000e+00> : vector<8xf32>
    %509 = vector.multi_reduction <add>, %508, %cst_109 [1] : vector<8x8xf32> to vector<8xf32>
    %510 = vector.shape_cast %509 : vector<8xf32> to vector<8x1xf32>
    %511 = math.log %510 : vector<8x1xf32>
    %512 = vector.broadcast %511 : vector<8x1xf32> to vector<8x8xf32>
    %513 = arith.subf %507, %512 : vector<8x8xf32>
    %c0_110 = arith.constant 0 : index
    %c0_111 = arith.constant 0 : index
    %514 = vector.load %arg9[%c0_110, %c0_111] : memref<8x8xf32, #tpu.memory_space<vmem>>, vector<8x8xf32>
    tpu.vector_store %arg9[%c0_110, %c0_111], %513 {strides = array<i32>} : memref<8x8xf32, #tpu.memory_space<vmem>>, vector<8x8xf32>,
    return
  }
}

</mosaic_0001>

<llo_original>
// kernel: tpu_custom_call.1
$region0: #{tpu_custom_call.1}
  #allocation0 [shape = 'u32[]', space=smem, size = 0x4, offset = 0x4, fixed_abs, tag = 'smem constant byte address 0x4 - core index']
  #allocation1 [shape = 'u32[144,128]{1,0:T(1,128)}', space=vmem, size = 0x12000, scoped, tag = 'internal scratch']
  #allocation2 [shape = 'f32[64,512]{1,0:T(8,128)}', space=vmem, size = 0x20000, scoped, tag = 'scratch operand']
  %s0 = inlined_call_operand.vmem [shape: f32[64,16], index: 0, kind: input, shape index: {}]
  %s1 = inlined_call_operand.vmem [shape: f32[16,512], index: 1, kind: input, shape index: {}]
  %s2 = inlined_call_operand.hbm [shape: f32[128,512], index: 2, kind: input, shape index: {}]
  %s3 = inlined_call_operand.vmem [shape: f32[1,512], index: 3, kind: input, shape index: {}]
  %s4 = inlined_call_operand.hbm [shape: f32[128,512], index: 4, kind: input, shape index: {}]
  %s5 = inlined_call_operand.hbm [shape: f32[128,512], index: 5, kind: input, shape index: {}]
  %s6 = inlined_call_operand.vmem [shape: f32[1,512], index: 6, kind: input, shape index: {}]
  %s7 = inlined_call_operand.vmem [shape: f32[128,8], index: 7, kind: input, shape index: {}]
  %s8 = inlined_call_operand.vmem [shape: f32[1,8], index: 8, kind: input, shape index: {}]
  %s9 = inlined_call_operand.hbm [shape: f32[8,8], index: 9, kind: output, shape index: {}]
  %s10 = sld [smem:[#allocation0]]
  $region58: #{tpu_custom_call.1} parent=0
    _
  %s12 = ssub.s32 1, %s10
  %s13 = scalar_select 0, %s12, %s10
  $region1: #{tpu_custom_call.1} parent=0
    #allocation3 [shape = 'u8[262144]{0}', space=vmem, size = 0x40000, scoped, tag = 'input window, operand 2, single buffered']
    #allocation4 [shape = 's32[1]{0}', space=sflag, size = 0x4, scoped, tag = 'scoped memory for tpu_custom_call.1']
    #allocation5 [shape = 's32[1]{0}', space=sflag, size = 0x4, scoped, tag = 'scoped memory for tpu_custom_call.1']
    #allocation6 [shape = 'u8[262144]{0}', space=vmem, size = 0x40000, scoped, tag = 'input window, operand 4, single buffered']
    #allocation7 [shape = 's32[1]{0}', space=sflag, size = 0x4, scoped, tag = 'scoped memory for tpu_custom_call.1']
    #allocation8 [shape = 'u8[262144]{0}', space=vmem, size = 0x40000, scoped, tag = 'input window, operand 5, single buffered']
    #allocation9 [shape = 'u8[4096]{0}', space=vmem, size = 0x1000, scoped, tag = 'output window, operand 0, single buffered']
    %14 = vsyncpa [#allocation4], 0
    %15 = vsyncpa [#allocation7], 0
    %16 = vsyncpa [#allocation5], 0
    // Predicated region
    $region2: #{tpu_custom_call.1} parent=1 // pred_check
      _
    $region3: #{tpu_custom_call.1} parent=1 // pred_check_branch
      %18 = sbr.rel (0) target = $region5
    $region4: #{tpu_custom_call.1} parent=1 // pred_region
      _
    $region5: #{tpu_custom_call.1} parent=1 // pred_fallthru
      _
    // Predicated region
    $region6: #{tpu_custom_call.1} parent=1 // pred_check
      _
    $region7: #{tpu_custom_call.1} parent=1 // pred_check_branch
      %20 = sbr.rel (0) target = $region9
    $region8: #{tpu_custom_call.1} parent=1 // pred_region
      _
    $region9: #{tpu_custom_call.1} parent=1 // pred_fallthru
      _
    // Predicated region
    $region10: #{tpu_custom_call.1} parent=1 // pred_check
      _
    $region11: #{tpu_custom_call.1} parent=1 // pred_check_branch
      %22 = sbr.rel (0) target = $region13
    $region12: #{tpu_custom_call.1} parent=1 // pred_region
      %s24 = ssub.s32 8192, 8192
      %25 = vsyncadd [#allocation4], %s24
      %s26 = sshll.u32 [#allocation3], 4
      %s27 = int_to_ptr.vmem [resolvable:$true] %s26
      %32 = dma.hbm_to_vmem [thread:$0]  %s2, 8192, %s27, [#allocation4], 512, 512, 32
    $region13: #{tpu_custom_call.1} parent=1 // pred_fallthru
      _
    // Predicated region
    $region14: #{tpu_custom_call.1} parent=1 // pred_check
      _
    $region15: #{tpu_custom_call.1} parent=1 // pred_check_branch
      %34 = sbr.rel (0) target = $region17
    $region16: #{tpu_custom_call.1} parent=1 // pred_region
      _
    $region17: #{tpu_custom_call.1} parent=1 // pred_fallthru
      _
    // Predicated region
    $region18: #{tpu_custom_call.1} parent=1 // pred_check
      _
    $region19: #{tpu_custom_call.1} parent=1 // pred_check_branch
      %36 = sbr.rel (0) target = $region21
    $region20: #{tpu_custom_call.1} parent=1 // pred_region
      %s38 = ssub.s32 8192, 8192
      %39 = vsyncadd [#allocation7], %s38
      %s40 = sshll.u32 [#allocation6], 4
      %s41 = int_to_ptr.vmem [resolvable:$true] %s40
      %46 = dma.hbm_to_vmem [thread:$0]  %s4, 8192, %s41, [#allocation7], 512, 512, 32
    $region21: #{tpu_custom_call.1} parent=1 // pred_fallthru
      _
    // Predicated region
    $region22: #{tpu_custom_call.1} parent=1 // pred_check
      _
    $region23: #{tpu_custom_call.1} parent=1 // pred_check_branch
      %48 = sbr.rel (0) target = $region25
    $region24: #{tpu_custom_call.1} parent=1 // pred_region
      %s50 = ssub.s32 8192, 8192
      %51 = vsyncadd [#allocation7], %s50
      %s52 = sshll.u32 [#allocation8], 4
      %s53 = int_to_ptr.vmem [resolvable:$true] %s52
      %58 = dma.hbm_to_vmem [thread:$0]  %s5, 8192, %s53, [#allocation7], 512, 512, 32
    $region25: #{tpu_custom_call.1} parent=1 // pred_fallthru
      _
    // Predicated region
    $region26: #{tpu_custom_call.1} parent=1 // pred_check
      _
    $region27: #{tpu_custom_call.1} parent=1 // pred_check_branch
      %60 = sbr.rel (0) target = $region29
    $region28: #{tpu_custom_call.1} parent=1 // pred_region
      _
    $region29: #{tpu_custom_call.1} parent=1 // pred_fallthru
      _
    // Predicated region
    $region30: #{tpu_custom_call.1} parent=1 // pred_check
      _
    $region31: #{tpu_custom_call.1} parent=1 // pred_check_branch
      %62 = sbr.rel (0) target = $region33
    $region32: #{tpu_custom_call.1} parent=1 // pred_region
      _
    $region33: #{tpu_custom_call.1} parent=1 // pred_fallthru
      _
    // Predicated region
    $region34: #{tpu_custom_call.1} parent=1 // pred_check
      _
    $region35: #{tpu_custom_call.1} parent=1 // pred_check_branch
      %64 = sbr.rel (0) target = $region37
    $region36: #{tpu_custom_call.1} parent=1 // pred_region
      _
    $region37: #{tpu_custom_call.1} parent=1 // pred_fallthru
      _
    // Predicated region
    $region38: #{tpu_custom_call.1} parent=1 // pred_check
      _
    $region39: #{tpu_custom_call.1} parent=1 // pred_check_branch
      %66 = sbr.rel (0) target = $region41
    $region40: #{tpu_custom_call.1} parent=1 // pred_region
      %67 = dma.done [#allocation4], 8192
    $region41: #{tpu_custom_call.1} parent=1 // pred_fallthru
      _
    // Predicated region
    $region42: #{tpu_custom_call.1} parent=1 // pred_check
      _
    $region43: #{tpu_custom_call.1} parent=1 // pred_check_branch
      %69 = sbr.rel (0) target = $region45
    $region44: #{tpu_custom_call.1} parent=1 // pred_region
      %70 = dma.done [#allocation7], 8192
    $region45: #{tpu_custom_call.1} parent=1 // pred_fallthru
      _
    // Predicated region
    $region46: #{tpu_custom_call.1} parent=1 // pred_check
      _
    $region47: #{tpu_custom_call.1} parent=1 // pred_check_branch
      %72 = sbr.rel (0) target = $region49
    $region48: #{tpu_custom_call.1} parent=1 // pred_region
      %73 = dma.done [#allocation7], 8192
    $region49: #{tpu_custom_call.1} parent=1 // pred_fallthru
      _
    %v74 = vld [vmem:[%s0] sm:$0xff]
    %v75 = vld [vmem:[%s0 + $0x8] sm:$0xff]
    %v76 = vld [vmem:[%s0 + $0x10] sm:$0xff]
    %v77 = vld [vmem:[%s0 + $0x18] sm:$0xff]
    %v78 = vld [vmem:[%s0 + $0x20] sm:$0xff]
    %v79 = vld [vmem:[%s0 + $0x28] sm:$0xff]
    %v80 = vld [vmem:[%s0 + $0x30] sm:$0xff]
    %v81 = vld [vmem:[%s0 + $0x38] sm:$0xff]
    %v82 = vld [vmem:[%s1] sm:$0xff]
    %v83 = vld [vmem:[%s1 + $0x8] sm:$0xff]
    %v84 = vld [vmem:[%s1 + $0x10] sm:$0xff]
    %v85 = vld [vmem:[%s1 + $0x18] sm:$0xff]
    %v86 = vld [vmem:[%s1 + $0x20] sm:$0xff]
    %v87 = vld [vmem:[%s1 + $0x28] sm:$0xff]
    %v88 = vld [vmem:[%s1 + $0x30] sm:$0xff]
    %v89 = vld [vmem:[%s1 + $0x38] sm:$0xff]
    %v90 = vld [vmem:[%s3] sm:$0xf]
    %v92 = vlaneseq
    %v93 = vshrl.u32 %v92, 7
    %v94 = vsub.s32 0, %v93
    %v95 = vrot.slane %v90, %v94
    %v96 = vlaneseq
    %v97 = vshrl.u32 %v96, 7
    %v98 = vsub.s32 1, %v97
    %v99 = vrot.slane %v90, %v98
    %v100 = vlaneseq
    %v101 = vshrl.u32 %v100, 7
    %v102 = vsub.s32 2, %v101
    %v103 = vrot.slane %v90, %v102
    %v104 = vlaneseq
    %v105 = vshrl.u32 %v104, 7
    %v106 = vsub.s32 3, %v105
    %v107 = vrot.slane %v90, %v106
    %vm112 = vcmask 130048
    %v114 = vsel %vm112, %v74, 0
    %v117 = vsel %vm112, %v75, 0
    %v120 = vsel %vm112, %v76, 0
    %v123 = vsel %vm112, %v77, 0
    %v126 = vsel %vm112, %v78, 0
    %v129 = vsel %vm112, %v79, 0
    %v132 = vsel %vm112, %v80, 0
    %v135 = vsel %vm112, %v81, 0
    %137 = vmatprep.subr.mxu0 %v83
    %138 = vmatpush1.msra.mxu0 %v82
    %139 = vmatprep.subr.mxu0 %v87
    %140 = vmatpush1.msra.mxu0 %v86
    %141 = vmatprep.subr.mxu0 0.0
    %142 = vmatpush1.msra.mxu0 0.0
    %143 = vmatprep.subr.mxu0 0.0
    %144 = vmatpush1.msra.mxu0 0.0
    %145 = vmatprep.subr.mxu0 0.0
    %146 = vmatpush1.msra.mxu0 0.0
    %147 = vmatprep.subr.mxu0 0.0
    %148 = vmatpush1.msra.mxu0 0.0
    %149 = vmatprep.subr.mxu0 0.0
    %150 = vmatpush1.msra.mxu0 0.0
    %151 = vmatprep.subr.mxu0 0.0
    %152 = vmatpush1.msra.mxu0 0.0
    %153 = vmatprep.subr.mxu0 0.0
    %154 = vmatpush1.msra.mxu0 0.0
    %155 = vmatprep.subr.mxu0 0.0
    %156 = vmatpush1.msra.mxu0 0.0
    %157 = vmatprep.subr.mxu0 0.0
    %158 = vmatpush1.msra.mxu0 0.0
    %159 = vmatprep.subr.mxu0 0.0
    %160 = vmatpush1.msra.mxu0 0.0
    %161 = vmatprep.subr.mxu0 0.0
    %162 = vmatpush1.msra.mxu0 0.0
    %163 = vmatprep.subr.mxu0 0.0
    %164 = vmatpush1.msra.mxu0 0.0
    %165 = vmatprep.subr.mxu0 0.0
    %166 = vmatpush1.msra.mxu0 0.0
    %167 = vmatprep.subr.mxu0 0.0
    %168 = vmatpush1.msra.mxu0 0.0
    %169 = vmatprep.subr.mxu0 0.0
    %170 = vmatpush1.msra.mxu0 0.0
    %171 = vmatprep.subr.mxu0 0.0
    %172 = vmatpush1.msra.mxu0 0.0
    %173 = vmatprep.subr.mxu0 0.0
    %174 = vmatpush1.msra.mxu0 0.0
    %175 = vmatprep.subr.mxu0 0.0
    %176 = vmatpush1.msra.mxu0 0.0
    %177 = vmatprep.subr.mxu0 0.0
    %178 = vmatpush1.msra.mxu0 0.0
    %179 = vmatprep.subr.mxu0 0.0
    %180 = vmatpush1.msra.mxu0 0.0
    %181 = vmatprep.subr.mxu0 0.0
    %182 = vmatpush1.msra.mxu0 0.0
    %183 = vmatprep.subr.mxu0 0.0
    %184 = vmatpush1.msra.mxu0 0.0
    %185 = vmatprep.subr.mxu0 0.0
    %186 = vmatpush1.msra.mxu0 0.0
    %187 = vmatprep.subr.mxu0 0.0
    %188 = vmatpush1.msra.mxu0 0.0
    %189 = vmatprep.subr.mxu0 0.0
    %190 = vmatpush1.msra.mxu0 0.0
    %191 = vmatprep.subr.mxu0 0.0
    %192 = vmatpush1.msra.mxu0 0.0
    %193 = vmatprep.subr.mxu0 0.0
    %194 = vmatpush1.msra.mxu0 0.0
    %195 = vmatprep.subr.mxu0 0.0
    %196 = vmatpush1.msra.mxu0 0.0
    %197 = vmatprep.subr.mxu0 0.0
    %198 = vmatpush1.msra.mxu0 0.0
    %199 = vmatprep.subr.mxu0 0.0
    %200 = vmatpush1.msra.mxu0 0.0
    %201 = vmatprep.mubr.f32.mxu0 0.0
    %202 = vmatmul.mubr.f32.gmra.mrb[0].mxu0 %v114
    %v203 = vpop.f32.mrb[0].mxu0
    %v204 = vadd.f32 %v95, %v203
    %v205 = vpop.f32.mrb[0].mxu0
    %v206 = vadd.f32 %v99, %v205
    %207 = vmatprep.mubr.f32.mxu0 0.0
    %208 = vmatmul.mubr.f32.gmra.mrb[0].mxu0 %v117
    %v209 = vpop.f32.mrb[0].mxu0
    %v210 = vadd.f32 %v95, %v209
    %v211 = vpop.f32.mrb[0].mxu0
    %v212 = vadd.f32 %v99, %v211
    %213 = vmatprep.mubr.f32.mxu0 0.0
    %214 = vmatmul.mubr.f32.gmra.mrb[0].mxu0 %v120
    %v215 = vpop.f32.mrb[0].mxu0
    %v216 = vadd.f32 %v95, %v215
    %v217 = vpop.f32.mrb[0].mxu0
    %v218 = vadd.f32 %v99, %v217
    %219 = vmatprep.mubr.f32.mxu0 0.0
    %220 = vmatmul.mubr.f32.gmra.mrb[0].mxu0 %v123
    %v221 = vpop.f32.mrb[0].mxu0
    %v222 = vadd.f32 %v95, %v221
    %v223 = vpop.f32.mrb[0].mxu0
    %v224 = vadd.f32 %v99, %v223
    %225 = vmatprep.mubr.f32.mxu0 0.0
    %226 = vmatmul.mubr.f32.gmra.mrb[0].mxu0 %v126
    %v227 = vpop.f32.mrb[0].mxu0
    %v228 = vadd.f32 %v95, %v227
    %v229 = vpop.f32.mrb[0].mxu0
    %v230 = vadd.f32 %v99, %v229
    %231 = vmatprep.mubr.f32.mxu0 0.0
    %232 = vmatmul.mubr.f32.gmra.mrb[0].mxu0 %v129
    %v233 = vpop.f32.mrb[0].mxu0
    %v234 = vadd.f32 %v95, %v233
    %v235 = vpop.f32.mrb[0].mxu0
    %v236 = vadd.f32 %v99, %v235
    %237 = vmatprep.mubr.f32.mxu0 0.0
    %238 = vmatmul.mubr.f32.gmra.mrb[0].mxu0 %v132
    %v239 = vpop.f32.mrb[0].mxu0
    %v240 = vadd.f32 %v95, %v239
    %v241 = vpop.f32.mrb[0].mxu0
    %v242 = vadd.f32 %v99, %v241
    %243 = vmatprep.mubr.f32.mxu0 0.0
    %244 = vmatmul.mubr.f32.gmra.mrb[0].mxu0 %v135
    %v245 = vpop.f32.mrb[0].mxu0
    %v246 = vadd.f32 %v95, %v245
    %v247 = vpop.f32.mrb[0].mxu0
    %v248 = vadd.f32 %v99, %v247
    %249 = vdwg.mxu0
    %250 = vmatprep.subr.mxu0 %v85
    %251 = vmatpush1.msra.mxu0 %v84
    %252 = vmatprep.subr.mxu0 %v89
    %253 = vmatpush1.msra.mxu0 %v88
    %254 = vmatprep.subr.mxu0 0.0
    %255 = vmatpush1.msra.mxu0 0.0
    %256 = vmatprep.subr.mxu0 0.0
    %257 = vmatpush1.msra.mxu0 0.0
    %258 = vmatprep.subr.mxu0 0.0
    %259 = vmatpush1.msra.mxu0 0.0
    %260 = vmatprep.subr.mxu0 0.0
    %261 = vmatpush1.msra.mxu0 0.0
    %262 = vmatprep.subr.mxu0 0.0
    %263 = vmatpush1.msra.mxu0 0.0
    %264 = vmatprep.subr.mxu0 0.0
    %265 = vmatpush1.msra.mxu0 0.0
    %266 = vmatprep.subr.mxu0 0.0
    %267 = vmatpush1.msra.mxu0 0.0
    %268 = vmatprep.subr.mxu0 0.0
    %269 = vmatpush1.msra.mxu0 0.0
    %270 = vmatprep.subr.mxu0 0.0
    %271 = vmatpush1.msra.mxu0 0.0
    %272 = vmatprep.subr.mxu0 0.0
    %273 = vmatpush1.msra.mxu0 0.0
    %274 = vmatprep.subr.mxu0 0.0
    %275 = vmatpush1.msra.mxu0 0.0
    %276 = vmatprep.subr.mxu0 0.0
    %277 = vmatpush1.msra.mxu0 0.0
    %278 = vmatprep.subr.mxu0 0.0
    %279 = vmatpush1.msra.mxu0 0.0
    %280 = vmatprep.subr.mxu0 0.0
    %281 = vmatpush1.msra.mxu0 0.0
    %282 = vmatprep.subr.mxu0 0.0
    %283 = vmatpush1.msra.mxu0 0.0
    %284 = vmatprep.subr.mxu0 0.0
    %285 = vmatpush1.msra.mxu0 0.0
    %286 = vmatprep.subr.mxu0 0.0
    %287 = vmatpush1.msra.mxu0 0.0
    %288 = vmatprep.subr.mxu0 0.0
    %289 = vmatpush1.msra.mxu0 0.0
    %290 = vmatprep.subr.mxu0 0.0
    %291 = vmatpush1.msra.mxu0 0.0
    %292 = vmatprep.subr.mxu0 0.0
    %293 = vmatpush1.msra.mxu0 0.0
    %294 = vmatprep.subr.mxu0 0.0
    %295 = vmatpush1.msra.mxu0 0.0
    %296 = vmatprep.subr.mxu0 0.0
    %297 = vmatpush1.msra.mxu0 0.0
    %298 = vmatprep.subr.mxu0 0.0
    %299 = vmatpush1.msra.mxu0 0.0
    %300 = vmatprep.subr.mxu0 0.0
    %301 = vmatpush1.msra.mxu0 0.0
    %302 = vmatprep.subr.mxu0 0.0
    %303 = vmatpush1.msra.mxu0 0.0
    %304 = vmatprep.subr.mxu0 0.0
    %305 = vmatpush1.msra.mxu0 0.0
    %306 = vmatprep.subr.mxu0 0.0
    %307 = vmatpush1.msra.mxu0 0.0
    %308 = vmatprep.subr.mxu0 0.0
    %309 = vmatpush1.msra.mxu0 0.0
    %310 = vmatprep.subr.mxu0 0.0
    %311 = vmatpush1.msra.mxu0 0.0
    %312 = vmatprep.subr.mxu0 0.0
    %313 = vmatpush1.msra.mxu0 0.0
    %314 = vmatprep.mubr.f32.mxu0 0.0
    %315 = vmatmul.mubr.f32.gmra.mrb[0].mxu0 %v114
    %v316 = vpop.f32.mrb[0].mxu0
    %v317 = vadd.f32 %v103, %v316
    %v318 = vpop.f32.mrb[0].mxu0
    %v319 = vadd.f32 %v107, %v318
    %320 = vmatprep.mubr.f32.mxu0 0.0
    %321 = vmatmul.mubr.f32.gmra.mrb[0].mxu0 %v117
    %v322 = vpop.f32.mrb[0].mxu0
    %v323 = vadd.f32 %v103, %v322
    %v324 = vpop.f32.mrb[0].mxu0
    %v325 = vadd.f32 %v107, %v324
    %326 = vmatprep.mubr.f32.mxu0 0.0
    %327 = vmatmul.mubr.f32.gmra.mrb[0].mxu0 %v120
    %v328 = vpop.f32.mrb[0].mxu0
    %v329 = vadd.f32 %v103, %v328
    %v330 = vpop.f32.mrb[0].mxu0
    %v331 = vadd.f32 %v107, %v330
    %332 = vmatprep.mubr.f32.mxu0 0.0
    %333 = vmatmul.mubr.f32.gmra.mrb[0].mxu0 %v123
    %v334 = vpop.f32.mrb[0].mxu0
    %v335 = vadd.f32 %v103, %v334
    %v336 = vpop.f32.mrb[0].mxu0
    %v337 = vadd.f32 %v107, %v336
    %338 = vmatprep.mubr.f32.mxu0 0.0
    %339 = vmatmul.mubr.f32.gmra.mrb[0].mxu0 %v126
    %v340 = vpop.f32.mrb[0].mxu0
    %v341 = vadd.f32 %v103, %v340
    %v342 = vpop.f32.mrb[0].mxu0
    %v343 = vadd.f32 %v107, %v342
    %344 = vmatprep.mubr.f32.mxu0 0.0
    %345 = vmatmul.mubr.f32.gmra.mrb[0].mxu0 %v129
    %v346 = vpop.f32.mrb[0].mxu0
    %v347 = vadd.f32 %v103, %v346
    %v348 = vpop.f32.mrb[0].mxu0
    %v349 = vadd.f32 %v107, %v348
    %350 = vmatprep.mubr.f32.mxu0 0.0
    %351 = vmatmul.mubr.f32.gmra.mrb[0].mxu0 %v132
    %v352 = vpop.f32.mrb[0].mxu0
    %v353 = vadd.f32 %v103, %v352
    %v354 = vpop.f32.mrb[0].mxu0
    %v355 = vadd.f32 %v107, %v354
    %356 = vmatprep.mubr.f32.mxu0 0.0
    %357 = vmatmul.mubr.f32.gmra.mrb[0].mxu0 %v135
    %v358 = vpop.f32.mrb[0].mxu0
    %v359 = vadd.f32 %v103, %v358
    %v360 = vpop.f32.mrb[0].mxu0
    %v361 = vadd.f32 %v107, %v360
    %362 = vdwg.mxu0
    %363 = vst [vmem:[#allocation2] sm:$0xff] %v204
    %364 = vst [vmem:[#allocation2 + $0x8] sm:$0xff] %v206
    %365 = vst [vmem:[#allocation2 + $0x10] sm:$0xff] %v317
    %366 = vst [vmem:[#allocation2 + $0x18] sm:$0xff] %v319
    %367 = vst [vmem:[#allocation2 + $0x20] sm:$0xff] %v210
    %368 = vst [vmem:[#allocation2 + $0x28] sm:$0xff] %v212
    %369 = vst [vmem:[#allocation2 + $0x30] sm:$0xff] %v323
    %370 = vst [vmem:[#allocation2 + $0x38] sm:$0xff] %v325
    %371 = vst [vmem:[#allocation2 + $0x40] sm:$0xff] %v216
    %372 = vst [vmem:[#allocation2 + $0x48] sm:$0xff] %v218
    %373 = vst [vmem:[#allocation2 + $0x50] sm:$0xff] %v329
    %374 = vst [vmem:[#allocation2 + $0x58] sm:$0xff] %v331
    %375 = vst [vmem:[#allocation2 + $0x60] sm:$0xff] %v222
    %376 = vst [vmem:[#allocation2 + $0x68] sm:$0xff] %v224
    %377 = vst [vmem:[#allocation2 + $0x70] sm:$0xff] %v335
    %378 = vst [vmem:[#allocation2 + $0x78] sm:$0xff] %v337
    %379 = vst [vmem:[#allocation2 + $0x80] sm:$0xff] %v228
    %380 = vst [vmem:[#allocation2 + $0x88] sm:$0xff] %v230
    %381 = vst [vmem:[#allocation2 + $0x90] sm:$0xff] %v341
    %382 = vst [vmem:[#allocation2 + $0x98] sm:$0xff] %v343
    %383 = vst [vmem:[#allocation2 + $0xa0] sm:$0xff] %v234
    %384 = vst [vmem:[#allocation2 + $0xa8] sm:$0xff] %v236
    %385 = vst [vmem:[#allocation2 + $0xb0] sm:$0xff] %v347
    %386 = vst [vmem:[#allocation2 + $0xb8] sm:$0xff] %v349
    %387 = vst [vmem:[#allocation2 + $0xc0] sm:$0xff] %v240
    %388 = vst [vmem:[#allocation2 + $0xc8] sm:$0xff] %v242
    %389 = vst [vmem:[#allocation2 + $0xd0] sm:$0xff] %v353
    %390 = vst [vmem:[#allocation2 + $0xd8] sm:$0xff] %v355
    %391 = vst [vmem:[#allocation2 + $0xe0] sm:$0xff] %v246
    %392 = vst [vmem:[#allocation2 + $0xe8] sm:$0xff] %v248
    %393 = vst [vmem:[#allocation2 + $0xf0] sm:$0xff] %v359
    %394 = vst [vmem:[#allocation2 + $0xf8] sm:$0xff] %v361
    %v395 = vld [vmem:[#allocation3] sm:$0xff]
    %v396 = vld [vmem:[#allocation3 + $0x8] sm:$0xff]
    %v397 = vld [vmem:[#allocation3 + $0x10] sm:$0xff]
    %v398 = vld [vmem:[#allocation3 + $0x18] sm:$0xff]
    %v399 = vld [vmem:[#allocation3 + $0x20] sm:$0xff]
    %v400 = vld [vmem:[#allocation3 + $0x28] sm:$0xff]
    %v401 = vld [vmem:[#allocation3 + $0x30] sm:$0xff]
    %v402 = vld [vmem:[#allocation3 + $0x38] sm:$0xff]
    %v403 = vld [vmem:[#allocation3 + $0x40] sm:$0xff]
    %v404 = vld [vmem:[#allocation3 + $0x48] sm:$0xff]
    %v405 = vld [vmem:[#allocation3 + $0x50] sm:$0xff]
    %v406 = vld [vmem:[#allocation3 + $0x58] sm:$0xff]
    %v407 = vld [vmem:[#allocation3 + $0x60] sm:$0xff]
    %v408 = vld [vmem:[#allocation3 + $0x68] sm:$0xff]
    %v409 = vld [vmem:[#allocation3 + $0x70] sm:$0xff]
    %v410 = vld [vmem:[#allocation3 + $0x78] sm:$0xff]
    %v411 = vld [vmem:[#allocation3 + $0x80] sm:$0xff]
    %v412 = vld [vmem:[#allocation3 + $0x88] sm:$0xff]
    %v413 = vld [vmem:[#allocation3 + $0x90] sm:$0xff]
    %v414 = vld [vmem:[#allocation3 + $0x98] sm:$0xff]
    %v415 = vld [vmem:[#allocation3 + $0xa0] sm:$0xff]
    %v416 = vld [vmem:[#allocation3 + $0xa8] sm:$0xff]
    %v417 = vld [vmem:[#allocation3 + $0xb0] sm:$0xff]
    %v418 = vld [vmem:[#allocation3 + $0xb8] sm:$0xff]
    %v419 = vld [vmem:[#allocation3 + $0xc0] sm:$0xff]
    %v420 = vld [vmem:[#allocation3 + $0xc8] sm:$0xff]
    %v421 = vld [vmem:[#allocation3 + $0xd0] sm:$0xff]
    %v422 = vld [vmem:[#allocation3 + $0xd8] sm:$0xff]
    %v423 = vld [vmem:[#allocation3 + $0xe0] sm:$0xff]
    %v424 = vld [vmem:[#allocation3 + $0xe8] sm:$0xff]
    %v425 = vld [vmem:[#allocation3 + $0xf0] sm:$0xff]
    %v426 = vld [vmem:[#allocation3 + $0xf8] sm:$0xff]
    %v427 = vld [vmem:[#allocation3 + $0x100] sm:$0xff]
    %v428 = vld [vmem:[#allocation3 + $0x108] sm:$0xff]
    %v429 = vld [vmem:[#allocation3 + $0x110] sm:$0xff]
    %v430 = vld [vmem:[#allocation3 + $0x118] sm:$0xff]
    %v431 = vld [vmem:[#allocation3 + $0x120] sm:$0xff]
    %v432 = vld [vmem:[#allocation3 + $0x128] sm:$0xff]
    %v433 = vld [vmem:[#allocation3 + $0x130] sm:$0xff]
    %v434 = vld [vmem:[#allocation3 + $0x138] sm:$0xff]
    %v435 = vld [vmem:[#allocation3 + $0x140] sm:$0xff]
    %v436 = vld [vmem:[#allocation3 + $0x148] sm:$0xff]
    %v437 = vld [vmem:[#allocation3 + $0x150] sm:$0xff]
    %v438 = vld [vmem:[#allocation3 + $0x158] sm:$0xff]
    %v439 = vld [vmem:[#allocation3 + $0x160] sm:$0xff]
    %v440 = vld [vmem:[#allocation3 + $0x168] sm:$0xff]
    %v441 = vld [vmem:[#allocation3 + $0x170] sm:$0xff]
    %v442 = vld [vmem:[#allocation3 + $0x178] sm:$0xff]
    %v443 = vld [vmem:[#allocation3 + $0x180] sm:$0xff]
    %v444 = vld [vmem:[#allocation3 + $0x188] sm:$0xff]
    %v445 = vld [vmem:[#allocation3 + $0x190] sm:$0xff]
    %v446 = vld [vmem:[#allocation3 + $0x198] sm:$0xff]
    %v447 = vld [vmem:[#allocation3 + $0x1a0] sm:$0xff]
    %v448 = vld [vmem:[#allocation3 + $0x1a8] sm:$0xff]
    %v449 = vld [vmem:[#allocation3 + $0x1b0] sm:$0xff]
    %v450 = vld [vmem:[#allocation3 + $0x1b8] sm:$0xff]
    %v451 = vld [vmem:[#allocation3 + $0x1c0] sm:$0xff]
    %v452 = vld [vmem:[#allocation3 + $0x1c8] sm:$0xff]
    %v453 = vld [vmem:[#allocation3 + $0x1d0] sm:$0xff]
    %v454 = vld [vmem:[#allocation3 + $0x1d8] sm:$0xff]
    %v455 = vld [vmem:[#allocation3 + $0x1e0] sm:$0xff]
    %v456 = vld [vmem:[#allocation3 + $0x1e8] sm:$0xff]
    %v457 = vld [vmem:[#allocation3 + $0x1f0] sm:$0xff]
    %v458 = vld [vmem:[#allocation3 + $0x1f8] sm:$0xff]
    %v459 = vld [vmem:[#allocation6] sm:$0xff]
    %v460 = vld [vmem:[#allocation6 + $0x8] sm:$0xff]
    %v461 = vld [vmem:[#allocation6 + $0x10] sm:$0xff]
    %v462 = vld [vmem:[#allocation6 + $0x18] sm:$0xff]
    %v463 = vld [vmem:[#allocation6 + $0x20] sm:$0xff]
    %v464 = vld [vmem:[#allocation6 + $0x28] sm:$0xff]
    %v465 = vld [vmem:[#allocation6 + $0x30] sm:$0xff]
    %v466 = vld [vmem:[#allocation6 + $0x38] sm:$0xff]
    %v467 = vld [vmem:[#allocation6 + $0x40] sm:$0xff]
    %v468 = vld [vmem:[#allocation6 + $0x48] sm:$0xff]
    %v469 = vld [vmem:[#allocation6 + $0x50] sm:$0xff]
    %v470 = vld [vmem:[#allocation6 + $0x58] sm:$0xff]
    %v471 = vld [vmem:[#allocation6 + $0x60] sm:$0xff]
    %v472 = vld [vmem:[#allocation6 + $0x68] sm:$0xff]
    %v473 = vld [vmem:[#allocation6 + $0x70] sm:$0xff]
    %v474 = vld [vmem:[#allocation6 + $0x78] sm:$0xff]
    %v475 = vld [vmem:[#allocation6 + $0x80] sm:$0xff]
    %v476 = vld [vmem:[#allocation6 + $0x88] sm:$0xff]
    %v477 = vld [vmem:[#allocation6 + $0x90] sm:$0xff]
    %v478 = vld [vmem:[#allocation6 + $0x98] sm:$0xff]
    %v479 = vld [vmem:[#allocation6 + $0xa0] sm:$0xff]
    %v480 = vld [vmem:[#allocation6 + $0xa8] sm:$0xff]
    %v481 = vld [vmem:[#allocation6 + $0xb0] sm:$0xff]
    %v482 = vld [vmem:[#allocation6 + $0xb8] sm:$0xff]
    %v483 = vld [vmem:[#allocation6 + $0xc0] sm:$0xff]
    %v484 = vld [vmem:[#allocation6 + $0xc8] sm:$0xff]
    %v485 = vld [vmem:[#allocation6 + $0xd0] sm:$0xff]
    %v486 = vld [vmem:[#allocation6 + $0xd8] sm:$0xff]
    %v487 = vld [vmem:[#allocation6 + $0xe0] sm:$0xff]
    %v488 = vld [vmem:[#allocation6 + $0xe8] sm:$0xff]
    %v489 = vld [vmem:[#allocation6 + $0xf0] sm:$0xff]
    %v490 = vld [vmem:[#allocation6 + $0xf8] sm:$0xff]
    %v491 = vld [vmem:[#allocation6 + $0x100] sm:$0xff]
    %v492 = vld [vmem:[#allocation6 + $0x108] sm:$0xff]
    %v493 = vld [vmem:[#allocation6 + $0x110] sm:$0xff]
    %v494 = vld [vmem:[#allocation6 + $0x118] sm:$0xff]
    %v495 = vld [vmem:[#allocation6 + $0x120] sm:$0xff]
    %v496 = vld [vmem:[#allocation6 + $0x128] sm:$0xff]
    %v497 = vld [vmem:[#allocation6 + $0x130] sm:$0xff]
    %v498 = vld [vmem:[#allocation6 + $0x138] sm:$0xff]
    %v499 = vld [vmem:[#allocation6 + $0x140] sm:$0xff]
    %v500 = vld [vmem:[#allocation6 + $0x148] sm:$0xff]
    %v501 = vld [vmem:[#allocation6 + $0x150] sm:$0xff]
    %v502 = vld [vmem:[#allocation6 + $0x158] sm:$0xff]
    %v503 = vld [vmem:[#allocation6 + $0x160] sm:$0xff]
    %v504 = vld [vmem:[#allocation6 + $0x168] sm:$0xff]
    %v505 = vld [vmem:[#allocation6 + $0x170] sm:$0xff]
    %v506 = vld [vmem:[#allocation6 + $0x178] sm:$0xff]
    %v507 = vld [vmem:[#allocation6 + $0x180] sm:$0xff]
    %v508 = vld [vmem:[#allocation6 + $0x188] sm:$0xff]
    %v509 = vld [vmem:[#allocation6 + $0x190] sm:$0xff]
    %v510 = vld [vmem:[#allocation6 + $0x198] sm:$0xff]
    %v511 = vld [vmem:[#allocation6 + $0x1a0] sm:$0xff]
    %v512 = vld [vmem:[#allocation6 + $0x1a8] sm:$0xff]
    %v513 = vld [vmem:[#allocation6 + $0x1b0] sm:$0xff]
    %v514 = vld [vmem:[#allocation6 + $0x1b8] sm:$0xff]
    %v515 = vld [vmem:[#allocation6 + $0x1c0] sm:$0xff]
    %v516 = vld [vmem:[#allocation6 + $0x1c8] sm:$0xff]
    %v517 = vld [vmem:[#allocation6 + $0x1d0] sm:$0xff]
    %v518 = vld [vmem:[#allocation6 + $0x1d8] sm:$0xff]
    %v519 = vld [vmem:[#allocation6 + $0x1e0] sm:$0xff]
    %v520 = vld [vmem:[#allocation6 + $0x1e8] sm:$0xff]
    %v521 = vld [vmem:[#allocation6 + $0x1f0] sm:$0xff]
    %v522 = vld [vmem:[#allocation6 + $0x1f8] sm:$0xff]
    %v523 = vld [vmem:[#allocation8] sm:$0xff]
    %v524 = vld [vmem:[#allocation8 + $0x8] sm:$0xff]
    %v525 = vld [vmem:[#allocation8 + $0x10] sm:$0xff]
    %v526 = vld [vmem:[#allocation8 + $0x18] sm:$0xff]
    %v527 = vld [vmem:[#allocation8 + $0x20] sm:$0xff]
    %v528 = vld [vmem:[#allocation8 + $0x28] sm:$0xff]
    %v529 = vld [vmem:[#allocation8 + $0x30] sm:$0xff]
    %v530 = vld [vmem:[#allocation8 + $0x38] sm:$0xff]
    %v531 = vld [vmem:[#allocation8 + $0x40] sm:$0xff]
    %v532 = vld [vmem:[#allocation8 + $0x48] sm:$0xff]
    %v533 = vld [vmem:[#allocation8 + $0x50] sm:$0xff]
    %v534 = vld [vmem:[#allocation8 + $0x58] sm:$0xff]
    %v535 = vld [vmem:[#allocation8 + $0x60] sm:$0xff]
    %v536 = vld [vmem:[#allocation8 + $0x68] sm:$0xff]
    %v537 = vld [vmem:[#allocation8 + $0x70] sm:$0xff]
    %v538 = vld [vmem:[#allocation8 + $0x78] sm:$0xff]
    %v539 = vld [vmem:[#allocation8 + $0x80] sm:$0xff]
    %v540 = vld [vmem:[#allocation8 + $0x88] sm:$0xff]
    %v541 = vld [vmem:[#allocation8 + $0x90] sm:$0xff]
    %v542 = vld [vmem:[#allocation8 + $0x98] sm:$0xff]
    %v543 = vld [vmem:[#allocation8 + $0xa0] sm:$0xff]
    %v544 = vld [vmem:[#allocation8 + $0xa8] sm:$0xff]
    %v545 = vld [vmem:[#allocation8 + $0xb0] sm:$0xff]
    %v546 = vld [vmem:[#allocation8 + $0xb8] sm:$0xff]
    %v547 = vld [vmem:[#allocation8 + $0xc0] sm:$0xff]
    %v548 = vld [vmem:[#allocation8 + $0xc8] sm:$0xff]
    %v549 = vld [vmem:[#allocation8 + $0xd0] sm:$0xff]
    %v550 = vld [vmem:[#allocation8 + $0xd8] sm:$0xff]
    %v551 = vld [vmem:[#allocation8 + $0xe0] sm:$0xff]
    %v552 = vld [vmem:[#allocation8 + $0xe8] sm:$0xff]
    %v553 = vld [vmem:[#allocation8 + $0xf0] sm:$0xff]
    %v554 = vld [vmem:[#allocation8 + $0xf8] sm:$0xff]
    %v555 = vld [vmem:[#allocation8 + $0x100] sm:$0xff]
    %v556 = vld [vmem:[#allocation8 + $0x108] sm:$0xff]
    %v557 = vld [vmem:[#allocation8 + $0x110] sm:$0xff]
    %v558 = vld [vmem:[#allocation8 + $0x118] sm:$0xff]
    %v559 = vld [vmem:[#allocation8 + $0x120] sm:$0xff]
    %v560 = vld [vmem:[#allocation8 + $0x128] sm:$0xff]
    %v561 = vld [vmem:[#allocation8 + $0x130] sm:$0xff]
    %v562 = vld [vmem:[#allocation8 + $0x138] sm:$0xff]
    %v563 = vld [vmem:[#allocation8 + $0x140] sm:$0xff]
    %v564 = vld [vmem:[#allocation8 + $0x148] sm:$0xff]
    %v565 = vld [vmem:[#allocation8 + $0x150] sm:$0xff]
    %v566 = vld [vmem:[#allocation8 + $0x158] sm:$0xff]
    %v567 = vld [vmem:[#allocation8 + $0x160] sm:$0xff]
    %v568 = vld [vmem:[#allocation8 + $0x168] sm:$0xff]
    %v569 = vld [vmem:[#allocation8 + $0x170] sm:$0xff]
    %v570 = vld [vmem:[#allocation8 + $0x178] sm:$0xff]
    %v571 = vld [vmem:[#allocation8 + $0x180] sm:$0xff]
    %v572 = vld [vmem:[#allocation8 + $0x188] sm:$0xff]
    %v573 = vld [vmem:[#allocation8 + $0x190] sm:$0xff]
    %v574 = vld [vmem:[#allocation8 + $0x198] sm:$0xff]
    %v575 = vld [vmem:[#allocation8 + $0x1a0] sm:$0xff]
    %v576 = vld [vmem:[#allocation8 + $0x1a8] sm:$0xff]
    %v577 = vld [vmem:[#allocation8 + $0x1b0] sm:$0xff]
    %v578 = vld [vmem:[#allocation8 + $0x1b8] sm:$0xff]
    %v579 = vld [vmem:[#allocation8 + $0x1c0] sm:$0xff]
    %v580 = vld [vmem:[#allocation8 + $0x1c8] sm:$0xff]
    %v581 = vld [vmem:[#allocation8 + $0x1d0] sm:$0xff]
    %v582 = vld [vmem:[#allocation8 + $0x1d8] sm:$0xff]
    %v583 = vld [vmem:[#allocation8 + $0x1e0] sm:$0xff]
    %v584 = vld [vmem:[#allocation8 + $0x1e8] sm:$0xff]
    %v585 = vld [vmem:[#allocation8 + $0x1f0] sm:$0xff]
    %v586 = vld [vmem:[#allocation8 + $0x1f8] sm:$0xff]
    %v587 = vld [vmem:[%s6] sm:$0xf]
    %s588 = smul.u32 0, 4
    %s589 = smul.addr %s588, 8
    %s590 = scalar_lea.vmem [#allocation2], %s589
    %v591 = vld [vmem:[%s590] sm:$0xff]
    %v592 = vld [vmem:[%s590 + $0x8] sm:$0xff]
    %v593 = vld [vmem:[%s590 + $0x10] sm:$0xff]
    %v594 = vld [vmem:[%s590 + $0x18] sm:$0xff]
    %595 = vmatprep.subr.mxu0 %v396
    %596 = vmatpush1.msra.mxu0 %v395
    %597 = vmatprep.subr.mxu0 %v400
    %598 = vmatpush1.msra.mxu0 %v399
    %599 = vmatprep.subr.mxu0 %v404
    %600 = vmatpush1.msra.mxu0 %v403
    %601 = vmatprep.subr.mxu0 %v408
    %602 = vmatpush1.msra.mxu0 %v407
    %603 = vmatprep.subr.mxu0 %v412
    %604 = vmatpush1.msra.mxu0 %v411
    %605 = vmatprep.subr.mxu0 %v416
    %606 = vmatpush1.msra.mxu0 %v415
    %607 = vmatprep.subr.mxu0 %v420
    %608 = vmatpush1.msra.mxu0 %v419
    %609 = vmatprep.subr.mxu0 %v424
    %610 = vmatpush1.msra.mxu0 %v423
    %611 = vmatprep.subr.mxu0 %v428
    %612 = vmatpush1.msra.mxu0 %v427
    %613 = vmatprep.subr.mxu0 %v432
    %614 = vmatpush1.msra.mxu0 %v431
    %615 = vmatprep.subr.mxu0 %v436
    %616 = vmatpush1.msra.mxu0 %v435
    %617 = vmatprep.subr.mxu0 %v440
    %618 = vmatpush1.msra.mxu0 %v439
    %619 = vmatprep.subr.mxu0 %v444
    %620 = vmatpush1.msra.mxu0 %v443
    %621 = vmatprep.subr.mxu0 %v448
    %622 = vmatpush1.msra.mxu0 %v447
    %623 = vmatprep.subr.mxu0 %v452
    %624 = vmatpush1.msra.mxu0 %v451
    %625 = vmatprep.subr.mxu0 %v456
    %626 = vmatpush1.msra.mxu0 %v455
    %627 = vmatprep.subr.mxu0 0.0
    %628 = vmatpush1.msra.mxu0 0.0
    %629 = vmatprep.subr.mxu0 0.0
    %630 = vmatpush1.msra.mxu0 0.0
    %631 = vmatprep.subr.mxu0 0.0
    %632 = vmatpush1.msra.mxu0 0.0
    %633 = vmatprep.subr.mxu0 0.0
    %634 = vmatpush1.msra.mxu0 0.0
    %635 = vmatprep.subr.mxu0 0.0
    %636 = vmatpush1.msra.mxu0 0.0
    %637 = vmatprep.subr.mxu0 0.0
    %638 = vmatpush1.msra.mxu0 0.0
    %639 = vmatprep.subr.mxu0 0.0
    %640 = vmatpush1.msra.mxu0 0.0
    %641 = vmatprep.subr.mxu0 0.0
    %642 = vmatpush1.msra.mxu0 0.0
    %643 = vmatprep.subr.mxu0 0.0
    %644 = vmatpush1.msra.mxu0 0.0
    %645 = vmatprep.subr.mxu0 0.0
    %646 = vmatpush1.msra.mxu0 0.0
    %647 = vmatprep.subr.mxu0 0.0
    %648 = vmatpush1.msra.mxu0 0.0
    %649 = vmatprep.subr.mxu0 0.0
    %650 = vmatpush1.msra.mxu0 0.0
    %651 = vmatprep.subr.mxu0 0.0
    %652 = vmatpush1.msra.mxu0 0.0
    %653 = vmatprep.subr.mxu0 0.0
    %654 = vmatpush1.msra.mxu0 0.0
    %655 = vmatprep.subr.mxu0 0.0
    %656 = vmatpush1.msra.mxu0 0.0
    %657 = vmatprep.subr.mxu0 0.0
    %658 = vmatpush1.msra.mxu0 0.0
    %659 = vmatprep.mubr.f32.mxu0 0.0
    %660 = vmatmul.mubr.f32.gmra.mrb[0].mxu0 0.0
    %v661 = vpop.f32.mrb[0].mxu0
    %v662 = vadd.f32 0.0, %v661
    %v663 = vpop.f32.mrb[0].mxu0
    %v664 = vadd.f32 0.0, %v663
    %665 = vdwg.mxu0
    %666 = vmatprep.subr.mxu0 %v398
    %667 = vmatpush1.msra.mxu0 %v397
    %668 = vmatprep.subr.mxu0 %v402
    %669 = vmatpush1.msra.mxu0 %v401
    %670 = vmatprep.subr.mxu0 %v406
    %671 = vmatpush1.msra.mxu0 %v405
    %672 = vmatprep.subr.mxu0 %v410
    %673 = vmatpush1.msra.mxu0 %v409
    %674 = vmatprep.subr.mxu0 %v414
    %675 = vmatpush1.msra.mxu0 %v413
    %676 = vmatprep.subr.mxu0 %v418
    %677 = vmatpush1.msra.mxu0 %v417
    %678 = vmatprep.subr.mxu0 %v422
    %679 = vmatpush1.msra.mxu0 %v421
    %680 = vmatprep.subr.mxu0 %v426
    %681 = vmatpush1.msra.mxu0 %v425
    %682 = vmatprep.subr.mxu0 %v430
    %683 = vmatpush1.msra.mxu0 %v429
    %684 = vmatprep.subr.mxu0 %v434
    %685 = vmatpush1.msra.mxu0 %v433
    %686 = vmatprep.subr.mxu0 %v438
    %687 = vmatpush1.msra.mxu0 %v437
    %688 = vmatprep.subr.mxu0 %v442
    %689 = vmatpush1.msra.mxu0 %v441
    %690 = vmatprep.subr.mxu0 %v446
    %691 = vmatpush1.msra.mxu0 %v445
    %692 = vmatprep.subr.mxu0 %v450
    %693 = vmatpush1.msra.mxu0 %v449
    %694 = vmatprep.subr.mxu0 %v454
    %695 = vmatpush1.msra.mxu0 %v453
    %696 = vmatprep.subr.mxu0 %v458
    %697 = vmatpush1.msra.mxu0 %v457
    %698 = vmatprep.subr.mxu0 0.0
    %699 = vmatpush1.msra.mxu0 0.0
    %700 = vmatprep.subr.mxu0 0.0
    %701 = vmatpush1.msra.mxu0 0.0
    %702 = vmatprep.subr.mxu0 0.0
    %703 = vmatpush1.msra.mxu0 0.0
    %704 = vmatprep.subr.mxu0 0.0
    %705 = vmatpush1.msra.mxu0 0.0
    %706 = vmatprep.subr.mxu0 0.0
    %707 = vmatpush1.msra.mxu0 0.0
    %708 = vmatprep.subr.mxu0 0.0
    %709 = vmatpush1.msra.mxu0 0.0
    %710 = vmatprep.subr.mxu0 0.0
    %711 = vmatpush1.msra.mxu0 0.0
    %712 = vmatprep.subr.mxu0 0.0
    %713 = vmatpush1.msra.mxu0 0.0
    %714 = vmatprep.subr.mxu0 0.0
    %715 = vmatpush1.msra.mxu0 0.0
    %716 = vmatprep.subr.mxu0 0.0
    %717 = vmatpush1.msra.mxu0 0.0
    %718 = vmatprep.subr.mxu0 0.0
    %719 = vmatpush1.msra.mxu0 0.0
    %720 = vmatprep.subr.mxu0 0.0
    %721 = vmatpush1.msra.mxu0 0.0
    %722 = vmatprep.subr.mxu0 0.0
    %723 = vmatpush1.msra.mxu0 0.0
    %724 = vmatprep.subr.mxu0 0.0
    %725 = vmatpush1.msra.mxu0 0.0
    %726 = vmatprep.subr.mxu0 0.0
    %727 = vmatpush1.msra.mxu0 0.0
    %728 = vmatprep.subr.mxu0 0.0
    %729 = vmatpush1.msra.mxu0 0.0
    %730 = vmatprep.mubr.f32.mxu0 0.0
    %731 = vmatmul.mubr.f32.gmra.mrb[0].mxu0 0.0
    %v732 = vpop.f32.mrb[0].mxu0
    %v733 = vadd.f32 0.0, %v732
    %v734 = vpop.f32.mrb[0].mxu0
    %v735 = vadd.f32 0.0, %v734
    %736 = vdwg.mxu0
    %v737 = vadd.f32 %v591, %v662
    %v738 = vadd.f32 %v592, %v664
    %v739 = vadd.f32 %v593, %v733
    %v740 = vadd.f32 %v594, %v735
    %v741 = vxor.u32 %v737, 2147483648
    %v742 = vmul.f32 %v741, 1.442695
    %v743 = vpow.pop %v742
    %v744 = vadd.f32 %v743, 1.0
    %v745 = vrcp.pop %v744
    %v746 = vmul.f32 1.0, %v745
    %v747 = vxor.u32 %v738, 2147483648
    %v748 = vmul.f32 %v747, 1.442695
    %v749 = vpow.pop %v748
    %v750 = vadd.f32 %v749, 1.0
    %v751 = vrcp.pop %v750
    %v752 = vmul.f32 1.0, %v751
    %v753 = vtanh.pop %v739
    %v754 = vxor.u32 %v740, 2147483648
    %v755 = vmul.f32 %v754, 1.442695
    %v756 = vpow.pop %v755
    %v757 = vadd.f32 %v756, 1.0
    %v758 = vrcp.pop %v757
    %v759 = vmul.f32 1.0, %v758
    %v760 = vmul.f32 %v752, 0.0
    %v761 = vmul.f32 %v746, %v753
    %v762 = vadd.f32 %v760, %v761
    %v763 = vtanh.pop %v762
    %v764 = vmul.f32 %v759, %v763
    %s765 = smul.u32 1, 4
    %s766 = smul.addr %s765, 8
    %s767 = scalar_lea.vmem [#allocation2], %s766
    %v768 = vld [vmem:[%s767] sm:$0xff]
    %v769 = vld [vmem:[%s767 + $0x8] sm:$0xff]
    %v770 = vld [vmem:[%s767 + $0x10] sm:$0xff]
    %v771 = vld [vmem:[%s767 + $0x18] sm:$0xff]
    %772 = vmatprep.subr.mxu0 %v396
    %773 = vmatpush1.msra.mxu0 %v395
    %774 = vmatprep.subr.mxu0 %v400
    %775 = vmatpush1.msra.mxu0 %v399
    %776 = vmatprep.subr.mxu0 %v404
    %777 = vmatpush1.msra.mxu0 %v403
    %778 = vmatprep.subr.mxu0 %v408
    %779 = vmatpush1.msra.mxu0 %v407
    %780 = vmatprep.subr.mxu0 %v412
    %781 = vmatpush1.msra.mxu0 %v411
    %782 = vmatprep.subr.mxu0 %v416
    %783 = vmatpush1.msra.mxu0 %v415
    %784 = vmatprep.subr.mxu0 %v420
    %785 = vmatpush1.msra.mxu0 %v419
    %786 = vmatprep.subr.mxu0 %v424
    %787 = vmatpush1.msra.mxu0 %v423
    %788 = vmatprep.subr.mxu0 %v428
    %789 = vmatpush1.msra.mxu0 %v427
    %790 = vmatprep.subr.mxu0 %v432
    %791 = vmatpush1.msra.mxu0 %v431
    %792 = vmatprep.subr.mxu0 %v436
    %793 = vmatpush1.msra.mxu0 %v435
    %794 = vmatprep.subr.mxu0 %v440
    %795 = vmatpush1.msra.mxu0 %v439
    %796 = vmatprep.subr.mxu0 %v444
    %797 = vmatpush1.msra.mxu0 %v443
    %798 = vmatprep.subr.mxu0 %v448
    %799 = vmatpush1.msra.mxu0 %v447
    %800 = vmatprep.subr.mxu0 %v452
    %801 = vmatpush1.msra.mxu0 %v451
    %802 = vmatprep.subr.mxu0 %v456
    %803 = vmatpush1.msra.mxu0 %v455
    %804 = vmatprep.subr.mxu0 0.0
    %805 = vmatpush1.msra.mxu0 0.0
    %806 = vmatprep.subr.mxu0 0.0
    %807 = vmatpush1.msra.mxu0 0.0
    %808 = vmatprep.subr.mxu0 0.0
    %809 = vmatpush1.msra.mxu0 0.0
    %810 = vmatprep.subr.mxu0 0.0
    %811 = vmatpush1.msra.mxu0 0.0
    %812 = vmatprep.subr.mxu0 0.0
    %813 = vmatpush1.msra.mxu0 0.0
    %814 = vmatprep.subr.mxu0 0.0
    %815 = vmatpush1.msra.mxu0 0.0
    %816 = vmatprep.subr.mxu0 0.0
    %817 = vmatpush1.msra.mxu0 0.0
    %818 = vmatprep.subr.mxu0 0.0
    %819 = vmatpush1.msra.mxu0 0.0
    %820 = vmatprep.subr.mxu0 0.0
    %821 = vmatpush1.msra.mxu0 0.0
    %822 = vmatprep.subr.mxu0 0.0
    %823 = vmatpush1.msra.mxu0 0.0
    %824 = vmatprep.subr.mxu0 0.0
    %825 = vmatpush1.msra.mxu0 0.0
    %826 = vmatprep.subr.mxu0 0.0
    %827 = vmatpush1.msra.mxu0 0.0
    %828 = vmatprep.subr.mxu0 0.0
    %829 = vmatpush1.msra.mxu0 0.0
    %830 = vmatprep.subr.mxu0 0.0
    %831 = vmatpush1.msra.mxu0 0.0
    %832 = vmatprep.subr.mxu0 0.0
    %833 = vmatpush1.msra.mxu0 0.0
    %834 = vmatprep.subr.mxu0 0.0
    %835 = vmatpush1.msra.mxu0 0.0
    %836 = vmatprep.mubr.f32.mxu0 0.0
    %837 = vmatmul.mubr.f32.gmra.mrb[0].mxu0 %v764
    %v838 = vpop.f32.mrb[0].mxu0
    %v839 = vadd.f32 0.0, %v838
    %v840 = vpop.f32.mrb[0].mxu0
    %v841 = vadd.f32 0.0, %v840
    %842 = vdwg.mxu0
    %843 = vmatprep.subr.mxu0 %v398
    %844 = vmatpush1.msra.mxu0 %v397
    %845 = vmatprep.subr.mxu0 %v402
    %846 = vmatpush1.msra.mxu0 %v401
    %847 = vmatprep.subr.mxu0 %v406
    %848 = vmatpush1.msra.mxu0 %v405
    %849 = vmatprep.subr.mxu0 %v410
    %850 = vmatpush1.msra.mxu0 %v409
    %851 = vmatprep.subr.mxu0 %v414
    %852 = vmatpush1.msra.mxu0 %v413
    %853 = vmatprep.subr.mxu0 %v418
    %854 = vmatpush1.msra.mxu0 %v417
    %855 = vmatprep.subr.mxu0 %v422
    %856 = vmatpush1.msra.mxu0 %v421
    %857 = vmatprep.subr.mxu0 %v426
    %858 = vmatpush1.msra.mxu0 %v425
    %859 = vmatprep.subr.mxu0 %v430
    %860 = vmatpush1.msra.mxu0 %v429
    %861 = vmatprep.subr.mxu0 %v434
    %862 = vmatpush1.msra.mxu0 %v433
    %863 = vmatprep.subr.mxu0 %v438
    %864 = vmatpush1.msra.mxu0 %v437
    %865 = vmatprep.subr.mxu0 %v442
    %866 = vmatpush1.msra.mxu0 %v441
    %867 = vmatprep.subr.mxu0 %v446
    %868 = vmatpush1.msra.mxu0 %v445
    %869 = vmatprep.subr.mxu0 %v450
    %870 = vmatpush1.msra.mxu0 %v449
    %871 = vmatprep.subr.mxu0 %v454
    %872 = vmatpush1.msra.mxu0 %v453
    %873 = vmatprep.subr.mxu0 %v458
    %874 = vmatpush1.msra.mxu0 %v457
    %875 = vmatprep.subr.mxu0 0.0
    %876 = vmatpush1.msra.mxu0 0.0
    %877 = vmatprep.subr.mxu0 0.0
    %878 = vmatpush1.msra.mxu0 0.0
    %879 = vmatprep.subr.mxu0 0.0
    %880 = vmatpush1.msra.mxu0 0.0
    %881 = vmatprep.subr.mxu0 0.0
    %882 = vmatpush1.msra.mxu0 0.0
    %883 = vmatprep.subr.mxu0 0.0
    %884 = vmatpush1.msra.mxu0 0.0
    %885 = vmatprep.subr.mxu0 0.0
    %886 = vmatpush1.msra.mxu0 0.0
    %887 = vmatprep.subr.mxu0 0.0
    %888 = vmatpush1.msra.mxu0 0.0
    %889 = vmatprep.subr.mxu0 0.0
    %890 = vmatpush1.msra.mxu0 0.0
    %891 = vmatprep.subr.mxu0 0.0
    %892 = vmatpush1.msra.mxu0 0.0
    %893 = vmatprep.subr.mxu0 0.0
    %894 = vmatpush1.msra.mxu0 0.0
    %895 = vmatprep.subr.mxu0 0.0
    %896 = vmatpush1.msra.mxu0 0.0
    %897 = vmatprep.subr.mxu0 0.0
    %898 = vmatpush1.msra.mxu0 0.0
    %899 = vmatprep.subr.mxu0 0.0
    %900 = vmatpush1.msra.mxu0 0.0
    %901 = vmatprep.subr.mxu0 0.0
    %902 = vmatpush1.msra.mxu0 0.0
    %903 = vmatprep.subr.mxu0 0.0
    %904 = vmatpush1.msra.mxu0 0.0
    %905 = vmatprep.subr.mxu0 0.0
    %906 = vmatpush1.msra.mxu0 0.0
    %907 = vmatprep.mubr.f32.mxu0 0.0
    %908 = vmatmul.mubr.f32.gmra.mrb[0].mxu0 %v764
    %v909 = vpop.f32.mrb[0].mxu0
    %v910 = vadd.f32 0.0, %v909
    %v911 = vpop.f32.mrb[0].mxu0
    %v912 = vadd.f32 0.0, %v911
    %913 = vdwg.mxu0
    %v914 = vadd.f32 %v768, %v839
    %v915 = vadd.f32 %v769, %v841
    %v916 = vadd.f32 %v770, %v910
    %v917 = vadd.f32 %v771, %v912
    %v918 = vxor.u32 %v914, 2147483648
    %v919 = vmul.f32 %v918, 1.442695
    %v920 = vpow.pop %v919
    %v921 = vadd.f32 %v920, 1.0
    %v922 = vrcp.pop %v921
    %v923 = vmul.f32 1.0, %v922
    %v924 = vxor.u32 %v915, 2147483648
    %v925 = vmul.f32 %v924, 1.442695
    %v926 = vpow.pop %v925
    %v927 = vadd.f32 %v926, 1.0
    %v928 = vrcp.pop %v927
    %v929 = vmul.f32 1.0, %v928
    %v930 = vtanh.pop %v916
    %v931 = vxor.u32 %v917, 2147483648
    %v932 = vmul.f32 %v931, 1.442695
    %v933 = vpow.pop %v932
    %v934 = vadd.f32 %v933, 1.0
    %v935 = vrcp.pop %v934
    %v936 = vmul.f32 1.0, %v935
    %v937 = vmul.f32 %v929, %v762
    %v938 = vmul.f32 %v923, %v930
    %v939 = vadd.f32 %v937, %v938
    %v940 = vtanh.pop %v939
    %v941 = vmul.f32 %v936, %v940
    %v943 = vlaneseq
    %v944 = vshrl.u32 %v943, 7
    %v945 = vsub.s32 0, %v944
    %v946 = vrot.slane %v587, %v945
    %v947 = vlaneseq
    %v948 = vshrl.u32 %v947, 7
    %v949 = vsub.s32 1, %v948
    %v950 = vrot.slane %v587, %v949
    %v951 = vlaneseq
    %v952 = vshrl.u32 %v951, 7
    %v953 = vsub.s32 2, %v952
    %v954 = vrot.slane %v587, %v953
    %v955 = vlaneseq
    %v956 = vshrl.u32 %v955, 7
    %v957 = vsub.s32 3, %v956
    %v958 = vrot.slane %v587, %v957
    %963 = vmatprep.subr.mxu0 %v460
    %964 = vmatpush1.msra.mxu0 %v459
    %965 = vmatprep.subr.mxu0 %v464
    %966 = vmatpush1.msra.mxu0 %v463
    %967 = vmatprep.subr.mxu0 %v468
    %968 = vmatpush1.msra.mxu0 %v467
    %969 = vmatprep.subr.mxu0 %v472
    %970 = vmatpush1.msra.mxu0 %v471
    %971 = vmatprep.subr.mxu0 %v476
    %972 = vmatpush1.msra.mxu0 %v475
    %973 = vmatprep.subr.mxu0 %v480
    %974 = vmatpush1.msra.mxu0 %v479
    %975 = vmatprep.subr.mxu0 %v484
    %976 = vmatpush1.msra.mxu0 %v483
    %977 = vmatprep.subr.mxu0 %v488
    %978 = vmatpush1.msra.mxu0 %v487
    %979 = vmatprep.subr.mxu0 %v492
    %980 = vmatpush1.msra.mxu0 %v491
    %981 = vmatprep.subr.mxu0 %v496
    %982 = vmatpush1.msra.mxu0 %v495
    %983 = vmatprep.subr.mxu0 %v500
    %984 = vmatpush1.msra.mxu0 %v499
    %985 = vmatprep.subr.mxu0 %v504
    %986 = vmatpush1.msra.mxu0 %v503
    %987 = vmatprep.subr.mxu0 %v508
    %988 = vmatpush1.msra.mxu0 %v507
    %989 = vmatprep.subr.mxu0 %v512
    %990 = vmatpush1.msra.mxu0 %v511
    %991 = vmatprep.subr.mxu0 %v516
    %992 = vmatpush1.msra.mxu0 %v515
    %993 = vmatprep.subr.mxu0 %v520
    %994 = vmatpush1.msra.mxu0 %v519
    %995 = vmatprep.subr.mxu0 0.0
    %996 = vmatpush1.msra.mxu0 0.0
    %997 = vmatprep.subr.mxu0 0.0
    %998 = vmatpush1.msra.mxu0 0.0
    %999 = vmatprep.subr.mxu0 0.0
    %1000 = vmatpush1.msra.mxu0 0.0
    %1001 = vmatprep.subr.mxu0 0.0
    %1002 = vmatpush1.msra.mxu0 0.0
    %1003 = vmatprep.subr.mxu0 0.0
    %1004 = vmatpush1.msra.mxu0 0.0
    %1005 = vmatprep.subr.mxu0 0.0
    %1006 = vmatpush1.msra.mxu0 0.0
    %1007 = vmatprep.subr.mxu0 0.0
    %1008 = vmatpush1.msra.mxu0 0.0
    %1009 = vmatprep.subr.mxu0 0.0
    %1010 = vmatpush1.msra.mxu0 0.0
    %1011 = vmatprep.subr.mxu0 0.0
    %1012 = vmatpush1.msra.mxu0 0.0
    %1013 = vmatprep.subr.mxu0 0.0
    %1014 = vmatpush1.msra.mxu0 0.0
    %1015 = vmatprep.subr.mxu0 0.0
    %1016 = vmatpush1.msra.mxu0 0.0
    %1017 = vmatprep.subr.mxu0 0.0
    %1018 = vmatpush1.msra.mxu0 0.0
    %1019 = vmatprep.subr.mxu0 0.0
    %1020 = vmatpush1.msra.mxu0 0.0
    %1021 = vmatprep.subr.mxu0 0.0
    %1022 = vmatpush1.msra.mxu0 0.0
    %1023 = vmatprep.subr.mxu0 0.0
    %1024 = vmatpush1.msra.mxu0 0.0
    %1025 = vmatprep.subr.mxu0 0.0
    %1026 = vmatpush1.msra.mxu0 0.0
    %1027 = vmatprep.mubr.f32.mxu0 0.0
    %1028 = vmatmul.mubr.f32.gmra.mrb[0].mxu0 %v764
    %v1029 = vpop.f32.mrb[0].mxu0
    %v1030 = vadd.f32 %v946, %v1029
    %v1031 = vpop.f32.mrb[0].mxu0
    %v1032 = vadd.f32 %v950, %v1031
    %1033 = vdwg.mxu0
    %1034 = vmatprep.subr.mxu0 %v462
    %1035 = vmatpush1.msra.mxu0 %v461
    %1036 = vmatprep.subr.mxu0 %v466
    %1037 = vmatpush1.msra.mxu0 %v465
    %1038 = vmatprep.subr.mxu0 %v470
    %1039 = vmatpush1.msra.mxu0 %v469
    %1040 = vmatprep.subr.mxu0 %v474
    %1041 = vmatpush1.msra.mxu0 %v473
    %1042 = vmatprep.subr.mxu0 %v478
    %1043 = vmatpush1.msra.mxu0 %v477
    %1044 = vmatprep.subr.mxu0 %v482
    %1045 = vmatpush1.msra.mxu0 %v481
    %1046 = vmatprep.subr.mxu0 %v486
    %1047 = vmatpush1.msra.mxu0 %v485
    %1048 = vmatprep.subr.mxu0 %v490
    %1049 = vmatpush1.msra.mxu0 %v489
    %1050 = vmatprep.subr.mxu0 %v494
    %1051 = vmatpush1.msra.mxu0 %v493
    %1052 = vmatprep.subr.mxu0 %v498
    %1053 = vmatpush1.msra.mxu0 %v497
    %1054 = vmatprep.subr.mxu0 %v502
    %1055 = vmatpush1.msra.mxu0 %v501
    %1056 = vmatprep.subr.mxu0 %v506
    %1057 = vmatpush1.msra.mxu0 %v505
    %1058 = vmatprep.subr.mxu0 %v510
    %1059 = vmatpush1.msra.mxu0 %v509
    %1060 = vmatprep.subr.mxu0 %v514
    %1061 = vmatpush1.msra.mxu0 %v513
    %1062 = vmatprep.subr.mxu0 %v518
    %1063 = vmatpush1.msra.mxu0 %v517
    %1064 = vmatprep.subr.mxu0 %v522
    %1065 = vmatpush1.msra.mxu0 %v521
    %1066 = vmatprep.subr.mxu0 0.0
    %1067 = vmatpush1.msra.mxu0 0.0
    %1068 = vmatprep.subr.mxu0 0.0
    %1069 = vmatpush1.msra.mxu0 0.0
    %1070 = vmatprep.subr.mxu0 0.0
    %1071 = vmatpush1.msra.mxu0 0.0
    %1072 = vmatprep.subr.mxu0 0.0
    %1073 = vmatpush1.msra.mxu0 0.0
    %1074 = vmatprep.subr.mxu0 0.0
    %1075 = vmatpush1.msra.mxu0 0.0
    %1076 = vmatprep.subr.mxu0 0.0
    %1077 = vmatpush1.msra.mxu0 0.0
    %1078 = vmatprep.subr.mxu0 0.0
    %1079 = vmatpush1.msra.mxu0 0.0
    %1080 = vmatprep.subr.mxu0 0.0
    %1081 = vmatpush1.msra.mxu0 0.0
    %1082 = vmatprep.subr.mxu0 0.0
    %1083 = vmatpush1.msra.mxu0 0.0
    %1084 = vmatprep.subr.mxu0 0.0
    %1085 = vmatpush1.msra.mxu0 0.0
    %1086 = vmatprep.subr.mxu0 0.0
    %1087 = vmatpush1.msra.mxu0 0.0
    %1088 = vmatprep.subr.mxu0 0.0
    %1089 = vmatpush1.msra.mxu0 0.0
    %1090 = vmatprep.subr.mxu0 0.0
    %1091 = vmatpush1.msra.mxu0 0.0
    %1092 = vmatprep.subr.mxu0 0.0
    %1093 = vmatpush1.msra.mxu0 0.0
    %1094 = vmatprep.subr.mxu0 0.0
    %1095 = vmatpush1.msra.mxu0 0.0
    %1096 = vmatprep.subr.mxu0 0.0
    %1097 = vmatpush1.msra.mxu0 0.0
    %1098 = vmatprep.mubr.f32.mxu0 0.0
    %1099 = vmatmul.mubr.f32.gmra.mrb[0].mxu0 %v764
    %v1100 = vpop.f32.mrb[0].mxu0
    %v1101 = vadd.f32 %v954, %v1100
    %v1102 = vpop.f32.mrb[0].mxu0
    %v1103 = vadd.f32 %v958, %v1102
    %1104 = vdwg.mxu0
    %1105 = vmatprep.subr.mxu0 %v524
    %1106 = vmatpush1.msra.mxu0 %v523
    %1107 = vmatprep.subr.mxu0 %v528
    %1108 = vmatpush1.msra.mxu0 %v527
    %1109 = vmatprep.subr.mxu0 %v532
    %1110 = vmatpush1.msra.mxu0 %v531
    %1111 = vmatprep.subr.mxu0 %v536
    %1112 = vmatpush1.msra.mxu0 %v535
    %1113 = vmatprep.subr.mxu0 %v540
    %1114 = vmatpush1.msra.mxu0 %v539
    %1115 = vmatprep.subr.mxu0 %v544
    %1116 = vmatpush1.msra.mxu0 %v543
    %1117 = vmatprep.subr.mxu0 %v548
    %1118 = vmatpush1.msra.mxu0 %v547
    %1119 = vmatprep.subr.mxu0 %v552
    %1120 = vmatpush1.msra.mxu0 %v551
    %1121 = vmatprep.subr.mxu0 %v556
    %1122 = vmatpush1.msra.mxu0 %v555
    %1123 = vmatprep.subr.mxu0 %v560
    %1124 = vmatpush1.msra.mxu0 %v559
    %1125 = vmatprep.subr.mxu0 %v564
    %1126 = vmatpush1.msra.mxu0 %v563
    %1127 = vmatprep.subr.mxu0 %v568
    %1128 = vmatpush1.msra.mxu0 %v567
    %1129 = vmatprep.subr.mxu0 %v572
    %1130 = vmatpush1.msra.mxu0 %v571
    %1131 = vmatprep.subr.mxu0 %v576
    %1132 = vmatpush1.msra.mxu0 %v575
    %1133 = vmatprep.subr.mxu0 %v580
    %1134 = vmatpush1.msra.mxu0 %v579
    %1135 = vmatprep.subr.mxu0 %v584
    %1136 = vmatpush1.msra.mxu0 %v583
    %1137 = vmatprep.subr.mxu0 0.0
    %1138 = vmatpush1.msra.mxu0 0.0
    %1139 = vmatprep.subr.mxu0 0.0
    %1140 = vmatpush1.msra.mxu0 0.0
    %1141 = vmatprep.subr.mxu0 0.0
    %1142 = vmatpush1.msra.mxu0 0.0
    %1143 = vmatprep.subr.mxu0 0.0
    %1144 = vmatpush1.msra.mxu0 0.0
    %1145 = vmatprep.subr.mxu0 0.0
    %1146 = vmatpush1.msra.mxu0 0.0
    %1147 = vmatprep.subr.mxu0 0.0
    %1148 = vmatpush1.msra.mxu0 0.0
    %1149 = vmatprep.subr.mxu0 0.0
    %1150 = vmatpush1.msra.mxu0 0.0
    %1151 = vmatprep.subr.mxu0 0.0
    %1152 = vmatpush1.msra.mxu0 0.0
    %1153 = vmatprep.subr.mxu0 0.0
    %1154 = vmatpush1.msra.mxu0 0.0
    %1155 = vmatprep.subr.mxu0 0.0
    %1156 = vmatpush1.msra.mxu0 0.0
    %1157 = vmatprep.subr.mxu0 0.0
    %1158 = vmatpush1.msra.mxu0 0.0
    %1159 = vmatprep.subr.mxu0 0.0
    %1160 = vmatpush1.msra.mxu0 0.0
    %1161 = vmatprep.subr.mxu0 0.0
    %1162 = vmatpush1.msra.mxu0 0.0
    %1163 = vmatprep.subr.mxu0 0.0
    %1164 = vmatpush1.msra.mxu0 0.0
    %1165 = vmatprep.subr.mxu0 0.0
    %1166 = vmatpush1.msra.mxu0 0.0
    %1167 = vmatprep.subr.mxu0 0.0
    %1168 = vmatpush1.msra.mxu0 0.0
    %1169 = vmatprep.mubr.f32.mxu0 0.0
    %1170 = vmatmul.mubr.f32.gmra.mrb[0].mxu0 0.0
    %v1171 = vpop.f32.mrb[0].mxu0
    %v1172 = vadd.f32 0.0, %v1171
    %v1173 = vpop.f32.mrb[0].mxu0
    %v1174 = vadd.f32 0.0, %v1173
    %1175 = vdwg.mxu0
    %1176 = vmatprep.subr.mxu0 %v526
    %1177 = vmatpush1.msra.mxu0 %v525
    %1178 = vmatprep.subr.mxu0 %v530
    %1179 = vmatpush1.msra.mxu0 %v529
    %1180 = vmatprep.subr.mxu0 %v534
    %1181 = vmatpush1.msra.mxu0 %v533
    %1182 = vmatprep.subr.mxu0 %v538
    %1183 = vmatpush1.msra.mxu0 %v537
    %1184 = vmatprep.subr.mxu0 %v542
    %1185 = vmatpush1.msra.mxu0 %v541
    %1186 = vmatprep.subr.mxu0 %v546
    %1187 = vmatpush1.msra.mxu0 %v545
    %1188 = vmatprep.subr.mxu0 %v550
    %1189 = vmatpush1.msra.mxu0 %v549
    %1190 = vmatprep.subr.mxu0 %v554
    %1191 = vmatpush1.msra.mxu0 %v553
    %1192 = vmatprep.subr.mxu0 %v558
    %1193 = vmatpush1.msra.mxu0 %v557
    %1194 = vmatprep.subr.mxu0 %v562
    %1195 = vmatpush1.msra.mxu0 %v561
    %1196 = vmatprep.subr.mxu0 %v566
    %1197 = vmatpush1.msra.mxu0 %v565
    %1198 = vmatprep.subr.mxu0 %v570
    %1199 = vmatpush1.msra.mxu0 %v569
    %1200 = vmatprep.subr.mxu0 %v574
    %1201 = vmatpush1.msra.mxu0 %v573
    %1202 = vmatprep.subr.mxu0 %v578
    %1203 = vmatpush1.msra.mxu0 %v577
    %1204 = vmatprep.subr.mxu0 %v582
    %1205 = vmatpush1.msra.mxu0 %v581
    %1206 = vmatprep.subr.mxu0 %v586
    %1207 = vmatpush1.msra.mxu0 %v585
    %1208 = vmatprep.subr.mxu0 0.0
    %1209 = vmatpush1.msra.mxu0 0.0
    %1210 = vmatprep.subr.mxu0 0.0
    %1211 = vmatpush1.msra.mxu0 0.0
    %1212 = vmatprep.subr.mxu0 0.0
    %1213 = vmatpush1.msra.mxu0 0.0
    %1214 = vmatprep.subr.mxu0 0.0
    %1215 = vmatpush1.msra.mxu0 0.0
    %1216 = vmatprep.subr.mxu0 0.0
    %1217 = vmatpush1.msra.mxu0 0.0
    %1218 = vmatprep.subr.mxu0 0.0
    %1219 = vmatpush1.msra.mxu0 0.0
    %1220 = vmatprep.subr.mxu0 0.0
    %1221 = vmatpush1.msra.mxu0 0.0
    %1222 = vmatprep.subr.mxu0 0.0
    %1223 = vmatpush1.msra.mxu0 0.0
    %1224 = vmatprep.subr.mxu0 0.0
    %1225 = vmatpush1.msra.mxu0 0.0
    %1226 = vmatprep.subr.mxu0 0.0
    %1227 = vmatpush1.msra.mxu0 0.0
    %1228 = vmatprep.subr.mxu0 0.0
    %1229 = vmatpush1.msra.mxu0 0.0
    %1230 = vmatprep.subr.mxu0 0.0
    %1231 = vmatpush1.msra.mxu0 0.0
    %1232 = vmatprep.subr.mxu0 0.0
    %1233 = vmatpush1.msra.mxu0 0.0
    %1234 = vmatprep.subr.mxu0 0.0
    %1235 = vmatpush1.msra.mxu0 0.0
    %1236 = vmatprep.subr.mxu0 0.0
    %1237 = vmatpush1.msra.mxu0 0.0
    %1238 = vmatprep.subr.mxu0 0.0
    %1239 = vmatpush1.msra.mxu0 0.0
    %1240 = vmatprep.mubr.f32.mxu0 0.0
    %1241 = vmatmul.mubr.f32.gmra.mrb[0].mxu0 0.0
    %v1242 = vpop.f32.mrb[0].mxu0
    %v1243 = vadd.f32 0.0, %v1242
    %v1244 = vpop.f32.mrb[0].mxu0
    %v1245 = vadd.f32 0.0, %v1244
    %1246 = vdwg.mxu0
    %v1247 = vadd.f32 %v1030, %v1172
    %v1248 = vadd.f32 %v1032, %v1174
    %v1249 = vadd.f32 %v1101, %v1243
    %v1250 = vadd.f32 %v1103, %v1245
    %v1251 = vxor.u32 %v1247, 2147483648
    %v1252 = vmul.f32 %v1251, 1.442695
    %v1253 = vpow.pop %v1252
    %v1254 = vadd.f32 %v1253, 1.0
    %v1255 = vrcp.pop %v1254
    %v1256 = vmul.f32 1.0, %v1255
    %v1257 = vxor.u32 %v1248, 2147483648
    %v1258 = vmul.f32 %v1257, 1.442695
    %v1259 = vpow.pop %v1258
    %v1260 = vadd.f32 %v1259, 1.0
    %v1261 = vrcp.pop %v1260
    %v1262 = vmul.f32 1.0, %v1261
    %v1263 = vtanh.pop %v1249
    %v1264 = vxor.u32 %v1250, 2147483648
    %v1265 = vmul.f32 %v1264, 1.442695
    %v1266 = vpow.pop %v1265
    %v1267 = vadd.f32 %v1266, 1.0
    %v1268 = vrcp.pop %v1267
    %v1269 = vmul.f32 1.0, %v1268
    %v1270 = vmul.f32 %v1262, 0.0
    %v1271 = vmul.f32 %v1256, %v1263
    %v1272 = vadd.f32 %v1270, %v1271
    %v1273 = vtanh.pop %v1272
    %v1274 = vmul.f32 %v1269, %v1273
    %s1275 = smul.u32 2, 4
    %s1276 = smul.addr %s1275, 8
    %s1277 = scalar_lea.vmem [#allocation2], %s1276
    %v1278 = vld [vmem:[%s1277] sm:$0xff]
    %v1279 = vld [vmem:[%s1277 + $0x8] sm:$0xff]
    %v1280 = vld [vmem:[%s1277 + $0x10] sm:$0xff]
    %v1281 = vld [vmem:[%s1277 + $0x18] sm:$0xff]
    %1282 = vmatprep.subr.mxu0 %v396
    %1283 = vmatpush1.msra.mxu0 %v395
    %1284 = vmatprep.subr.mxu0 %v400
    %1285 = vmatpush1.msra.mxu0 %v399
    %1286 = vmatprep.subr.mxu0 %v404
    %1287 = vmatpush1.msra.mxu0 %v403
    %1288 = vmatprep.subr.mxu0 %v408
    %1289 = vmatpush1.msra.mxu0 %v407
    %1290 = vmatprep.subr.mxu0 %v412
    %1291 = vmatpush1.msra.mxu0 %v411
    %1292 = vmatprep.subr.mxu0 %v416
    %1293 = vmatpush1.msra.mxu0 %v415
    %1294 = vmatprep.subr.mxu0 %v420
    %1295 = vmatpush1.msra.mxu0 %v419
    %1296 = vmatprep.subr.mxu0 %v424
    %1297 = vmatpush1.msra.mxu0 %v423
    %1298 = vmatprep.subr.mxu0 %v428
    %1299 = vmatpush1.msra.mxu0 %v427
    %1300 = vmatprep.subr.mxu0 %v432
    %1301 = vmatpush1.msra.mxu0 %v431
    %1302 = vmatprep.subr.mxu0 %v436
    %1303 = vmatpush1.msra.mxu0 %v435
    %1304 = vmatprep.subr.mxu0 %v440
    %1305 = vmatpush1.msra.mxu0 %v439
    %1306 = vmatprep.subr.mxu0 %v444
    %1307 = vmatpush1.msra.mxu0 %v443
    %1308 = vmatprep.subr.mxu0 %v448
    %1309 = vmatpush1.msra.mxu0 %v447
    %1310 = vmatprep.subr.mxu0 %v452
    %1311 = vmatpush1.msra.mxu0 %v451
    %1312 = vmatprep.subr.mxu0 %v456
    %1313 = vmatpush1.msra.mxu0 %v455
    %1314 = vmatprep.subr.mxu0 0.0
    %1315 = vmatpush1.msra.mxu0 0.0
    %1316 = vmatprep.subr.mxu0 0.0
    %1317 = vmatpush1.msra.mxu0 0.0
    %1318 = vmatprep.subr.mxu0 0.0
    %1319 = vmatpush1.msra.mxu0 0.0
    %1320 = vmatprep.subr.mxu0 0.0
    %1321 = vmatpush1.msra.mxu0 0.0
    %1322 = vmatprep.subr.mxu0 0.0
    %1323 = vmatpush1.msra.mxu0 0.0
    %1324 = vmatprep.subr.mxu0 0.0
    %1325 = vmatpush1.msra.mxu0 0.0
    %1326 = vmatprep.subr.mxu0 0.0
    %1327 = vmatpush1.msra.mxu0 0.0
    %1328 = vmatprep.subr.mxu0 0.0
    %1329 = vmatpush1.msra.mxu0 0.0
    %1330 = vmatprep.subr.mxu0 0.0
    %1331 = vmatpush1.msra.mxu0 0.0
    %1332 = vmatprep.subr.mxu0 0.0
    %1333 = vmatpush1.msra.mxu0 0.0
    %1334 = vmatprep.subr.mxu0 0.0
    %1335 = vmatpush1.msra.mxu0 0.0
    %1336 = vmatprep.subr.mxu0 0.0
    %1337 = vmatpush1.msra.mxu0 0.0
    %1338 = vmatprep.subr.mxu0 0.0
    %1339 = vmatpush1.msra.mxu0 0.0
    %1340 = vmatprep.subr.mxu0 0.0
    %1341 = vmatpush1.msra.mxu0 0.0
    %1342 = vmatprep.subr.mxu0 0.0
    %1343 = vmatpush1.msra.mxu0 0.0
    %1344 = vmatprep.subr.mxu0 0.0
    %1345 = vmatpush1.msra.mxu0 0.0
    %1346 = vmatprep.mubr.f32.mxu0 0.0
    %1347 = vmatmul.mubr.f32.gmra.mrb[0].mxu0 %v941
    %v1348 = vpop.f32.mrb[0].mxu0
    %v1349 = vadd.f32 0.0, %v1348
    %v1350 = vpop.f32.mrb[0].mxu0
    %v1351 = vadd.f32 0.0, %v1350
    %1352 = vdwg.mxu0
    %1353 = vmatprep.subr.mxu0 %v398
    %1354 = vmatpush1.msra.mxu0 %v397
    %1355 = vmatprep.subr.mxu0 %v402
    %1356 = vmatpush1.msra.mxu0 %v401
    %1357 = vmatprep.subr.mxu0 %v406
    %1358 = vmatpush1.msra.mxu0 %v405
    %1359 = vmatprep.subr.mxu0 %v410
    %1360 = vmatpush1.msra.mxu0 %v409
    %1361 = vmatprep.subr.mxu0 %v414
    %1362 = vmatpush1.msra.mxu0 %v413
    %1363 = vmatprep.subr.mxu0 %v418
    %1364 = vmatpush1.msra.mxu0 %v417
    %1365 = vmatprep.subr.mxu0 %v422
    %1366 = vmatpush1.msra.mxu0 %v421
    %1367 = vmatprep.subr.mxu0 %v426
    %1368 = vmatpush1.msra.mxu0 %v425
    %1369 = vmatprep.subr.mxu0 %v430
    %1370 = vmatpush1.msra.mxu0 %v429
    %1371 = vmatprep.subr.mxu0 %v434
    %1372 = vmatpush1.msra.mxu0 %v433
    %1373 = vmatprep.subr.mxu0 %v438
    %1374 = vmatpush1.msra.mxu0 %v437
    %1375 = vmatprep.subr.mxu0 %v442
    %1376 = vmatpush1.msra.mxu0 %v441
    %1377 = vmatprep.subr.mxu0 %v446
    %1378 = vmatpush1.msra.mxu0 %v445
    %1379 = vmatprep.subr.mxu0 %v450
    %1380 = vmatpush1.msra.mxu0 %v449
    %1381 = vmatprep.subr.mxu0 %v454
    %1382 = vmatpush1.msra.mxu0 %v453
    %1383 = vmatprep.subr.mxu0 %v458
    %1384 = vmatpush1.msra.mxu0 %v457
    %1385 = vmatprep.subr.mxu0 0.0
    %1386 = vmatpush1.msra.mxu0 0.0
    %1387 = vmatprep.subr.mxu0 0.0
    %1388 = vmatpush1.msra.mxu0 0.0
    %1389 = vmatprep.subr.mxu0 0.0
    %1390 = vmatpush1.msra.mxu0 0.0
    %1391 = vmatprep.subr.mxu0 0.0
    %1392 = vmatpush1.msra.mxu0 0.0
    %1393 = vmatprep.subr.mxu0 0.0
    %1394 = vmatpush1.msra.mxu0 0.0
    %1395 = vmatprep.subr.mxu0 0.0
    %1396 = vmatpush1.msra.mxu0 0.0
    %1397 = vmatprep.subr.mxu0 0.0
    %1398 = vmatpush1.msra.mxu0 0.0
    %1399 = vmatprep.subr.mxu0 0.0
    %1400 = vmatpush1.msra.mxu0 0.0
    %1401 = vmatprep.subr.mxu0 0.0
    %1402 = vmatpush1.msra.mxu0 0.0
    %1403 = vmatprep.subr.mxu0 0.0
    %1404 = vmatpush1.msra.mxu0 0.0
    %1405 = vmatprep.subr.mxu0 0.0
    %1406 = vmatpush1.msra.mxu0 0.0
    %1407 = vmatprep.subr.mxu0 0.0
    %1408 = vmatpush1.msra.mxu0 0.0
    %1409 = vmatprep.subr.mxu0 0.0
    %1410 = vmatpush1.msra.mxu0 0.0
    %1411 = vmatprep.subr.mxu0 0.0
    %1412 = vmatpush1.msra.mxu0 0.0
    %1413 = vmatprep.subr.mxu0 0.0
    %1414 = vmatpush1.msra.mxu0 0.0
    %1415 = vmatprep.subr.mxu0 0.0
    %1416 = vmatpush1.msra.mxu0 0.0
    %1417 = vmatprep.mubr.f32.mxu0 0.0
    %1418 = vmatmul.mubr.f32.gmra.mrb[0].mxu0 %v941
    %v1419 = vpop.f32.mrb[0].mxu0
    %v1420 = vadd.f32 0.0, %v1419
    %v1421 = vpop.f32.mrb[0].mxu0
    %v1422 = vadd.f32 0.0, %v1421
    %1423 = vdwg.mxu0
    %v1424 = vadd.f32 %v1278, %v1349
    %v1425 = vadd.f32 %v1279, %v1351
    %v1426 = vadd.f32 %v1280, %v1420
    %v1427 = vadd.f32 %v1281, %v1422
    %v1428 = vxor.u32 %v1424, 2147483648
    %v1429 = vmul.f32 %v1428, 1.442695
    %v1430 = vpow.pop %v1429
    %v1431 = vadd.f32 %v1430, 1.0
    %v1432 = vrcp.pop %v1431
    %v1433 = vmul.f32 1.0, %v1432
    %v1434 = vxor.u32 %v1425, 2147483648
    %v1435 = vmul.f32 %v1434, 1.442695
    %v1436 = vpow.pop %v1435
    %v1437 = vadd.f32 %v1436, 1.0
    %v1438 = vrcp.pop %v1437
    %v1439 = vmul.f32 1.0, %v1438
    %v1440 = vtanh.pop %v1426
    %v1441 = vxor.u32 %v1427, 2147483648
    %v1442 = vmul.f32 %v1441, 1.442695
    %v1443 = vpow.pop %v1442
    %v1444 = vadd.f32 %v1443, 1.0
    %v1445 = vrcp.pop %v1444
    %v1446 = vmul.f32 1.0, %v1445
    %v1447 = vmul.f32 %v1439, %v939
    %v1448 = vmul.f32 %v1433, %v1440
    %v1449 = vadd.f32 %v1447, %v1448
    %v1450 = vtanh.pop %v1449
    %v1451 = vmul.f32 %v1446, %v1450
    %1452 = vmatprep.subr.mxu0 %v460
    %1453 = vmatpush1.msra.mxu0 %v459
    %1454 = vmatprep.subr.mxu0 %v464
    %1455 = vmatpush1.msra.mxu0 %v463
    %1456 = vmatprep.subr.mxu0 %v468
    %1457 = vmatpush1.msra.mxu0 %v467
    %1458 = vmatprep.subr.mxu0 %v472
    %1459 = vmatpush1.msra.mxu0 %v471
    %1460 = vmatprep.subr.mxu0 %v476
    %1461 = vmatpush1.msra.mxu0 %v475
    %1462 = vmatprep.subr.mxu0 %v480
    %1463 = vmatpush1.msra.mxu0 %v479
    %1464 = vmatprep.subr.mxu0 %v484
    %1465 = vmatpush1.msra.mxu0 %v483
    %1466 = vmatprep.subr.mxu0 %v488
    %1467 = vmatpush1.msra.mxu0 %v487
    %1468 = vmatprep.subr.mxu0 %v492
    %1469 = vmatpush1.msra.mxu0 %v491
    %1470 = vmatprep.subr.mxu0 %v496
    %1471 = vmatpush1.msra.mxu0 %v495
    %1472 = vmatprep.subr.mxu0 %v500
    %1473 = vmatpush1.msra.mxu0 %v499
    %1474 = vmatprep.subr.mxu0 %v504
    %1475 = vmatpush1.msra.mxu0 %v503
    %1476 = vmatprep.subr.mxu0 %v508
    %1477 = vmatpush1.msra.mxu0 %v507
    %1478 = vmatprep.subr.mxu0 %v512
    %1479 = vmatpush1.msra.mxu0 %v511
    %1480 = vmatprep.subr.mxu0 %v516
    %1481 = vmatpush1.msra.mxu0 %v515
    %1482 = vmatprep.subr.mxu0 %v520
    %1483 = vmatpush1.msra.mxu0 %v519
    %1484 = vmatprep.subr.mxu0 0.0
    %1485 = vmatpush1.msra.mxu0 0.0
    %1486 = vmatprep.subr.mxu0 0.0
    %1487 = vmatpush1.msra.mxu0 0.0
    %1488 = vmatprep.subr.mxu0 0.0
    %1489 = vmatpush1.msra.mxu0 0.0
    %1490 = vmatprep.subr.mxu0 0.0
    %1491 = vmatpush1.msra.mxu0 0.0
    %1492 = vmatprep.subr.mxu0 0.0
    %1493 = vmatpush1.msra.mxu0 0.0
    %1494 = vmatprep.subr.mxu0 0.0
    %1495 = vmatpush1.msra.mxu0 0.0
    %1496 = vmatprep.subr.mxu0 0.0
    %1497 = vmatpush1.msra.mxu0 0.0
    %1498 = vmatprep.subr.mxu0 0.0
    %1499 = vmatpush1.msra.mxu0 0.0
    %1500 = vmatprep.subr.mxu0 0.0
    %1501 = vmatpush1.msra.mxu0 0.0
    %1502 = vmatprep.subr.mxu0 0.0
    %1503 = vmatpush1.msra.mxu0 0.0
    %1504 = vmatprep.subr.mxu0 0.0
    %1505 = vmatpush1.msra.mxu0 0.0
    %1506 = vmatprep.subr.mxu0 0.0
    %1507 = vmatpush1.msra.mxu0 0.0
    %1508 = vmatprep.subr.mxu0 0.0
    %1509 = vmatpush1.msra.mxu0 0.0
    %1510 = vmatprep.subr.mxu0 0.0
    %1511 = vmatpush1.msra.mxu0 0.0
    %1512 = vmatprep.subr.mxu0 0.0
    %1513 = vmatpush1.msra.mxu0 0.0
    %1514 = vmatprep.subr.mxu0 0.0
    %1515 = vmatpush1.msra.mxu0 0.0
    %1516 = vmatprep.mubr.f32.mxu0 0.0
    %1517 = vmatmul.mubr.f32.gmra.mrb[0].mxu0 %v941
    %v1518 = vpop.f32.mrb[0].mxu0
    %v1519 = vadd.f32 %v946, %v1518
    %v1520 = vpop.f32.mrb[0].mxu0
    %v1521 = vadd.f32 %v950, %v1520
    %1522 = vdwg.mxu0
    %1523 = vmatprep.subr.mxu0 %v462
    %1524 = vmatpush1.msra.mxu0 %v461
    %1525 = vmatprep.subr.mxu0 %v466
    %1526 = vmatpush1.msra.mxu0 %v465
    %1527 = vmatprep.subr.mxu0 %v470
    %1528 = vmatpush1.msra.mxu0 %v469
    %1529 = vmatprep.subr.mxu0 %v474
    %1530 = vmatpush1.msra.mxu0 %v473
    %1531 = vmatprep.subr.mxu0 %v478
    %1532 = vmatpush1.msra.mxu0 %v477
    %1533 = vmatprep.subr.mxu0 %v482
    %1534 = vmatpush1.msra.mxu0 %v481
    %1535 = vmatprep.subr.mxu0 %v486
    %1536 = vmatpush1.msra.mxu0 %v485
    %1537 = vmatprep.subr.mxu0 %v490
    %1538 = vmatpush1.msra.mxu0 %v489
    %1539 = vmatprep.subr.mxu0 %v494
    %1540 = vmatpush1.msra.mxu0 %v493
    %1541 = vmatprep.subr.mxu0 %v498
    %1542 = vmatpush1.msra.mxu0 %v497
    %1543 = vmatprep.subr.mxu0 %v502
    %1544 = vmatpush1.msra.mxu0 %v501
    %1545 = vmatprep.subr.mxu0 %v506
    %1546 = vmatpush1.msra.mxu0 %v505
    %1547 = vmatprep.subr.mxu0 %v510
    %1548 = vmatpush1.msra.mxu0 %v509
    %1549 = vmatprep.subr.mxu0 %v514
    %1550 = vmatpush1.msra.mxu0 %v513
    %1551 = vmatprep.subr.mxu0 %v518
    %1552 = vmatpush1.msra.mxu0 %v517
    %1553 = vmatprep.subr.mxu0 %v522
    %1554 = vmatpush1.msra.mxu0 %v521
    %1555 = vmatprep.subr.mxu0 0.0
    %1556 = vmatpush1.msra.mxu0 0.0
    %1557 = vmatprep.subr.mxu0 0.0
    %1558 = vmatpush1.msra.mxu0 0.0
    %1559 = vmatprep.subr.mxu0 0.0
    %1560 = vmatpush1.msra.mxu0 0.0
    %1561 = vmatprep.subr.mxu0 0.0
    %1562 = vmatpush1.msra.mxu0 0.0
    %1563 = vmatprep.subr.mxu0 0.0
    %1564 = vmatpush1.msra.mxu0 0.0
    %1565 = vmatprep.subr.mxu0 0.0
    %1566 = vmatpush1.msra.mxu0 0.0
    %1567 = vmatprep.subr.mxu0 0.0
    %1568 = vmatpush1.msra.mxu0 0.0
    %1569 = vmatprep.subr.mxu0 0.0
    %1570 = vmatpush1.msra.mxu0 0.0
    %1571 = vmatprep.subr.mxu0 0.0
    %1572 = vmatpush1.msra.mxu0 0.0
    %1573 = vmatprep.subr.mxu0 0.0
    %1574 = vmatpush1.msra.mxu0 0.0
    %1575 = vmatprep.subr.mxu0 0.0
    %1576 = vmatpush1.msra.mxu0 0.0
    %1577 = vmatprep.subr.mxu0 0.0
    %1578 = vmatpush1.msra.mxu0 0.0
    %1579 = vmatprep.subr.mxu0 0.0
    %1580 = vmatpush1.msra.mxu0 0.0
    %1581 = vmatprep.subr.mxu0 0.0
    %1582 = vmatpush1.msra.mxu0 0.0
    %1583 = vmatprep.subr.mxu0 0.0
    %1584 = vmatpush1.msra.mxu0 0.0
    %1585 = vmatprep.subr.mxu0 0.0
    %1586 = vmatpush1.msra.mxu0 0.0
    %1587 = vmatprep.mubr.f32.mxu0 0.0
    %1588 = vmatmul.mubr.f32.gmra.mrb[0].mxu0 %v941
    %v1589 = vpop.f32.mrb[0].mxu0
    %v1590 = vadd.f32 %v954, %v1589
    %v1591 = vpop.f32.mrb[0].mxu0
    %v1592 = vadd.f32 %v958, %v1591
    %1593 = vdwg.mxu0
    %1594 = vmatprep.subr.mxu0 %v524
    %1595 = vmatpush1.msra.mxu0 %v523
    %1596 = vmatprep.subr.mxu0 %v528
    %1597 = vmatpush1.msra.mxu0 %v527
    %1598 = vmatprep.subr.mxu0 %v532
    %1599 = vmatpush1.msra.mxu0 %v531
    %1600 = vmatprep.subr.mxu0 %v536
    %1601 = vmatpush1.msra.mxu0 %v535
    %1602 = vmatprep.subr.mxu0 %v540
    %1603 = vmatpush1.msra.mxu0 %v539
    %1604 = vmatprep.subr.mxu0 %v544
    %1605 = vmatpush1.msra.mxu0 %v543
    %1606 = vmatprep.subr.mxu0 %v548
    %1607 = vmatpush1.msra.mxu0 %v547
    %1608 = vmatprep.subr.mxu0 %v552
    %1609 = vmatpush1.msra.mxu0 %v551
    %1610 = vmatprep.subr.mxu0 %v556
    %1611 = vmatpush1.msra.mxu0 %v555
    %1612 = vmatprep.subr.mxu0 %v560
    %1613 = vmatpush1.msra.mxu0 %v559
    %1614 = vmatprep.subr.mxu0 %v564
    %1615 = vmatpush1.msra.mxu0 %v563
    %1616 = vmatprep.subr.mxu0 %v568
    %1617 = vmatpush1.msra.mxu0 %v567
    %1618 = vmatprep.subr.mxu0 %v572
    %1619 = vmatpush1.msra.mxu0 %v571
    %1620 = vmatprep.subr.mxu0 %v576
    %1621 = vmatpush1.msra.mxu0 %v575
    %1622 = vmatprep.subr.mxu0 %v580
    %1623 = vmatpush1.msra.mxu0 %v579
    %1624 = vmatprep.subr.mxu0 %v584
    %1625 = vmatpush1.msra.mxu0 %v583
    %1626 = vmatprep.subr.mxu0 0.0
    %1627 = vmatpush1.msra.mxu0 0.0
    %1628 = vmatprep.subr.mxu0 0.0
    %1629 = vmatpush1.msra.mxu0 0.0
    %1630 = vmatprep.subr.mxu0 0.0
    %1631 = vmatpush1.msra.mxu0 0.0
    %1632 = vmatprep.subr.mxu0 0.0
    %1633 = vmatpush1.msra.mxu0 0.0
    %1634 = vmatprep.subr.mxu0 0.0
    %1635 = vmatpush1.msra.mxu0 0.0
    %1636 = vmatprep.subr.mxu0 0.0
    %1637 = vmatpush1.msra.mxu0 0.0
    %1638 = vmatprep.subr.mxu0 0.0
    %1639 = vmatpush1.msra.mxu0 0.0
    %1640 = vmatprep.subr.mxu0 0.0
    %1641 = vmatpush1.msra.mxu0 0.0
    %1642 = vmatprep.subr.mxu0 0.0
    %1643 = vmatpush1.msra.mxu0 0.0
    %1644 = vmatprep.subr.mxu0 0.0
    %1645 = vmatpush1.msra.mxu0 0.0
    %1646 = vmatprep.subr.mxu0 0.0
    %1647 = vmatpush1.msra.mxu0 0.0
    %1648 = vmatprep.subr.mxu0 0.0
    %1649 = vmatpush1.msra.mxu0 0.0
    %1650 = vmatprep.subr.mxu0 0.0
    %1651 = vmatpush1.msra.mxu0 0.0
    %1652 = vmatprep.subr.mxu0 0.0
    %1653 = vmatpush1.msra.mxu0 0.0
    %1654 = vmatprep.subr.mxu0 0.0
    %1655 = vmatpush1.msra.mxu0 0.0
    %1656 = vmatprep.subr.mxu0 0.0
    %1657 = vmatpush1.msra.mxu0 0.0
    %1658 = vmatprep.mubr.f32.mxu0 0.0
    %1659 = vmatmul.mubr.f32.gmra.mrb[0].mxu0 %v1274
    %v1660 = vpop.f32.mrb[0].mxu0
    %v1661 = vadd.f32 0.0, %v1660
    %v1662 = vpop.f32.mrb[0].mxu0
    %v1663 = vadd.f32 0.0, %v1662
    %1664 = vdwg.mxu0
    %1665 = vmatprep.subr.mxu0 %v526
    %1666 = vmatpush1.msra.mxu0 %v525
    %1667 = vmatprep.subr.mxu0 %v530
    %1668 = vmatpush1.msra.mxu0 %v529
    %1669 = vmatprep.subr.mxu0 %v534
    %1670 = vmatpush1.msra.mxu0 %v533
    %1671 = vmatprep.subr.mxu0 %v538
    %1672 = vmatpush1.msra.mxu0 %v537
    %1673 = vmatprep.subr.mxu0 %v542
    %1674 = vmatpush1.msra.mxu0 %v541
    %1675 = vmatprep.subr.mxu0 %v546
    %1676 = vmatpush1.msra.mxu0 %v545
    %1677 = vmatprep.subr.mxu0 %v550
    %1678 = vmatpush1.msra.mxu0 %v549
    %1679 = vmatprep.subr.mxu0 %v554
    %1680 = vmatpush1.msra.mxu0 %v553
    %1681 = vmatprep.subr.mxu0 %v558
    %1682 = vmatpush1.msra.mxu0 %v557
    %1683 = vmatprep.subr.mxu0 %v562
    %1684 = vmatpush1.msra.mxu0 %v561
    %1685 = vmatprep.subr.mxu0 %v566
    %1686 = vmatpush1.msra.mxu0 %v565
    %1687 = vmatprep.subr.mxu0 %v570
    %1688 = vmatpush1.msra.mxu0 %v569
    %1689 = vmatprep.subr.mxu0 %v574
    %1690 = vmatpush1.msra.mxu0 %v573
    %1691 = vmatprep.subr.mxu0 %v578
    %1692 = vmatpush1.msra.mxu0 %v577
    %1693 = vmatprep.subr.mxu0 %v582
    %1694 = vmatpush1.msra.mxu0 %v581
    %1695 = vmatprep.subr.mxu0 %v586
    %1696 = vmatpush1.msra.mxu0 %v585
    %1697 = vmatprep.subr.mxu0 0.0
    %1698 = vmatpush1.msra.mxu0 0.0
    %1699 = vmatprep.subr.mxu0 0.0
    %1700 = vmatpush1.msra.mxu0 0.0
    %1701 = vmatprep.subr.mxu0 0.0
    %1702 = vmatpush1.msra.mxu0 0.0
    %1703 = vmatprep.subr.mxu0 0.0
    %1704 = vmatpush1.msra.mxu0 0.0
    %1705 = vmatprep.subr.mxu0 0.0
    %1706 = vmatpush1.msra.mxu0 0.0
    %1707 = vmatprep.subr.mxu0 0.0
    %1708 = vmatpush1.msra.mxu0 0.0
    %1709 = vmatprep.subr.mxu0 0.0
    %1710 = vmatpush1.msra.mxu0 0.0
    %1711 = vmatprep.subr.mxu0 0.0
    %1712 = vmatpush1.msra.mxu0 0.0
    %1713 = vmatprep.subr.mxu0 0.0
    %1714 = vmatpush1.msra.mxu0 0.0
    %1715 = vmatprep.subr.mxu0 0.0
    %1716 = vmatpush1.msra.mxu0 0.0
    %1717 = vmatprep.subr.mxu0 0.0
    %1718 = vmatpush1.msra.mxu0 0.0
    %1719 = vmatprep.subr.mxu0 0.0
    %1720 = vmatpush1.msra.mxu0 0.0
    %1721 = vmatprep.subr.mxu0 0.0
    %1722 = vmatpush1.msra.mxu0 0.0
    %1723 = vmatprep.subr.mxu0 0.0
    %1724 = vmatpush1.msra.mxu0 0.0
    %1725 = vmatprep.subr.mxu0 0.0
    %1726 = vmatpush1.msra.mxu0 0.0
    %1727 = vmatprep.subr.mxu0 0.0
    %1728 = vmatpush1.msra.mxu0 0.0
    %1729 = vmatprep.mubr.f32.mxu0 0.0
    %1730 = vmatmul.mubr.f32.gmra.mrb[0].mxu0 %v1274
    %v1731 = vpop.f32.mrb[0].mxu0
    %v1732 = vadd.f32 0.0, %v1731
    %v1733 = vpop.f32.mrb[0].mxu0
    %v1734 = vadd.f32 0.0, %v1733
    %1735 = vdwg.mxu0
    %v1736 = vadd.f32 %v1519, %v1661
    %v1737 = vadd.f32 %v1521, %v1663
    %v1738 = vadd.f32 %v1590, %v1732
    %v1739 = vadd.f32 %v1592, %v1734
    %v1740 = vxor.u32 %v1736, 2147483648
    %v1741 = vmul.f32 %v1740, 1.442695
    %v1742 = vpow.pop %v1741
    %v1743 = vadd.f32 %v1742, 1.0
    %v1744 = vrcp.pop %v1743
    %v1745 = vmul.f32 1.0, %v1744
    %v1746 = vxor.u32 %v1737, 2147483648
    %v1747 = vmul.f32 %v1746, 1.442695
    %v1748 = vpow.pop %v1747
    %v1749 = vadd.f32 %v1748, 1.0
    %v1750 = vrcp.pop %v1749
    %v1751 = vmul.f32 1.0, %v1750
    %v1752 = vtanh.pop %v1738
    %v1753 = vxor.u32 %v1739, 2147483648
    %v1754 = vmul.f32 %v1753, 1.442695
    %v1755 = vpow.pop %v1754
    %v1756 = vadd.f32 %v1755, 1.0
    %v1757 = vrcp.pop %v1756
    %v1758 = vmul.f32 1.0, %v1757
    %v1759 = vmul.f32 %v1751, %v1272
    %v1760 = vmul.f32 %v1745, %v1752
    %v1761 = vadd.f32 %v1759, %v1760
    %v1762 = vtanh.pop %v1761
    %v1763 = vmul.f32 %v1758, %v1762
    %s1764 = smul.u32 3, 4
    %s1765 = smul.addr %s1764, 8
    %s1766 = scalar_lea.vmem [#allocation2], %s1765
    %v1767 = vld [vmem:[%s1766] sm:$0xff]
    %v1768 = vld [vmem:[%s1766 + $0x8] sm:$0xff]
    %v1769 = vld [vmem:[%s1766 + $0x10] sm:$0xff]
    %v1770 = vld [vmem:[%s1766 + $0x18] sm:$0xff]
    %1771 = vmatprep.subr.mxu0 %v396
    %1772 = vmatpush1.msra.mxu0 %v395
    %1773 = vmatprep.subr.mxu0 %v400
    %1774 = vmatpush1.msra.mxu0 %v399
    %1775 = vmatprep.subr.mxu0 %v404
    %1776 = vmatpush1.msra.mxu0 %v403
    %1777 = vmatprep.subr.mxu0 %v408
    %1778 = vmatpush1.msra.mxu0 %v407
    %1779 = vmatprep.subr.mxu0 %v412
    %1780 = vmatpush1.msra.mxu0 %v411
    %1781 = vmatprep.subr.mxu0 %v416
    %1782 = vmatpush1.msra.mxu0 %v415
    %1783 = vmatprep.subr.mxu0 %v420
    %1784 = vmatpush1.msra.mxu0 %v419
    %1785 = vmatprep.subr.mxu0 %v424
    %1786 = vmatpush1.msra.mxu0 %v423
    %1787 = vmatprep.subr.mxu0 %v428
    %1788 = vmatpush1.msra.mxu0 %v427
    %1789 = vmatprep.subr.mxu0 %v432
    %1790 = vmatpush1.msra.mxu0 %v431
    %1791 = vmatprep.subr.mxu0 %v436
    %1792 = vmatpush1.msra.mxu0 %v435
    %1793 = vmatprep.subr.mxu0 %v440
    %1794 = vmatpush1.msra.mxu0 %v439
    %1795 = vmatprep.subr.mxu0 %v444
    %1796 = vmatpush1.msra.mxu0 %v443
    %1797 = vmatprep.subr.mxu0 %v448
    %1798 = vmatpush1.msra.mxu0 %v447
    %1799 = vmatprep.subr.mxu0 %v452
    %1800 = vmatpush1.msra.mxu0 %v451
    %1801 = vmatprep.subr.mxu0 %v456
    %1802 = vmatpush1.msra.mxu0 %v455
    %1803 = vmatprep.subr.mxu0 0.0
    %1804 = vmatpush1.msra.mxu0 0.0
    %1805 = vmatprep.subr.mxu0 0.0
    %1806 = vmatpush1.msra.mxu0 0.0
    %1807 = vmatprep.subr.mxu0 0.0
    %1808 = vmatpush1.msra.mxu0 0.0
    %1809 = vmatprep.subr.mxu0 0.0
    %1810 = vmatpush1.msra.mxu0 0.0
    %1811 = vmatprep.subr.mxu0 0.0
    %1812 = vmatpush1.msra.mxu0 0.0
    %1813 = vmatprep.subr.mxu0 0.0
    %1814 = vmatpush1.msra.mxu0 0.0
    %1815 = vmatprep.subr.mxu0 0.0
    %1816 = vmatpush1.msra.mxu0 0.0
    %1817 = vmatprep.subr.mxu0 0.0
    %1818 = vmatpush1.msra.mxu0 0.0
    %1819 = vmatprep.subr.mxu0 0.0
    %1820 = vmatpush1.msra.mxu0 0.0
    %1821 = vmatprep.subr.mxu0 0.0
    %1822 = vmatpush1.msra.mxu0 0.0
    %1823 = vmatprep.subr.mxu0 0.0
    %1824 = vmatpush1.msra.mxu0 0.0
    %1825 = vmatprep.subr.mxu0 0.0
    %1826 = vmatpush1.msra.mxu0 0.0
    %1827 = vmatprep.subr.mxu0 0.0
    %1828 = vmatpush1.msra.mxu0 0.0
    %1829 = vmatprep.subr.mxu0 0.0
    %1830 = vmatpush1.msra.mxu0 0.0
    %1831 = vmatprep.subr.mxu0 0.0
    %1832 = vmatpush1.msra.mxu0 0.0
    %1833 = vmatprep.subr.mxu0 0.0
    %1834 = vmatpush1.msra.mxu0 0.0
    %1835 = vmatprep.mubr.f32.mxu0 0.0
    %1836 = vmatmul.mubr.f32.gmra.mrb[0].mxu0 %v1451
    %v1837 = vpop.f32.mrb[0].mxu0
    %v1838 = vadd.f32 0.0, %v1837
    %v1839 = vpop.f32.mrb[0].mxu0
    %v1840 = vadd.f32 0.0, %v1839
    %1841 = vdwg.mxu0
    %1842 = vmatprep.subr.mxu0 %v398
    %1843 = vmatpush1.msra.mxu0 %v397
    %1844 = vmatprep.subr.mxu0 %v402
    %1845 = vmatpush1.msra.mxu0 %v401
    %1846 = vmatprep.subr.mxu0 %v406
    %1847 = vmatpush1.msra.mxu0 %v405
    %1848 = vmatprep.subr.mxu0 %v410
    %1849 = vmatpush1.msra.mxu0 %v409
    %1850 = vmatprep.subr.mxu0 %v414
    %1851 = vmatpush1.msra.mxu0 %v413
    %1852 = vmatprep.subr.mxu0 %v418
    %1853 = vmatpush1.msra.mxu0 %v417
    %1854 = vmatprep.subr.mxu0 %v422
    %1855 = vmatpush1.msra.mxu0 %v421
    %1856 = vmatprep.subr.mxu0 %v426
    %1857 = vmatpush1.msra.mxu0 %v425
    %1858 = vmatprep.subr.mxu0 %v430
    %1859 = vmatpush1.msra.mxu0 %v429
    %1860 = vmatprep.subr.mxu0 %v434
    %1861 = vmatpush1.msra.mxu0 %v433
    %1862 = vmatprep.subr.mxu0 %v438
    %1863 = vmatpush1.msra.mxu0 %v437
    %1864 = vmatprep.subr.mxu0 %v442
    %1865 = vmatpush1.msra.mxu0 %v441
    %1866 = vmatprep.subr.mxu0 %v446
    %1867 = vmatpush1.msra.mxu0 %v445
    %1868 = vmatprep.subr.mxu0 %v450
    %1869 = vmatpush1.msra.mxu0 %v449
    %1870 = vmatprep.subr.mxu0 %v454
    %1871 = vmatpush1.msra.mxu0 %v453
    %1872 = vmatprep.subr.mxu0 %v458
    %1873 = vmatpush1.msra.mxu0 %v457
    %1874 = vmatprep.subr.mxu0 0.0
    %1875 = vmatpush1.msra.mxu0 0.0
    %1876 = vmatprep.subr.mxu0 0.0
    %1877 = vmatpush1.msra.mxu0 0.0
    %1878 = vmatprep.subr.mxu0 0.0
    %1879 = vmatpush1.msra.mxu0 0.0
    %1880 = vmatprep.subr.mxu0 0.0
    %1881 = vmatpush1.msra.mxu0 0.0
    %1882 = vmatprep.subr.mxu0 0.0
    %1883 = vmatpush1.msra.mxu0 0.0
    %1884 = vmatprep.subr.mxu0 0.0
    %1885 = vmatpush1.msra.mxu0 0.0
    %1886 = vmatprep.subr.mxu0 0.0
    %1887 = vmatpush1.msra.mxu0 0.0
    %1888 = vmatprep.subr.mxu0 0.0
    %1889 = vmatpush1.msra.mxu0 0.0
    %1890 = vmatprep.subr.mxu0 0.0
    %1891 = vmatpush1.msra.mxu0 0.0
    %1892 = vmatprep.subr.mxu0 0.0
    %1893 = vmatpush1.msra.mxu0 0.0
    %1894 = vmatprep.subr.mxu0 0.0
    %1895 = vmatpush1.msra.mxu0 0.0
    %1896 = vmatprep.subr.mxu0 0.0
    %1897 = vmatpush1.msra.mxu0 0.0
    %1898 = vmatprep.subr.mxu0 0.0
    %1899 = vmatpush1.msra.mxu0 0.0
    %1900 = vmatprep.subr.mxu0 0.0
    %1901 = vmatpush1.msra.mxu0 0.0
    %1902 = vmatprep.subr.mxu0 0.0
    %1903 = vmatpush1.msra.mxu0 0.0
    %1904 = vmatprep.subr.mxu0 0.0
    %1905 = vmatpush1.msra.mxu0 0.0
    %1906 = vmatprep.mubr.f32.mxu0 0.0
    %1907 = vmatmul.mubr.f32.gmra.mrb[0].mxu0 %v1451
    %v1908 = vpop.f32.mrb[0].mxu0
    %v1909 = vadd.f32 0.0, %v1908
    %v1910 = vpop.f32.mrb[0].mxu0
    %v1911 = vadd.f32 0.0, %v1910
    %1912 = vdwg.mxu0
    %v1913 = vadd.f32 %v1767, %v1838
    %v1914 = vadd.f32 %v1768, %v1840
    %v1915 = vadd.f32 %v1769, %v1909
    %v1916 = vadd.f32 %v1770, %v1911
    %v1917 = vxor.u32 %v1913, 2147483648
    %v1918 = vmul.f32 %v1917, 1.442695
    %v1919 = vpow.pop %v1918
    %v1920 = vadd.f32 %v1919, 1.0
    %v1921 = vrcp.pop %v1920
    %v1922 = vmul.f32 1.0, %v1921
    %v1923 = vxor.u32 %v1914, 2147483648
    %v1924 = vmul.f32 %v1923, 1.442695
    %v1925 = vpow.pop %v1924
    %v1926 = vadd.f32 %v1925, 1.0
    %v1927 = vrcp.pop %v1926
    %v1928 = vmul.f32 1.0, %v1927
    %v1929 = vtanh.pop %v1915
    %v1930 = vxor.u32 %v1916, 2147483648
    %v1931 = vmul.f32 %v1930, 1.442695
    %v1932 = vpow.pop %v1931
    %v1933 = vadd.f32 %v1932, 1.0
    %v1934 = vrcp.pop %v1933
    %v1935 = vmul.f32 1.0, %v1934
    %v1936 = vmul.f32 %v1928, %v1449
    %v1937 = vmul.f32 %v1922, %v1929
    %v1938 = vadd.f32 %v1936, %v1937
    %v1939 = vtanh.pop %v1938
    %v1940 = vmul.f32 %v1935, %v1939
    %1941 = vmatprep.subr.mxu0 %v460
    %1942 = vmatpush1.msra.mxu0 %v459
    %1943 = vmatprep.subr.mxu0 %v464
    %1944 = vmatpush1.msra.mxu0 %v463
    %1945 = vmatprep.subr.mxu0 %v468
    %1946 = vmatpush1.msra.mxu0 %v467
    %1947 = vmatprep.subr.mxu0 %v472
    %1948 = vmatpush1.msra.mxu0 %v471
    %1949 = vmatprep.subr.mxu0 %v476
    %1950 = vmatpush1.msra.mxu0 %v475
    %1951 = vmatprep.subr.mxu0 %v480
    %1952 = vmatpush1.msra.mxu0 %v479
    %1953 = vmatprep.subr.mxu0 %v484
    %1954 = vmatpush1.msra.mxu0 %v483
    %1955 = vmatprep.subr.mxu0 %v488
    %1956 = vmatpush1.msra.mxu0 %v487
    %1957 = vmatprep.subr.mxu0 %v492
    %1958 = vmatpush1.msra.mxu0 %v491
    %1959 = vmatprep.subr.mxu0 %v496
    %1960 = vmatpush1.msra.mxu0 %v495
    %1961 = vmatprep.subr.mxu0 %v500
    %1962 = vmatpush1.msra.mxu0 %v499
    %1963 = vmatprep.subr.mxu0 %v504
    %1964 = vmatpush1.msra.mxu0 %v503
    %1965 = vmatprep.subr.mxu0 %v508
    %1966 = vmatpush1.msra.mxu0 %v507
    %1967 = vmatprep.subr.mxu0 %v512
    %1968 = vmatpush1.msra.mxu0 %v511
    %1969 = vmatprep.subr.mxu0 %v516
    %1970 = vmatpush1.msra.mxu0 %v515
    %1971 = vmatprep.subr.mxu0 %v520
    %1972 = vmatpush1.msra.mxu0 %v519
    %1973 = vmatprep.subr.mxu0 0.0
    %1974 = vmatpush1.msra.mxu0 0.0
    %1975 = vmatprep.subr.mxu0 0.0
    %1976 = vmatpush1.msra.mxu0 0.0
    %1977 = vmatprep.subr.mxu0 0.0
    %1978 = vmatpush1.msra.mxu0 0.0
    %1979 = vmatprep.subr.mxu0 0.0
    %1980 = vmatpush1.msra.mxu0 0.0
    %1981 = vmatprep.subr.mxu0 0.0
    %1982 = vmatpush1.msra.mxu0 0.0
    %1983 = vmatprep.subr.mxu0 0.0
    %1984 = vmatpush1.msra.mxu0 0.0
    %1985 = vmatprep.subr.mxu0 0.0
    %1986 = vmatpush1.msra.mxu0 0.0
    %1987 = vmatprep.subr.mxu0 0.0
    %1988 = vmatpush1.msra.mxu0 0.0
    %1989 = vmatprep.subr.mxu0 0.0
    %1990 = vmatpush1.msra.mxu0 0.0
    %1991 = vmatprep.subr.mxu0 0.0
    %1992 = vmatpush1.msra.mxu0 0.0
    %1993 = vmatprep.subr.mxu0 0.0
    %1994 = vmatpush1.msra.mxu0 0.0
    %1995 = vmatprep.subr.mxu0 0.0
    %1996 = vmatpush1.msra.mxu0 0.0
    %1997 = vmatprep.subr.mxu0 0.0
    %1998 = vmatpush1.msra.mxu0 0.0
    %1999 = vmatprep.subr.mxu0 0.0
    %2000 = vmatpush1.msra.mxu0 0.0
    %2001 = vmatprep.subr.mxu0 0.0
    %2002 = vmatpush1.msra.mxu0 0.0
    %2003 = vmatprep.subr.mxu0 0.0
    %2004 = vmatpush1.msra.mxu0 0.0
    %2005 = vmatprep.mubr.f32.mxu0 0.0
    %2006 = vmatmul.mubr.f32.gmra.mrb[0].mxu0 %v1451
    %v2007 = vpop.f32.mrb[0].mxu0
    %v2008 = vadd.f32 %v946, %v2007
    %v2009 = vpop.f32.mrb[0].mxu0
    %v2010 = vadd.f32 %v950, %v2009
    %2011 = vdwg.mxu0
    %2012 = vmatprep.subr.mxu0 %v462
    %2013 = vmatpush1.msra.mxu0 %v461
    %2014 = vmatprep.subr.mxu0 %v466
    %2015 = vmatpush1.msra.mxu0 %v465
    %2016 = vmatprep.subr.mxu0 %v470
    %2017 = vmatpush1.msra.mxu0 %v469
    %2018 = vmatprep.subr.mxu0 %v474
    %2019 = vmatpush1.msra.mxu0 %v473
    %2020 = vmatprep.subr.mxu0 %v478
    %2021 = vmatpush1.msra.mxu0 %v477
    %2022 = vmatprep.subr.mxu0 %v482
    %2023 = vmatpush1.msra.mxu0 %v481
    %2024 = vmatprep.subr.mxu0 %v486
    %2025 = vmatpush1.msra.mxu0 %v485
    %2026 = vmatprep.subr.mxu0 %v490
    %2027 = vmatpush1.msra.mxu0 %v489
    %2028 = vmatprep.subr.mxu0 %v494
    %2029 = vmatpush1.msra.mxu0 %v493
    %2030 = vmatprep.subr.mxu0 %v498
    %2031 = vmatpush1.msra.mxu0 %v497
    %2032 = vmatprep.subr.mxu0 %v502
    %2033 = vmatpush1.msra.mxu0 %v501
    %2034 = vmatprep.subr.mxu0 %v506
    %2035 = vmatpush1.msra.mxu0 %v505
    %2036 = vmatprep.subr.mxu0 %v510
    %2037 = vmatpush1.msra.mxu0 %v509
    %2038 = vmatprep.subr.mxu0 %v514
    %2039 = vmatpush1.msra.mxu0 %v513
    %2040 = vmatprep.subr.mxu0 %v518
    %2041 = vmatpush1.msra.mxu0 %v517
    %2042 = vmatprep.subr.mxu0 %v522
    %2043 = vmatpush1.msra.mxu0 %v521
    %2044 = vmatprep.subr.mxu0 0.0
    %2045 = vmatpush1.msra.mxu0 0.0
    %2046 = vmatprep.subr.mxu0 0.0
    %2047 = vmatpush1.msra.mxu0 0.0
    %2048 = vmatprep.subr.mxu0 0.0
    %2049 = vmatpush1.msra.mxu0 0.0
    %2050 = vmatprep.subr.mxu0 0.0
    %2051 = vmatpush1.msra.mxu0 0.0
    %2052 = vmatprep.subr.mxu0 0.0
    %2053 = vmatpush1.msra.mxu0 0.0
    %2054 = vmatprep.subr.mxu0 0.0
    %2055 = vmatpush1.msra.mxu0 0.0
    %2056 = vmatprep.subr.mxu0 0.0
    %2057 = vmatpush1.msra.mxu0 0.0
    %2058 = vmatprep.subr.mxu0 0.0
    %2059 = vmatpush1.msra.mxu0 0.0
    %2060 = vmatprep.subr.mxu0 0.0
    %2061 = vmatpush1.msra.mxu0 0.0
    %2062 = vmatprep.subr.mxu0 0.0
    %2063 = vmatpush1.msra.mxu0 0.0
    %2064 = vmatprep.subr.mxu0 0.0
    %2065 = vmatpush1.msra.mxu0 0.0
    %2066 = vmatprep.subr.mxu0 0.0
    %2067 = vmatpush1.msra.mxu0 0.0
    %2068 = vmatprep.subr.mxu0 0.0
    %2069 = vmatpush1.msra.mxu0 0.0
    %2070 = vmatprep.subr.mxu0 0.0
    %2071 = vmatpush1.msra.mxu0 0.0
    %2072 = vmatprep.subr.mxu0 0.0
    %2073 = vmatpush1.msra.mxu0 0.0
    %2074 = vmatprep.subr.mxu0 0.0
    %2075 = vmatpush1.msra.mxu0 0.0
    %2076 = vmatprep.mubr.f32.mxu0 0.0
    %2077 = vmatmul.mubr.f32.gmra.mrb[0].mxu0 %v1451
    %v2078 = vpop.f32.mrb[0].mxu0
    %v2079 = vadd.f32 %v954, %v2078
    %v2080 = vpop.f32.mrb[0].mxu0
    %v2081 = vadd.f32 %v958, %v2080
    %2082 = vdwg.mxu0
    %2083 = vmatprep.subr.mxu0 %v524
    %2084 = vmatpush1.msra.mxu0 %v523
    %2085 = vmatprep.subr.mxu0 %v528
    %2086 = vmatpush1.msra.mxu0 %v527
    %2087 = vmatprep.subr.mxu0 %v532
    %2088 = vmatpush1.msra.mxu0 %v531
    %2089 = vmatprep.subr.mxu0 %v536
    %2090 = vmatpush1.msra.mxu0 %v535
    %2091 = vmatprep.subr.mxu0 %v540
    %2092 = vmatpush1.msra.mxu0 %v539
    %2093 = vmatprep.subr.mxu0 %v544
    %2094 = vmatpush1.msra.mxu0 %v543
    %2095 = vmatprep.subr.mxu0 %v548
    %2096 = vmatpush1.msra.mxu0 %v547
    %2097 = vmatprep.subr.mxu0 %v552
    %2098 = vmatpush1.msra.mxu0 %v551
    %2099 = vmatprep.subr.mxu0 %v556
    %2100 = vmatpush1.msra.mxu0 %v555
    %2101 = vmatprep.subr.mxu0 %v560
    %2102 = vmatpush1.msra.mxu0 %v559
    %2103 = vmatprep.subr.mxu0 %v564
    %2104 = vmatpush1.msra.mxu0 %v563
    %2105 = vmatprep.subr.mxu0 %v568
    %2106 = vmatpush1.msra.mxu0 %v567
    %2107 = vmatprep.subr.mxu0 %v572
    %2108 = vmatpush1.msra.mxu0 %v571
    %2109 = vmatprep.subr.mxu0 %v576
    %2110 = vmatpush1.msra.mxu0 %v575
    %2111 = vmatprep.subr.mxu0 %v580
    %2112 = vmatpush1.msra.mxu0 %v579
    %2113 = vmatprep.subr.mxu0 %v584
    %2114 = vmatpush1.msra.mxu0 %v583
    %2115 = vmatprep.subr.mxu0 0.0
    %2116 = vmatpush1.msra.mxu0 0.0
    %2117 = vmatprep.subr.mxu0 0.0
    %2118 = vmatpush1.msra.mxu0 0.0
    %2119 = vmatprep.subr.mxu0 0.0
    %2120 = vmatpush1.msra.mxu0 0.0
    %2121 = vmatprep.subr.mxu0 0.0
    %2122 = vmatpush1.msra.mxu0 0.0
    %2123 = vmatprep.subr.mxu0 0.0
    %2124 = vmatpush1.msra.mxu0 0.0
    %2125 = vmatprep.subr.mxu0 0.0
    %2126 = vmatpush1.msra.mxu0 0.0
    %2127 = vmatprep.subr.mxu0 0.0
    %2128 = vmatpush1.msra.mxu0 0.0
    %2129 = vmatprep.subr.mxu0 0.0
    %2130 = vmatpush1.msra.mxu0 0.0
    %2131 = vmatprep.subr.mxu0 0.0
    %2132 = vmatpush1.msra.mxu0 0.0
    %2133 = vmatprep.subr.mxu0 0.0
    %2134 = vmatpush1.msra.mxu0 0.0
    %2135 = vmatprep.subr.mxu0 0.0
    %2136 = vmatpush1.msra.mxu0 0.0
    %2137 = vmatprep.subr.mxu0 0.0
    %2138 = vmatpush1.msra.mxu0 0.0
    %2139 = vmatprep.subr.mxu0 0.0
    %2140 = vmatpush1.msra.mxu0 0.0
    %2141 = vmatprep.subr.mxu0 0.0
    %2142 = vmatpush1.msra.mxu0 0.0
    %2143 = vmatprep.subr.mxu0 0.0
    %2144 = vmatpush1.msra.mxu0 0.0
    %2145 = vmatprep.subr.mxu0 0.0
    %2146 = vmatpush1.msra.mxu0 0.0
    %2147 = vmatprep.mubr.f32.mxu0 0.0
    %2148 = vmatmul.mubr.f32.gmra.mrb[0].mxu0 %v1763
    %v2149 = vpop.f32.mrb[0].mxu0
    %v2150 = vadd.f32 0.0, %v2149
    %v2151 = vpop.f32.mrb[0].mxu0
    %v2152 = vadd.f32 0.0, %v2151
    %2153 = vdwg.mxu0
    %2154 = vmatprep.subr.mxu0 %v526
    %2155 = vmatpush1.msra.mxu0 %v525
    %2156 = vmatprep.subr.mxu0 %v530
    %2157 = vmatpush1.msra.mxu0 %v529
    %2158 = vmatprep.subr.mxu0 %v534
    %2159 = vmatpush1.msra.mxu0 %v533
    %2160 = vmatprep.subr.mxu0 %v538
    %2161 = vmatpush1.msra.mxu0 %v537
    %2162 = vmatprep.subr.mxu0 %v542
    %2163 = vmatpush1.msra.mxu0 %v541
    %2164 = vmatprep.subr.mxu0 %v546
    %2165 = vmatpush1.msra.mxu0 %v545
    %2166 = vmatprep.subr.mxu0 %v550
    %2167 = vmatpush1.msra.mxu0 %v549
    %2168 = vmatprep.subr.mxu0 %v554
    %2169 = vmatpush1.msra.mxu0 %v553
    %2170 = vmatprep.subr.mxu0 %v558
    %2171 = vmatpush1.msra.mxu0 %v557
    %2172 = vmatprep.subr.mxu0 %v562
    %2173 = vmatpush1.msra.mxu0 %v561
    %2174 = vmatprep.subr.mxu0 %v566
    %2175 = vmatpush1.msra.mxu0 %v565
    %2176 = vmatprep.subr.mxu0 %v570
    %2177 = vmatpush1.msra.mxu0 %v569
    %2178 = vmatprep.subr.mxu0 %v574
    %2179 = vmatpush1.msra.mxu0 %v573
    %2180 = vmatprep.subr.mxu0 %v578
    %2181 = vmatpush1.msra.mxu0 %v577
    %2182 = vmatprep.subr.mxu0 %v582
    %2183 = vmatpush1.msra.mxu0 %v581
    %2184 = vmatprep.subr.mxu0 %v586
    %2185 = vmatpush1.msra.mxu0 %v585
    %2186 = vmatprep.subr.mxu0 0.0
    %2187 = vmatpush1.msra.mxu0 0.0
    %2188 = vmatprep.subr.mxu0 0.0
    %2189 = vmatpush1.msra.mxu0 0.0
    %2190 = vmatprep.subr.mxu0 0.0
    %2191 = vmatpush1.msra.mxu0 0.0
    %2192 = vmatprep.subr.mxu0 0.0
    %2193 = vmatpush1.msra.mxu0 0.0
    %2194 = vmatprep.subr.mxu0 0.0
    %2195 = vmatpush1.msra.mxu0 0.0
    %2196 = vmatprep.subr.mxu0 0.0
    %2197 = vmatpush1.msra.mxu0 0.0
    %2198 = vmatprep.subr.mxu0 0.0
    %2199 = vmatpush1.msra.mxu0 0.0
    %2200 = vmatprep.subr.mxu0 0.0
    %2201 = vmatpush1.msra.mxu0 0.0
    %2202 = vmatprep.subr.mxu0 0.0
    %2203 = vmatpush1.msra.mxu0 0.0
    %2204 = vmatprep.subr.mxu0 0.0
    %2205 = vmatpush1.msra.mxu0 0.0
    %2206 = vmatprep.subr.mxu0 0.0
    %2207 = vmatpush1.msra.mxu0 0.0
    %2208 = vmatprep.subr.mxu0 0.0
    %2209 = vmatpush1.msra.mxu0 0.0
    %2210 = vmatprep.subr.mxu0 0.0
    %2211 = vmatpush1.msra.mxu0 0.0
    %2212 = vmatprep.subr.mxu0 0.0
    %2213 = vmatpush1.msra.mxu0 0.0
    %2214 = vmatprep.subr.mxu0 0.0
    %2215 = vmatpush1.msra.mxu0 0.0
    %2216 = vmatprep.subr.mxu0 0.0
    %2217 = vmatpush1.msra.mxu0 0.0
    %2218 = vmatprep.mubr.f32.mxu0 0.0
    %2219 = vmatmul.mubr.f32.gmra.mrb[0].mxu0 %v1763
    %v2220 = vpop.f32.mrb[0].mxu0
    %v2221 = vadd.f32 0.0, %v2220
    %v2222 = vpop.f32.mrb[0].mxu0
    %v2223 = vadd.f32 0.0, %v2222
    %2224 = vdwg.mxu0
    %v2225 = vadd.f32 %v2008, %v2150
    %v2226 = vadd.f32 %v2010, %v2152
    %v2227 = vadd.f32 %v2079, %v2221
    %v2228 = vadd.f32 %v2081, %v2223
    %v2229 = vxor.u32 %v2225, 2147483648
    %v2230 = vmul.f32 %v2229, 1.442695
    %v2231 = vpow.pop %v2230
    %v2232 = vadd.f32 %v2231, 1.0
    %v2233 = vrcp.pop %v2232
    %v2234 = vmul.f32 1.0, %v2233
    %v2235 = vxor.u32 %v2226, 2147483648
    %v2236 = vmul.f32 %v2235, 1.442695
    %v2237 = vpow.pop %v2236
    %v2238 = vadd.f32 %v2237, 1.0
    %v2239 = vrcp.pop %v2238
    %v2240 = vmul.f32 1.0, %v2239
    %v2241 = vtanh.pop %v2227
    %v2242 = vxor.u32 %v2228, 2147483648
    %v2243 = vmul.f32 %v2242, 1.442695
    %v2244 = vpow.pop %v2243
    %v2245 = vadd.f32 %v2244, 1.0
    %v2246 = vrcp.pop %v2245
    %v2247 = vmul.f32 1.0, %v2246
    %v2248 = vmul.f32 %v2240, %v1761
    %v2249 = vmul.f32 %v2234, %v2241
    %v2250 = vadd.f32 %v2248, %v2249
    %v2251 = vtanh.pop %v2250
    %v2252 = vmul.f32 %v2247, %v2251
    %s2253 = smul.u32 4, 4
    %s2254 = smul.addr %s2253, 8
    %s2255 = scalar_lea.vmem [#allocation2], %s2254
    %v2256 = vld [vmem:[%s2255] sm:$0xff]
    %v2257 = vld [vmem:[%s2255 + $0x8] sm:$0xff]
    %v2258 = vld [vmem:[%s2255 + $0x10] sm:$0xff]
    %v2259 = vld [vmem:[%s2255 + $0x18] sm:$0xff]
    %2260 = vmatprep.subr.mxu0 %v396
    %2261 = vmatpush1.msra.mxu0 %v395
    %2262 = vmatprep.subr.mxu0 %v400
    %2263 = vmatpush1.msra.mxu0 %v399
    %2264 = vmatprep.subr.mxu0 %v404
    %2265 = vmatpush1.msra.mxu0 %v403
    %2266 = vmatprep.subr.mxu0 %v408
    %2267 = vmatpush1.msra.mxu0 %v407
    %2268 = vmatprep.subr.mxu0 %v412
    %2269 = vmatpush1.msra.mxu0 %v411
    %2270 = vmatprep.subr.mxu0 %v416
    %2271 = vmatpush1.msra.mxu0 %v415
    %2272 = vmatprep.subr.mxu0 %v420
    %2273 = vmatpush1.msra.mxu0 %v419
    %2274 = vmatprep.subr.mxu0 %v424
    %2275 = vmatpush1.msra.mxu0 %v423
    %2276 = vmatprep.subr.mxu0 %v428
    %2277 = vmatpush1.msra.mxu0 %v427
    %2278 = vmatprep.subr.mxu0 %v432
    %2279 = vmatpush1.msra.mxu0 %v431
    %2280 = vmatprep.subr.mxu0 %v436
    %2281 = vmatpush1.msra.mxu0 %v435
    %2282 = vmatprep.subr.mxu0 %v440
    %2283 = vmatpush1.msra.mxu0 %v439
    %2284 = vmatprep.subr.mxu0 %v444
    %2285 = vmatpush1.msra.mxu0 %v443
    %2286 = vmatprep.subr.mxu0 %v448
    %2287 = vmatpush1.msra.mxu0 %v447
    %2288 = vmatprep.subr.mxu0 %v452
    %2289 = vmatpush1.msra.mxu0 %v451
    %2290 = vmatprep.subr.mxu0 %v456
    %2291 = vmatpush1.msra.mxu0 %v455
    %2292 = vmatprep.subr.mxu0 0.0
    %2293 = vmatpush1.msra.mxu0 0.0
    %2294 = vmatprep.subr.mxu0 0.0
    %2295 = vmatpush1.msra.mxu0 0.0
    %2296 = vmatprep.subr.mxu0 0.0
    %2297 = vmatpush1.msra.mxu0 0.0
    %2298 = vmatprep.subr.mxu0 0.0
    %2299 = vmatpush1.msra.mxu0 0.0
    %2300 = vmatprep.subr.mxu0 0.0
    %2301 = vmatpush1.msra.mxu0 0.0
    %2302 = vmatprep.subr.mxu0 0.0
    %2303 = vmatpush1.msra.mxu0 0.0
    %2304 = vmatprep.subr.mxu0 0.0
    %2305 = vmatpush1.msra.mxu0 0.0
    %2306 = vmatprep.subr.mxu0 0.0
    %2307 = vmatpush1.msra.mxu0 0.0
    %2308 = vmatprep.subr.mxu0 0.0
    %2309 = vmatpush1.msra.mxu0 0.0
    %2310 = vmatprep.subr.mxu0 0.0
    %2311 = vmatpush1.msra.mxu0 0.0
    %2312 = vmatprep.subr.mxu0 0.0
    %2313 = vmatpush1.msra.mxu0 0.0
    %2314 = vmatprep.subr.mxu0 0.0
    %2315 = vmatpush1.msra.mxu0 0.0
    %2316 = vmatprep.subr.mxu0 0.0
    %2317 = vmatpush1.msra.mxu0 0.0
    %2318 = vmatprep.subr.mxu0 0.0
    %2319 = vmatpush1.msra.mxu0 0.0
    %2320 = vmatprep.subr.mxu0 0.0
    %2321 = vmatpush1.msra.mxu0 0.0
    %2322 = vmatprep.subr.mxu0 0.0
    %2323 = vmatpush1.msra.mxu0 0.0
    %2324 = vmatprep.mubr.f32.mxu0 0.0
    %2325 = vmatmul.mubr.f32.gmra.mrb[0].mxu0 %v1940
    %v2326 = vpop.f32.mrb[0].mxu0
    %v2327 = vadd.f32 0.0, %v2326
    %v2328 = vpop.f32.mrb[0].mxu0
    %v2329 = vadd.f32 0.0, %v2328
    %2330 = vdwg.mxu0
    %2331 = vmatprep.subr.mxu0 %v398
    %2332 = vmatpush1.msra.mxu0 %v397
    %2333 = vmatprep.subr.mxu0 %v402
    %2334 = vmatpush1.msra.mxu0 %v401
    %2335 = vmatprep.subr.mxu0 %v406
    %2336 = vmatpush1.msra.mxu0 %v405
    %2337 = vmatprep.subr.mxu0 %v410
    %2338 = vmatpush1.msra.mxu0 %v409
    %2339 = vmatprep.subr.mxu0 %v414
    %2340 = vmatpush1.msra.mxu0 %v413
    %2341 = vmatprep.subr.mxu0 %v418
    %2342 = vmatpush1.msra.mxu0 %v417
    %2343 = vmatprep.subr.mxu0 %v422
    %2344 = vmatpush1.msra.mxu0 %v421
    %2345 = vmatprep.subr.mxu0 %v426
    %2346 = vmatpush1.msra.mxu0 %v425
    %2347 = vmatprep.subr.mxu0 %v430
    %2348 = vmatpush1.msra.mxu0 %v429
    %2349 = vmatprep.subr.mxu0 %v434
    %2350 = vmatpush1.msra.mxu0 %v433
    %2351 = vmatprep.subr.mxu0 %v438
    %2352 = vmatpush1.msra.mxu0 %v437
    %2353 = vmatprep.subr.mxu0 %v442
    %2354 = vmatpush1.msra.mxu0 %v441
    %2355 = vmatprep.subr.mxu0 %v446
    %2356 = vmatpush1.msra.mxu0 %v445
    %2357 = vmatprep.subr.mxu0 %v450
    %2358 = vmatpush1.msra.mxu0 %v449
    %2359 = vmatprep.subr.mxu0 %v454
    %2360 = vmatpush1.msra.mxu0 %v453
    %2361 = vmatprep.subr.mxu0 %v458
    %2362 = vmatpush1.msra.mxu0 %v457
    %2363 = vmatprep.subr.mxu0 0.0
    %2364 = vmatpush1.msra.mxu0 0.0
    %2365 = vmatprep.subr.mxu0 0.0
    %2366 = vmatpush1.msra.mxu0 0.0
    %2367 = vmatprep.subr.mxu0 0.0
    %2368 = vmatpush1.msra.mxu0 0.0
    %2369 = vmatprep.subr.mxu0 0.0
    %2370 = vmatpush1.msra.mxu0 0.0
    %2371 = vmatprep.subr.mxu0 0.0
    %2372 = vmatpush1.msra.mxu0 0.0
    %2373 = vmatprep.subr.mxu0 0.0
    %2374 = vmatpush1.msra.mxu0 0.0
    %2375 = vmatprep.subr.mxu0 0.0
    %2376 = vmatpush1.msra.mxu0 0.0
    %2377 = vmatprep.subr.mxu0 0.0
    %2378 = vmatpush1.msra.mxu0 0.0
    %2379 = vmatprep.subr.mxu0 0.0
    %2380 = vmatpush1.msra.mxu0 0.0
    %2381 = vmatprep.subr.mxu0 0.0
    %2382 = vmatpush1.msra.mxu0 0.0
    %2383 = vmatprep.subr.mxu0 0.0
    %2384 = vmatpush1.msra.mxu0 0.0
    %2385 = vmatprep.subr.mxu0 0.0
    %2386 = vmatpush1.msra.mxu0 0.0
    %2387 = vmatprep.subr.mxu0 0.0
    %2388 = vmatpush1.msra.mxu0 0.0
    %2389 = vmatprep.subr.mxu0 0.0
    %2390 = vmatpush1.msra.mxu0 0.0
    %2391 = vmatprep.subr.mxu0 0.0
    %2392 = vmatpush1.msra.mxu0 0.0
    %2393 = vmatprep.subr.mxu0 0.0
    %2394 = vmatpush1.msra.mxu0 0.0
    %2395 = vmatprep.mubr.f32.mxu0 0.0
    %2396 = vmatmul.mubr.f32.gmra.mrb[0].mxu0 %v1940
    %v2397 = vpop.f32.mrb[0].mxu0
    %v2398 = vadd.f32 0.0, %v2397
    %v2399 = vpop.f32.mrb[0].mxu0
    %v2400 = vadd.f32 0.0, %v2399
    %2401 = vdwg.mxu0
    %v2402 = vadd.f32 %v2256, %v2327
    %v2403 = vadd.f32 %v2257, %v2329
    %v2404 = vadd.f32 %v2258, %v2398
    %v2405 = vadd.f32 %v2259, %v2400
    %v2406 = vxor.u32 %v2402, 2147483648
    %v2407 = vmul.f32 %v2406, 1.442695
    %v2408 = vpow.pop %v2407
    %v2409 = vadd.f32 %v2408, 1.0
    %v2410 = vrcp.pop %v2409
    %v2411 = vmul.f32 1.0, %v2410
    %v2412 = vxor.u32 %v2403, 2147483648
    %v2413 = vmul.f32 %v2412, 1.442695
    %v2414 = vpow.pop %v2413
    %v2415 = vadd.f32 %v2414, 1.0
    %v2416 = vrcp.pop %v2415
    %v2417 = vmul.f32 1.0, %v2416
    %v2418 = vtanh.pop %v2404
    %v2419 = vxor.u32 %v2405, 2147483648
    %v2420 = vmul.f32 %v2419, 1.442695
    %v2421 = vpow.pop %v2420
    %v2422 = vadd.f32 %v2421, 1.0
    %v2423 = vrcp.pop %v2422
    %v2424 = vmul.f32 1.0, %v2423
    %v2425 = vmul.f32 %v2417, %v1938
    %v2426 = vmul.f32 %v2411, %v2418
    %v2427 = vadd.f32 %v2425, %v2426
    %v2428 = vtanh.pop %v2427
    %v2429 = vmul.f32 %v2424, %v2428
    %2430 = vmatprep.subr.mxu0 %v460
    %2431 = vmatpush1.msra.mxu0 %v459
    %2432 = vmatprep.subr.mxu0 %v464
    %2433 = vmatpush1.msra.mxu0 %v463
    %2434 = vmatprep.subr.mxu0 %v468
    %2435 = vmatpush1.msra.mxu0 %v467
    %2436 = vmatprep.subr.mxu0 %v472
    %2437 = vmatpush1.msra.mxu0 %v471
    %2438 = vmatprep.subr.mxu0 %v476
    %2439 = vmatpush1.msra.mxu0 %v475
    %2440 = vmatprep.subr.mxu0 %v480
    %2441 = vmatpush1.msra.mxu0 %v479
    %2442 = vmatprep.subr.mxu0 %v484
    %2443 = vmatpush1.msra.mxu0 %v483
    %2444 = vmatprep.subr.mxu0 %v488
    %2445 = vmatpush1.msra.mxu0 %v487
    %2446 = vmatprep.subr.mxu0 %v492
    %2447 = vmatpush1.msra.mxu0 %v491
    %2448 = vmatprep.subr.mxu0 %v496
    %2449 = vmatpush1.msra.mxu0 %v495
    %2450 = vmatprep.subr.mxu0 %v500
    %2451 = vmatpush1.msra.mxu0 %v499
    %2452 = vmatprep.subr.mxu0 %v504
    %2453 = vmatpush1.msra.mxu0 %v503
    %2454 = vmatprep.subr.mxu0 %v508
    %2455 = vmatpush1.msra.mxu0 %v507
    %2456 = vmatprep.subr.mxu0 %v512
    %2457 = vmatpush1.msra.mxu0 %v511
    %2458 = vmatprep.subr.mxu0 %v516
    %2459 = vmatpush1.msra.mxu0 %v515
    %2460 = vmatprep.subr.mxu0 %v520
    %2461 = vmatpush1.msra.mxu0 %v519
    %2462 = vmatprep.subr.mxu0 0.0
    %2463 = vmatpush1.msra.mxu0 0.0
    %2464 = vmatprep.subr.mxu0 0.0
    %2465 = vmatpush1.msra.mxu0 0.0
    %2466 = vmatprep.subr.mxu0 0.0
    %2467 = vmatpush1.msra.mxu0 0.0
    %2468 = vmatprep.subr.mxu0 0.0
    %2469 = vmatpush1.msra.mxu0 0.0
    %2470 = vmatprep.subr.mxu0 0.0
    %2471 = vmatpush1.msra.mxu0 0.0
    %2472 = vmatprep.subr.mxu0 0.0
    %2473 = vmatpush1.msra.mxu0 0.0
    %2474 = vmatprep.subr.mxu0 0.0
    %2475 = vmatpush1.msra.mxu0 0.0
    %2476 = vmatprep.subr.mxu0 0.0
    %2477 = vmatpush1.msra.mxu0 0.0
    %2478 = vmatprep.subr.mxu0 0.0
    %2479 = vmatpush1.msra.mxu0 0.0
    %2480 = vmatprep.subr.mxu0 0.0
    %2481 = vmatpush1.msra.mxu0 0.0
    %2482 = vmatprep.subr.mxu0 0.0
    %2483 = vmatpush1.msra.mxu0 0.0
    %2484 = vmatprep.subr.mxu0 0.0
    %2485 = vmatpush1.msra.mxu0 0.0
    %2486 = vmatprep.subr.mxu0 0.0
    %2487 = vmatpush1.msra.mxu0 0.0
    %2488 = vmatprep.subr.mxu0 0.0
    %2489 = vmatpush1.msra.mxu0 0.0
    %2490 = vmatprep.subr.mxu0 0.0
    %2491 = vmatpush1.msra.mxu0 0.0
    %2492 = vmatprep.subr.mxu0 0.0
    %2493 = vmatpush1.msra.mxu0 0.0
    %2494 = vmatprep.mubr.f32.mxu0 0.0
    %2495 = vmatmul.mubr.f32.gmra.mrb[0].mxu0 %v1940
    %v2496 = vpop.f32.mrb[0].mxu0
    %v2497 = vadd.f32 %v946, %v2496
    %v2498 = vpop.f32.mrb[0].mxu0
    %v2499 = vadd.f32 %v950, %v2498
    %2500 = vdwg.mxu0
    %2501 = vmatprep.subr.mxu0 %v462
    %2502 = vmatpush1.msra.mxu0 %v461
    %2503 = vmatprep.subr.mxu0 %v466
    %2504 = vmatpush1.msra.mxu0 %v465
    %2505 = vmatprep.subr.mxu0 %v470
    %2506 = vmatpush1.msra.mxu0 %v469
    %2507 = vmatprep.subr.mxu0 %v474
    %2508 = vmatpush1.msra.mxu0 %v473
    %2509 = vmatprep.subr.mxu0 %v478
    %2510 = vmatpush1.msra.mxu0 %v477
    %2511 = vmatprep.subr.mxu0 %v482
    %2512 = vmatpush1.msra.mxu0 %v481
    %2513 = vmatprep.subr.mxu0 %v486
    %2514 = vmatpush1.msra.mxu0 %v485
    %2515 = vmatprep.subr.mxu0 %v490
    %2516 = vmatpush1.msra.mxu0 %v489
    %2517 = vmatprep.subr.mxu0 %v494
    %2518 = vmatpush1.msra.mxu0 %v493
    %2519 = vmatprep.subr.mxu0 %v498
    %2520 = vmatpush1.msra.mxu0 %v497
    %2521 = vmatprep.subr.mxu0 %v502
    %2522 = vmatpush1.msra.mxu0 %v501
    %2523 = vmatprep.subr.mxu0 %v506
    %2524 = vmatpush1.msra.mxu0 %v505
    %2525 = vmatprep.subr.mxu0 %v510
    %2526 = vmatpush1.msra.mxu0 %v509
    %2527 = vmatprep.subr.mxu0 %v514
    %2528 = vmatpush1.msra.mxu0 %v513
    %2529 = vmatprep.subr.mxu0 %v518
    %2530 = vmatpush1.msra.mxu0 %v517
    %2531 = vmatprep.subr.mxu0 %v522
    %2532 = vmatpush1.msra.mxu0 %v521
    %2533 = vmatprep.subr.mxu0 0.0
    %2534 = vmatpush1.msra.mxu0 0.0
    %2535 = vmatprep.subr.mxu0 0.0
    %2536 = vmatpush1.msra.mxu0 0.0
    %2537 = vmatprep.subr.mxu0 0.0
    %2538 = vmatpush1.msra.mxu0 0.0
    %2539 = vmatprep.subr.mxu0 0.0
    %2540 = vmatpush1.msra.mxu0 0.0
    %2541 = vmatprep.subr.mxu0 0.0
    %2542 = vmatpush1.msra.mxu0 0.0
    %2543 = vmatprep.subr.mxu0 0.0
    %2544 = vmatpush1.msra.mxu0 0.0
    %2545 = vmatprep.subr.mxu0 0.0
    %2546 = vmatpush1.msra.mxu0 0.0
    %2547 = vmatprep.subr.mxu0 0.0
    %2548 = vmatpush1.msra.mxu0 0.0
    %2549 = vmatprep.subr.mxu0 0.0
    %2550 = vmatpush1.msra.mxu0 0.0
    %2551 = vmatprep.subr.mxu0 0.0
    %2552 = vmatpush1.msra.mxu0 0.0
    %2553 = vmatprep.subr.mxu0 0.0
    %2554 = vmatpush1.msra.mxu0 0.0
    %2555 = vmatprep.subr.mxu0 0.0
    %2556 = vmatpush1.msra.mxu0 0.0
    %2557 = vmatprep.subr.mxu0 0.0
    %2558 = vmatpush1.msra.mxu0 0.0
    %2559 = vmatprep.subr.mxu0 0.0
    %2560 = vmatpush1.msra.mxu0 0.0
    %2561 = vmatprep.subr.mxu0 0.0
    %2562 = vmatpush1.msra.mxu0 0.0
    %2563 = vmatprep.subr.mxu0 0.0
    %2564 = vmatpush1.msra.mxu0 0.0
    %2565 = vmatprep.mubr.f32.mxu0 0.0
    %2566 = vmatmul.mubr.f32.gmra.mrb[0].mxu0 %v1940
    %v2567 = vpop.f32.mrb[0].mxu0
    %v2568 = vadd.f32 %v954, %v2567
    %v2569 = vpop.f32.mrb[0].mxu0
    %v2570 = vadd.f32 %v958, %v2569
    %2571 = vdwg.mxu0
    %2572 = vmatprep.subr.mxu0 %v524
    %2573 = vmatpush1.msra.mxu0 %v523
    %2574 = vmatprep.subr.mxu0 %v528
    %2575 = vmatpush1.msra.mxu0 %v527
    %2576 = vmatprep.subr.mxu0 %v532
    %2577 = vmatpush1.msra.mxu0 %v531
    %2578 = vmatprep.subr.mxu0 %v536
    %2579 = vmatpush1.msra.mxu0 %v535
    %2580 = vmatprep.subr.mxu0 %v540
    %2581 = vmatpush1.msra.mxu0 %v539
    %2582 = vmatprep.subr.mxu0 %v544
    %2583 = vmatpush1.msra.mxu0 %v543
    %2584 = vmatprep.subr.mxu0 %v548
    %2585 = vmatpush1.msra.mxu0 %v547
    %2586 = vmatprep.subr.mxu0 %v552
    %2587 = vmatpush1.msra.mxu0 %v551
    %2588 = vmatprep.subr.mxu0 %v556
    %2589 = vmatpush1.msra.mxu0 %v555
    %2590 = vmatprep.subr.mxu0 %v560
    %2591 = vmatpush1.msra.mxu0 %v559
    %2592 = vmatprep.subr.mxu0 %v564
    %2593 = vmatpush1.msra.mxu0 %v563
    %2594 = vmatprep.subr.mxu0 %v568
    %2595 = vmatpush1.msra.mxu0 %v567
    %2596 = vmatprep.subr.mxu0 %v572
    %2597 = vmatpush1.msra.mxu0 %v571
    %2598 = vmatprep.subr.mxu0 %v576
    %2599 = vmatpush1.msra.mxu0 %v575
    %2600 = vmatprep.subr.mxu0 %v580
    %2601 = vmatpush1.msra.mxu0 %v579
    %2602 = vmatprep.subr.mxu0 %v584
    %2603 = vmatpush1.msra.mxu0 %v583
    %2604 = vmatprep.subr.mxu0 0.0
    %2605 = vmatpush1.msra.mxu0 0.0
    %2606 = vmatprep.subr.mxu0 0.0
    %2607 = vmatpush1.msra.mxu0 0.0
    %2608 = vmatprep.subr.mxu0 0.0
    %2609 = vmatpush1.msra.mxu0 0.0
    %2610 = vmatprep.subr.mxu0 0.0
    %2611 = vmatpush1.msra.mxu0 0.0
    %2612 = vmatprep.subr.mxu0 0.0
    %2613 = vmatpush1.msra.mxu0 0.0
    %2614 = vmatprep.subr.mxu0 0.0
    %2615 = vmatpush1.msra.mxu0 0.0
    %2616 = vmatprep.subr.mxu0 0.0
    %2617 = vmatpush1.msra.mxu0 0.0
    %2618 = vmatprep.subr.mxu0 0.0
    %2619 = vmatpush1.msra.mxu0 0.0
    %2620 = vmatprep.subr.mxu0 0.0
    %2621 = vmatpush1.msra.mxu0 0.0
    %2622 = vmatprep.subr.mxu0 0.0
    %2623 = vmatpush1.msra.mxu0 0.0
    %2624 = vmatprep.subr.mxu0 0.0
    %2625 = vmatpush1.msra.mxu0 0.0
    %2626 = vmatprep.subr.mxu0 0.0
    %2627 = vmatpush1.msra.mxu0 0.0
    %2628 = vmatprep.subr.mxu0 0.0
    %2629 = vmatpush1.msra.mxu0 0.0
    %2630 = vmatprep.subr.mxu0 0.0
    %2631 = vmatpush1.msra.mxu0 0.0
    %2632 = vmatprep.subr.mxu0 0.0
    %2633 = vmatpush1.msra.mxu0 0.0
    %2634 = vmatprep.subr.mxu0 0.0
    %2635 = vmatpush1.msra.mxu0 0.0
    %2636 = vmatprep.mubr.f32.mxu0 0.0
    %2637 = vmatmul.mubr.f32.gmra.mrb[0].mxu0 %v2252
    %v2638 = vpop.f32.mrb[0].mxu0
    %v2639 = vadd.f32 0.0, %v2638
    %v2640 = vpop.f32.mrb[0].mxu0
    %v2641 = vadd.f32 0.0, %v2640
    %2642 = vdwg.mxu0
    %2643 = vmatprep.subr.mxu0 %v526
    %2644 = vmatpush1.msra.mxu0 %v525
    %2645 = vmatprep.subr.mxu0 %v530
    %2646 = vmatpush1.msra.mxu0 %v529
    %2647 = vmatprep.subr.mxu0 %v534
    %2648 = vmatpush1.msra.mxu0 %v533
    %2649 = vmatprep.subr.mxu0 %v538
    %2650 = vmatpush1.msra.mxu0 %v537
    %2651 = vmatprep.subr.mxu0 %v542
    %2652 = vmatpush1.msra.mxu0 %v541
    %2653 = vmatprep.subr.mxu0 %v546
    %2654 = vmatpush1.msra.mxu0 %v545
    %2655 = vmatprep.subr.mxu0 %v550
    %2656 = vmatpush1.msra.mxu0 %v549
    %2657 = vmatprep.subr.mxu0 %v554
    %2658 = vmatpush1.msra.mxu0 %v553
    %2659 = vmatprep.subr.mxu0 %v558
    %2660 = vmatpush1.msra.mxu0 %v557
    %2661 = vmatprep.subr.mxu0 %v562
    %2662 = vmatpush1.msra.mxu0 %v561
    %2663 = vmatprep.subr.mxu0 %v566
    %2664 = vmatpush1.msra.mxu0 %v565
    %2665 = vmatprep.subr.mxu0 %v570
    %2666 = vmatpush1.msra.mxu0 %v569
    %2667 = vmatprep.subr.mxu0 %v574
    %2668 = vmatpush1.msra.mxu0 %v573
    %2669 = vmatprep.subr.mxu0 %v578
    %2670 = vmatpush1.msra.mxu0 %v577
    %2671 = vmatprep.subr.mxu0 %v582
    %2672 = vmatpush1.msra.mxu0 %v581
    %2673 = vmatprep.subr.mxu0 %v586
    %2674 = vmatpush1.msra.mxu0 %v585
    %2675 = vmatprep.subr.mxu0 0.0
    %2676 = vmatpush1.msra.mxu0 0.0
    %2677 = vmatprep.subr.mxu0 0.0
    %2678 = vmatpush1.msra.mxu0 0.0
    %2679 = vmatprep.subr.mxu0 0.0
    %2680 = vmatpush1.msra.mxu0 0.0
    %2681 = vmatprep.subr.mxu0 0.0
    %2682 = vmatpush1.msra.mxu0 0.0
    %2683 = vmatprep.subr.mxu0 0.0
    %2684 = vmatpush1.msra.mxu0 0.0
    %2685 = vmatprep.subr.mxu0 0.0
    %2686 = vmatpush1.msra.mxu0 0.0
    %2687 = vmatprep.subr.mxu0 0.0
    %2688 = vmatpush1.msra.mxu0 0.0
    %2689 = vmatprep.subr.mxu0 0.0
    %2690 = vmatpush1.msra.mxu0 0.0
    %2691 = vmatprep.subr.mxu0 0.0
    %2692 = vmatpush1.msra.mxu0 0.0
    %2693 = vmatprep.subr.mxu0 0.0
    %2694 = vmatpush1.msra.mxu0 0.0
    %2695 = vmatprep.subr.mxu0 0.0
    %2696 = vmatpush1.msra.mxu0 0.0
    %2697 = vmatprep.subr.mxu0 0.0
    %2698 = vmatpush1.msra.mxu0 0.0
    %2699 = vmatprep.subr.mxu0 0.0
    %2700 = vmatpush1.msra.mxu0 0.0
    %2701 = vmatprep.subr.mxu0 0.0
    %2702 = vmatpush1.msra.mxu0 0.0
    %2703 = vmatprep.subr.mxu0 0.0
    %2704 = vmatpush1.msra.mxu0 0.0
    %2705 = vmatprep.subr.mxu0 0.0
    %2706 = vmatpush1.msra.mxu0 0.0
    %2707 = vmatprep.mubr.f32.mxu0 0.0
    %2708 = vmatmul.mubr.f32.gmra.mrb[0].mxu0 %v2252
    %v2709 = vpop.f32.mrb[0].mxu0
    %v2710 = vadd.f32 0.0, %v2709
    %v2711 = vpop.f32.mrb[0].mxu0
    %v2712 = vadd.f32 0.0, %v2711
    %2713 = vdwg.mxu0
    %v2714 = vadd.f32 %v2497, %v2639
    %v2715 = vadd.f32 %v2499, %v2641
    %v2716 = vadd.f32 %v2568, %v2710
    %v2717 = vadd.f32 %v2570, %v2712
    %v2718 = vxor.u32 %v2714, 2147483648
    %v2719 = vmul.f32 %v2718, 1.442695
    %v2720 = vpow.pop %v2719
    %v2721 = vadd.f32 %v2720, 1.0
    %v2722 = vrcp.pop %v2721
    %v2723 = vmul.f32 1.0, %v2722
    %v2724 = vxor.u32 %v2715, 2147483648
    %v2725 = vmul.f32 %v2724, 1.442695
    %v2726 = vpow.pop %v2725
    %v2727 = vadd.f32 %v2726, 1.0
    %v2728 = vrcp.pop %v2727
    %v2729 = vmul.f32 1.0, %v2728
    %v2730 = vtanh.pop %v2716
    %v2731 = vxor.u32 %v2717, 2147483648
    %v2732 = vmul.f32 %v2731, 1.442695
    %v2733 = vpow.pop %v2732
    %v2734 = vadd.f32 %v2733, 1.0
    %v2735 = vrcp.pop %v2734
    %v2736 = vmul.f32 1.0, %v2735
    %v2737 = vmul.f32 %v2729, %v2250
    %v2738 = vmul.f32 %v2723, %v2730
    %v2739 = vadd.f32 %v2737, %v2738
    %v2740 = vtanh.pop %v2739
    %v2741 = vmul.f32 %v2736, %v2740
    %s2742 = smul.u32 5, 4
    %s2743 = smul.addr %s2742, 8
    %s2744 = scalar_lea.vmem [#allocation2], %s2743
    %v2745 = vld [vmem:[%s2744] sm:$0xff]
    %v2746 = vld [vmem:[%s2744 + $0x8] sm:$0xff]
    %v2747 = vld [vmem:[%s2744 + $0x10] sm:$0xff]
    %v2748 = vld [vmem:[%s2744 + $0x18] sm:$0xff]
    %2749 = vmatprep.subr.mxu0 %v396
    %2750 = vmatpush1.msra.mxu0 %v395
    %2751 = vmatprep.subr.mxu0 %v400
    %2752 = vmatpush1.msra.mxu0 %v399
    %2753 = vmatprep.subr.mxu0 %v404
    %2754 = vmatpush1.msra.mxu0 %v403
    %2755 = vmatprep.subr.mxu0 %v408
    %2756 = vmatpush1.msra.mxu0 %v407
    %2757 = vmatprep.subr.mxu0 %v412
    %2758 = vmatpush1.msra.mxu0 %v411
    %2759 = vmatprep.subr.mxu0 %v416
    %2760 = vmatpush1.msra.mxu0 %v415
    %2761 = vmatprep.subr.mxu0 %v420
    %2762 = vmatpush1.msra.mxu0 %v419
    %2763 = vmatprep.subr.mxu0 %v424
    %2764 = vmatpush1.msra.mxu0 %v423
    %2765 = vmatprep.subr.mxu0 %v428
    %2766 = vmatpush1.msra.mxu0 %v427
    %2767 = vmatprep.subr.mxu0 %v432
    %2768 = vmatpush1.msra.mxu0 %v431
    %2769 = vmatprep.subr.mxu0 %v436
    %2770 = vmatpush1.msra.mxu0 %v435
    %2771 = vmatprep.subr.mxu0 %v440
    %2772 = vmatpush1.msra.mxu0 %v439
    %2773 = vmatprep.subr.mxu0 %v444
    %2774 = vmatpush1.msra.mxu0 %v443
    %2775 = vmatprep.subr.mxu0 %v448
    %2776 = vmatpush1.msra.mxu0 %v447
    %2777 = vmatprep.subr.mxu0 %v452
    %2778 = vmatpush1.msra.mxu0 %v451
    %2779 = vmatprep.subr.mxu0 %v456
    %2780 = vmatpush1.msra.mxu0 %v455
    %2781 = vmatprep.subr.mxu0 0.0
    %2782 = vmatpush1.msra.mxu0 0.0
    %2783 = vmatprep.subr.mxu0 0.0
    %2784 = vmatpush1.msra.mxu0 0.0
    %2785 = vmatprep.subr.mxu0 0.0
    %2786 = vmatpush1.msra.mxu0 0.0
    %2787 = vmatprep.subr.mxu0 0.0
    %2788 = vmatpush1.msra.mxu0 0.0
    %2789 = vmatprep.subr.mxu0 0.0
    %2790 = vmatpush1.msra.mxu0 0.0
    %2791 = vmatprep.subr.mxu0 0.0
    %2792 = vmatpush1.msra.mxu0 0.0
    %2793 = vmatprep.subr.mxu0 0.0
    %2794 = vmatpush1.msra.mxu0 0.0
    %2795 = vmatprep.subr.mxu0 0.0
    %2796 = vmatpush1.msra.mxu0 0.0
    %2797 = vmatprep.subr.mxu0 0.0
    %2798 = vmatpush1.msra.mxu0 0.0
    %2799 = vmatprep.subr.mxu0 0.0
    %2800 = vmatpush1.msra.mxu0 0.0
    %2801 = vmatprep.subr.mxu0 0.0
    %2802 = vmatpush1.msra.mxu0 0.0
    %2803 = vmatprep.subr.mxu0 0.0
    %2804 = vmatpush1.msra.mxu0 0.0
    %2805 = vmatprep.subr.mxu0 0.0
    %2806 = vmatpush1.msra.mxu0 0.0
    %2807 = vmatprep.subr.mxu0 0.0
    %2808 = vmatpush1.msra.mxu0 0.0
    %2809 = vmatprep.subr.mxu0 0.0
    %2810 = vmatpush1.msra.mxu0 0.0
    %2811 = vmatprep.subr.mxu0 0.0
    %2812 = vmatpush1.msra.mxu0 0.0
    %2813 = vmatprep.mubr.f32.mxu0 0.0
    %2814 = vmatmul.mubr.f32.gmra.mrb[0].mxu0 %v2429
    %v2815 = vpop.f32.mrb[0].mxu0
    %v2816 = vadd.f32 0.0, %v2815
    %v2817 = vpop.f32.mrb[0].mxu0
    %v2818 = vadd.f32 0.0, %v2817
    %2819 = vdwg.mxu0
    %2820 = vmatprep.subr.mxu0 %v398
    %2821 = vmatpush1.msra.mxu0 %v397
    %2822 = vmatprep.subr.mxu0 %v402
    %2823 = vmatpush1.msra.mxu0 %v401
    %2824 = vmatprep.subr.mxu0 %v406
    %2825 = vmatpush1.msra.mxu0 %v405
    %2826 = vmatprep.subr.mxu0 %v410
    %2827 = vmatpush1.msra.mxu0 %v409
    %2828 = vmatprep.subr.mxu0 %v414
    %2829 = vmatpush1.msra.mxu0 %v413
    %2830 = vmatprep.subr.mxu0 %v418
    %2831 = vmatpush1.msra.mxu0 %v417
    %2832 = vmatprep.subr.mxu0 %v422
    %2833 = vmatpush1.msra.mxu0 %v421
    %2834 = vmatprep.subr.mxu0 %v426
    %2835 = vmatpush1.msra.mxu0 %v425
    %2836 = vmatprep.subr.mxu0 %v430
    %2837 = vmatpush1.msra.mxu0 %v429
    %2838 = vmatprep.subr.mxu0 %v434
    %2839 = vmatpush1.msra.mxu0 %v433
    %2840 = vmatprep.subr.mxu0 %v438
    %2841 = vmatpush1.msra.mxu0 %v437
    %2842 = vmatprep.subr.mxu0 %v442
    %2843 = vmatpush1.msra.mxu0 %v441
    %2844 = vmatprep.subr.mxu0 %v446
    %2845 = vmatpush1.msra.mxu0 %v445
    %2846 = vmatprep.subr.mxu0 %v450
    %2847 = vmatpush1.msra.mxu0 %v449
    %2848 = vmatprep.subr.mxu0 %v454
    %2849 = vmatpush1.msra.mxu0 %v453
    %2850 = vmatprep.subr.mxu0 %v458
    %2851 = vmatpush1.msra.mxu0 %v457
    %2852 = vmatprep.subr.mxu0 0.0
    %2853 = vmatpush1.msra.mxu0 0.0
    %2854 = vmatprep.subr.mxu0 0.0
    %2855 = vmatpush1.msra.mxu0 0.0
    %2856 = vmatprep.subr.mxu0 0.0
    %2857 = vmatpush1.msra.mxu0 0.0
    %2858 = vmatprep.subr.mxu0 0.0
    %2859 = vmatpush1.msra.mxu0 0.0
    %2860 = vmatprep.subr.mxu0 0.0
    %2861 = vmatpush1.msra.mxu0 0.0
    %2862 = vmatprep.subr.mxu0 0.0
    %2863 = vmatpush1.msra.mxu0 0.0
    %2864 = vmatprep.subr.mxu0 0.0
    %2865 = vmatpush1.msra.mxu0 0.0
    %2866 = vmatprep.subr.mxu0 0.0
    %2867 = vmatpush1.msra.mxu0 0.0
    %2868 = vmatprep.subr.mxu0 0.0
    %2869 = vmatpush1.msra.mxu0 0.0
    %2870 = vmatprep.subr.mxu0 0.0
    %2871 = vmatpush1.msra.mxu0 0.0
    %2872 = vmatprep.subr.mxu0 0.0
    %2873 = vmatpush1.msra.mxu0 0.0
    %2874 = vmatprep.subr.mxu0 0.0
    %2875 = vmatpush1.msra.mxu0 0.0
    %2876 = vmatprep.subr.mxu0 0.0
    %2877 = vmatpush1.msra.mxu0 0.0
    %2878 = vmatprep.subr.mxu0 0.0
    %2879 = vmatpush1.msra.mxu0 0.0
    %2880 = vmatprep.subr.mxu0 0.0
    %2881 = vmatpush1.msra.mxu0 0.0
    %2882 = vmatprep.subr.mxu0 0.0
    %2883 = vmatpush1.msra.mxu0 0.0
    %2884 = vmatprep.mubr.f32.mxu0 0.0
    %2885 = vmatmul.mubr.f32.gmra.mrb[0].mxu0 %v2429
    %v2886 = vpop.f32.mrb[0].mxu0
    %v2887 = vadd.f32 0.0, %v2886
    %v2888 = vpop.f32.mrb[0].mxu0
    %v2889 = vadd.f32 0.0, %v2888
    %2890 = vdwg.mxu0
    %v2891 = vadd.f32 %v2745, %v2816
    %v2892 = vadd.f32 %v2746, %v2818
    %v2893 = vadd.f32 %v2747, %v2887
    %v2894 = vadd.f32 %v2748, %v2889
    %v2895 = vxor.u32 %v2891, 2147483648
    %v2896 = vmul.f32 %v2895, 1.442695
    %v2897 = vpow.pop %v2896
    %v2898 = vadd.f32 %v2897, 1.0
    %v2899 = vrcp.pop %v2898
    %v2900 = vmul.f32 1.0, %v2899
    %v2901 = vxor.u32 %v2892, 2147483648
    %v2902 = vmul.f32 %v2901, 1.442695
    %v2903 = vpow.pop %v2902
    %v2904 = vadd.f32 %v2903, 1.0
    %v2905 = vrcp.pop %v2904
    %v2906 = vmul.f32 1.0, %v2905
    %v2907 = vtanh.pop %v2893
    %v2908 = vxor.u32 %v2894, 2147483648
    %v2909 = vmul.f32 %v2908, 1.442695
    %v2910 = vpow.pop %v2909
    %v2911 = vadd.f32 %v2910, 1.0
    %v2912 = vrcp.pop %v2911
    %v2913 = vmul.f32 1.0, %v2912
    %v2914 = vmul.f32 %v2906, %v2427
    %v2915 = vmul.f32 %v2900, %v2907
    %v2916 = vadd.f32 %v2914, %v2915
    %v2917 = vtanh.pop %v2916
    %v2918 = vmul.f32 %v2913, %v2917
    %2919 = vmatprep.subr.mxu0 %v460
    %2920 = vmatpush1.msra.mxu0 %v459
    %2921 = vmatprep.subr.mxu0 %v464
    %2922 = vmatpush1.msra.mxu0 %v463
    %2923 = vmatprep.subr.mxu0 %v468
    %2924 = vmatpush1.msra.mxu0 %v467
    %2925 = vmatprep.subr.mxu0 %v472
    %2926 = vmatpush1.msra.mxu0 %v471
    %2927 = vmatprep.subr.mxu0 %v476
    %2928 = vmatpush1.msra.mxu0 %v475
    %2929 = vmatprep.subr.mxu0 %v480
    %2930 = vmatpush1.msra.mxu0 %v479
    %2931 = vmatprep.subr.mxu0 %v484
    %2932 = vmatpush1.msra.mxu0 %v483
    %2933 = vmatprep.subr.mxu0 %v488
    %2934 = vmatpush1.msra.mxu0 %v487
    %2935 = vmatprep.subr.mxu0 %v492
    %2936 = vmatpush1.msra.mxu0 %v491
    %2937 = vmatprep.subr.mxu0 %v496
    %2938 = vmatpush1.msra.mxu0 %v495
    %2939 = vmatprep.subr.mxu0 %v500
    %2940 = vmatpush1.msra.mxu0 %v499
    %2941 = vmatprep.subr.mxu0 %v504
    %2942 = vmatpush1.msra.mxu0 %v503
    %2943 = vmatprep.subr.mxu0 %v508
    %2944 = vmatpush1.msra.mxu0 %v507
    %2945 = vmatprep.subr.mxu0 %v512
    %2946 = vmatpush1.msra.mxu0 %v511
    %2947 = vmatprep.subr.mxu0 %v516
    %2948 = vmatpush1.msra.mxu0 %v515
    %2949 = vmatprep.subr.mxu0 %v520
    %2950 = vmatpush1.msra.mxu0 %v519
    %2951 = vmatprep.subr.mxu0 0.0
    %2952 = vmatpush1.msra.mxu0 0.0
    %2953 = vmatprep.subr.mxu0 0.0
    %2954 = vmatpush1.msra.mxu0 0.0
    %2955 = vmatprep.subr.mxu0 0.0
    %2956 = vmatpush1.msra.mxu0 0.0
    %2957 = vmatprep.subr.mxu0 0.0
    %2958 = vmatpush1.msra.mxu0 0.0
    %2959 = vmatprep.subr.mxu0 0.0
    %2960 = vmatpush1.msra.mxu0 0.0
    %2961 = vmatprep.subr.mxu0 0.0
    %2962 = vmatpush1.msra.mxu0 0.0
    %2963 = vmatprep.subr.mxu0 0.0
    %2964 = vmatpush1.msra.mxu0 0.0
    %2965 = vmatprep.subr.mxu0 0.0
    %2966 = vmatpush1.msra.mxu0 0.0
    %2967 = vmatprep.subr.mxu0 0.0
    %2968 = vmatpush1.msra.mxu0 0.0
    %2969 = vmatprep.subr.mxu0 0.0
    %2970 = vmatpush1.msra.mxu0 0.0
    %2971 = vmatprep.subr.mxu0 0.0
    %2972 = vmatpush1.msra.mxu0 0.0
    %2973 = vmatprep.subr.mxu0 0.0
    %2974 = vmatpush1.msra.mxu0 0.0
    %2975 = vmatprep.subr.mxu0 0.0
    %2976 = vmatpush1.msra.mxu0 0.0
    %2977 = vmatprep.subr.mxu0 0.0
    %2978 = vmatpush1.msra.mxu0 0.0
    %2979 = vmatprep.subr.mxu0 0.0
    %2980 = vmatpush1.msra.mxu0 0.0
    %2981 = vmatprep.subr.mxu0 0.0
    %2982 = vmatpush1.msra.mxu0 0.0
    %2983 = vmatprep.mubr.f32.mxu0 0.0
    %2984 = vmatmul.mubr.f32.gmra.mrb[0].mxu0 %v2429
    %v2985 = vpop.f32.mrb[0].mxu0
    %v2986 = vadd.f32 %v946, %v2985
    %v2987 = vpop.f32.mrb[0].mxu0
    %v2988 = vadd.f32 %v950, %v2987
    %2989 = vdwg.mxu0
    %2990 = vmatprep.subr.mxu0 %v462
    %2991 = vmatpush1.msra.mxu0 %v461
    %2992 = vmatprep.subr.mxu0 %v466
    %2993 = vmatpush1.msra.mxu0 %v465
    %2994 = vmatprep.subr.mxu0 %v470
    %2995 = vmatpush1.msra.mxu0 %v469
    %2996 = vmatprep.subr.mxu0 %v474
    %2997 = vmatpush1.msra.mxu0 %v473
    %2998 = vmatprep.subr.mxu0 %v478
    %2999 = vmatpush1.msra.mxu0 %v477
    %3000 = vmatprep.subr.mxu0 %v482
    %3001 = vmatpush1.msra.mxu0 %v481
    %3002 = vmatprep.subr.mxu0 %v486
    %3003 = vmatpush1.msra.mxu0 %v485
    %3004 = vmatprep.subr.mxu0 %v490
    %3005 = vmatpush1.msra.mxu0 %v489
    %3006 = vmatprep.subr.mxu0 %v494
    %3007 = vmatpush1.msra.mxu0 %v493
    %3008 = vmatprep.subr.mxu0 %v498
    %3009 = vmatpush1.msra.mxu0 %v497
    %3010 = vmatprep.subr.mxu0 %v502
    %3011 = vmatpush1.msra.mxu0 %v501
    %3012 = vmatprep.subr.mxu0 %v506
    %3013 = vmatpush1.msra.mxu0 %v505
    %3014 = vmatprep.subr.mxu0 %v510
    %3015 = vmatpush1.msra.mxu0 %v509
    %3016 = vmatprep.subr.mxu0 %v514
    %3017 = vmatpush1.msra.mxu0 %v513
    %3018 = vmatprep.subr.mxu0 %v518
    %3019 = vmatpush1.msra.mxu0 %v517
    %3020 = vmatprep.subr.mxu0 %v522
    %3021 = vmatpush1.msra.mxu0 %v521
    %3022 = vmatprep.subr.mxu0 0.0
    %3023 = vmatpush1.msra.mxu0 0.0
    %3024 = vmatprep.subr.mxu0 0.0
    %3025 = vmatpush1.msra.mxu0 0.0
    %3026 = vmatprep.subr.mxu0 0.0
    %3027 = vmatpush1.msra.mxu0 0.0
    %3028 = vmatprep.subr.mxu0 0.0
    %3029 = vmatpush1.msra.mxu0 0.0
    %3030 = vmatprep.subr.mxu0 0.0
    %3031 = vmatpush1.msra.mxu0 0.0
    %3032 = vmatprep.subr.mxu0 0.0
    %3033 = vmatpush1.msra.mxu0 0.0
    %3034 = vmatprep.subr.mxu0 0.0
    %3035 = vmatpush1.msra.mxu0 0.0
    %3036 = vmatprep.subr.mxu0 0.0
    %3037 = vmatpush1.msra.mxu0 0.0
    %3038 = vmatprep.subr.mxu0 0.0
    %3039 = vmatpush1.msra.mxu0 0.0
    %3040 = vmatprep.subr.mxu0 0.0
    %3041 = vmatpush1.msra.mxu0 0.0
    %3042 = vmatprep.subr.mxu0 0.0
    %3043 = vmatpush1.msra.mxu0 0.0
    %3044 = vmatprep.subr.mxu0 0.0
    %3045 = vmatpush1.msra.mxu0 0.0
    %3046 = vmatprep.subr.mxu0 0.0
    %3047 = vmatpush1.msra.mxu0 0.0
    %3048 = vmatprep.subr.mxu0 0.0
    %3049 = vmatpush1.msra.mxu0 0.0
    %3050 = vmatprep.subr.mxu0 0.0
    %3051 = vmatpush1.msra.mxu0 0.0
    %3052 = vmatprep.subr.mxu0 0.0
    %3053 = vmatpush1.msra.mxu0 0.0
    %3054 = vmatprep.mubr.f32.mxu0 0.0
    %3055 = vmatmul.mubr.f32.gmra.mrb[0].mxu0 %v2429
    %v3056 = vpop.f32.mrb[0].mxu0
    %v3057 = vadd.f32 %v954, %v3056
    %v3058 = vpop.f32.mrb[0].mxu0
    %v3059 = vadd.f32 %v958, %v3058
    %3060 = vdwg.mxu0
    %3061 = vmatprep.subr.mxu0 %v524
    %3062 = vmatpush1.msra.mxu0 %v523
    %3063 = vmatprep.subr.mxu0 %v528
    %3064 = vmatpush1.msra.mxu0 %v527
    %3065 = vmatprep.subr.mxu0 %v532
    %3066 = vmatpush1.msra.mxu0 %v531
    %3067 = vmatprep.subr.mxu0 %v536
    %3068 = vmatpush1.msra.mxu0 %v535
    %3069 = vmatprep.subr.mxu0 %v540
    %3070 = vmatpush1.msra.mxu0 %v539
    %3071 = vmatprep.subr.mxu0 %v544
    %3072 = vmatpush1.msra.mxu0 %v543
    %3073 = vmatprep.subr.mxu0 %v548
    %3074 = vmatpush1.msra.mxu0 %v547
    %3075 = vmatprep.subr.mxu0 %v552
    %3076 = vmatpush1.msra.mxu0 %v551
    %3077 = vmatprep.subr.mxu0 %v556
    %3078 = vmatpush1.msra.mxu0 %v555
    %3079 = vmatprep.subr.mxu0 %v560
    %3080 = vmatpush1.msra.mxu0 %v559
    %3081 = vmatprep.subr.mxu0 %v564
    %3082 = vmatpush1.msra.mxu0 %v563
    %3083 = vmatprep.subr.mxu0 %v568
    %3084 = vmatpush1.msra.mxu0 %v567
    %3085 = vmatprep.subr.mxu0 %v572
    %3086 = vmatpush1.msra.mxu0 %v571
    %3087 = vmatprep.subr.mxu0 %v576
    %3088 = vmatpush1.msra.mxu0 %v575
    %3089 = vmatprep.subr.mxu0 %v580
    %3090 = vmatpush1.msra.mxu0 %v579
    %3091 = vmatprep.subr.mxu0 %v584
    %3092 = vmatpush1.msra.mxu0 %v583
    %3093 = vmatprep.subr.mxu0 0.0
    %3094 = vmatpush1.msra.mxu0 0.0
    %3095 = vmatprep.subr.mxu0 0.0
    %3096 = vmatpush1.msra.mxu0 0.0
    %3097 = vmatprep.subr.mxu0 0.0
    %3098 = vmatpush1.msra.mxu0 0.0
    %3099 = vmatprep.subr.mxu0 0.0
    %3100 = vmatpush1.msra.mxu0 0.0
    %3101 = vmatprep.subr.mxu0 0.0
    %3102 = vmatpush1.msra.mxu0 0.0
    %3103 = vmatprep.subr.mxu0 0.0
    %3104 = vmatpush1.msra.mxu0 0.0
    %3105 = vmatprep.subr.mxu0 0.0
    %3106 = vmatpush1.msra.mxu0 0.0
    %3107 = vmatprep.subr.mxu0 0.0
    %3108 = vmatpush1.msra.mxu0 0.0
    %3109 = vmatprep.subr.mxu0 0.0
    %3110 = vmatpush1.msra.mxu0 0.0
    %3111 = vmatprep.subr.mxu0 0.0
    %3112 = vmatpush1.msra.mxu0 0.0
    %3113 = vmatprep.subr.mxu0 0.0
    %3114 = vmatpush1.msra.mxu0 0.0
    %3115 = vmatprep.subr.mxu0 0.0
    %3116 = vmatpush1.msra.mxu0 0.0
    %3117 = vmatprep.subr.mxu0 0.0
    %3118 = vmatpush1.msra.mxu0 0.0
    %3119 = vmatprep.subr.mxu0 0.0
    %3120 = vmatpush1.msra.mxu0 0.0
    %3121 = vmatprep.subr.mxu0 0.0
    %3122 = vmatpush1.msra.mxu0 0.0
    %3123 = vmatprep.subr.mxu0 0.0
    %3124 = vmatpush1.msra.mxu0 0.0
    %3125 = vmatprep.mubr.f32.mxu0 0.0
    %3126 = vmatmul.mubr.f32.gmra.mrb[0].mxu0 %v2741
    %v3127 = vpop.f32.mrb[0].mxu0
    %v3128 = vadd.f32 0.0, %v3127
    %v3129 = vpop.f32.mrb[0].mxu0
    %v3130 = vadd.f32 0.0, %v3129
    %3131 = vdwg.mxu0
    %3132 = vmatprep.subr.mxu0 %v526
    %3133 = vmatpush1.msra.mxu0 %v525
    %3134 = vmatprep.subr.mxu0 %v530
    %3135 = vmatpush1.msra.mxu0 %v529
    %3136 = vmatprep.subr.mxu0 %v534
    %3137 = vmatpush1.msra.mxu0 %v533
    %3138 = vmatprep.subr.mxu0 %v538
    %3139 = vmatpush1.msra.mxu0 %v537
    %3140 = vmatprep.subr.mxu0 %v542
    %3141 = vmatpush1.msra.mxu0 %v541
    %3142 = vmatprep.subr.mxu0 %v546
    %3143 = vmatpush1.msra.mxu0 %v545
    %3144 = vmatprep.subr.mxu0 %v550
    %3145 = vmatpush1.msra.mxu0 %v549
    %3146 = vmatprep.subr.mxu0 %v554
    %3147 = vmatpush1.msra.mxu0 %v553
    %3148 = vmatprep.subr.mxu0 %v558
    %3149 = vmatpush1.msra.mxu0 %v557
    %3150 = vmatprep.subr.mxu0 %v562
    %3151 = vmatpush1.msra.mxu0 %v561
    %3152 = vmatprep.subr.mxu0 %v566
    %3153 = vmatpush1.msra.mxu0 %v565
    %3154 = vmatprep.subr.mxu0 %v570
    %3155 = vmatpush1.msra.mxu0 %v569
    %3156 = vmatprep.subr.mxu0 %v574
    %3157 = vmatpush1.msra.mxu0 %v573
    %3158 = vmatprep.subr.mxu0 %v578
    %3159 = vmatpush1.msra.mxu0 %v577
    %3160 = vmatprep.subr.mxu0 %v582
    %3161 = vmatpush1.msra.mxu0 %v581
    %3162 = vmatprep.subr.mxu0 %v586
    %3163 = vmatpush1.msra.mxu0 %v585
    %3164 = vmatprep.subr.mxu0 0.0
    %3165 = vmatpush1.msra.mxu0 0.0
    %3166 = vmatprep.subr.mxu0 0.0
    %3167 = vmatpush1.msra.mxu0 0.0
    %3168 = vmatprep.subr.mxu0 0.0
    %3169 = vmatpush1.msra.mxu0 0.0
    %3170 = vmatprep.subr.mxu0 0.0
    %3171 = vmatpush1.msra.mxu0 0.0
    %3172 = vmatprep.subr.mxu0 0.0
    %3173 = vmatpush1.msra.mxu0 0.0
    %3174 = vmatprep.subr.mxu0 0.0
    %3175 = vmatpush1.msra.mxu0 0.0
    %3176 = vmatprep.subr.mxu0 0.0
    %3177 = vmatpush1.msra.mxu0 0.0
    %3178 = vmatprep.subr.mxu0 0.0
    %3179 = vmatpush1.msra.mxu0 0.0
    %3180 = vmatprep.subr.mxu0 0.0
    %3181 = vmatpush1.msra.mxu0 0.0
    %3182 = vmatprep.subr.mxu0 0.0
    %3183 = vmatpush1.msra.mxu0 0.0
    %3184 = vmatprep.subr.mxu0 0.0
    %3185 = vmatpush1.msra.mxu0 0.0
    %3186 = vmatprep.subr.mxu0 0.0
    %3187 = vmatpush1.msra.mxu0 0.0
    %3188 = vmatprep.subr.mxu0 0.0
    %3189 = vmatpush1.msra.mxu0 0.0
    %3190 = vmatprep.subr.mxu0 0.0
    %3191 = vmatpush1.msra.mxu0 0.0
    %3192 = vmatprep.subr.mxu0 0.0
    %3193 = vmatpush1.msra.mxu0 0.0
    %3194 = vmatprep.subr.mxu0 0.0
    %3195 = vmatpush1.msra.mxu0 0.0
    %3196 = vmatprep.mubr.f32.mxu0 0.0
    %3197 = vmatmul.mubr.f32.gmra.mrb[0].mxu0 %v2741
    %v3198 = vpop.f32.mrb[0].mxu0
    %v3199 = vadd.f32 0.0, %v3198
    %v3200 = vpop.f32.mrb[0].mxu0
    %v3201 = vadd.f32 0.0, %v3200
    %3202 = vdwg.mxu0
    %v3203 = vadd.f32 %v2986, %v3128
    %v3204 = vadd.f32 %v2988, %v3130
    %v3205 = vadd.f32 %v3057, %v3199
    %v3206 = vadd.f32 %v3059, %v3201
    %v3207 = vxor.u32 %v3203, 2147483648
    %v3208 = vmul.f32 %v3207, 1.442695
    %v3209 = vpow.pop %v3208
    %v3210 = vadd.f32 %v3209, 1.0
    %v3211 = vrcp.pop %v3210
    %v3212 = vmul.f32 1.0, %v3211
    %v3213 = vxor.u32 %v3204, 2147483648
    %v3214 = vmul.f32 %v3213, 1.442695
    %v3215 = vpow.pop %v3214
    %v3216 = vadd.f32 %v3215, 1.0
    %v3217 = vrcp.pop %v3216
    %v3218 = vmul.f32 1.0, %v3217
    %v3219 = vtanh.pop %v3205
    %v3220 = vxor.u32 %v3206, 2147483648
    %v3221 = vmul.f32 %v3220, 1.442695
    %v3222 = vpow.pop %v3221
    %v3223 = vadd.f32 %v3222, 1.0
    %v3224 = vrcp.pop %v3223
    %v3225 = vmul.f32 1.0, %v3224
    %v3226 = vmul.f32 %v3218, %v2739
    %v3227 = vmul.f32 %v3212, %v3219
    %v3228 = vadd.f32 %v3226, %v3227
    %v3229 = vtanh.pop %v3228
    %v3230 = vmul.f32 %v3225, %v3229
    %s3231 = smul.u32 6, 4
    %s3232 = smul.addr %s3231, 8
    %s3233 = scalar_lea.vmem [#allocation2], %s3232
    %v3234 = vld [vmem:[%s3233] sm:$0xff]
    %v3235 = vld [vmem:[%s3233 + $0x8] sm:$0xff]
    %v3236 = vld [vmem:[%s3233 + $0x10] sm:$0xff]
    %v3237 = vld [vmem:[%s3233 + $0x18] sm:$0xff]
    %3238 = vmatprep.subr.mxu0 %v396
    %3239 = vmatpush1.msra.mxu0 %v395
    %3240 = vmatprep.subr.mxu0 %v400
    %3241 = vmatpush1.msra.mxu0 %v399
    %3242 = vmatprep.subr.mxu0 %v404
    %3243 = vmatpush1.msra.mxu0 %v403
    %3244 = vmatprep.subr.mxu0 %v408
    %3245 = vmatpush1.msra.mxu0 %v407
    %3246 = vmatprep.subr.mxu0 %v412
    %3247 = vmatpush1.msra.mxu0 %v411
    %3248 = vmatprep.subr.mxu0 %v416
    %3249 = vmatpush1.msra.mxu0 %v415
    %3250 = vmatprep.subr.mxu0 %v420
    %3251 = vmatpush1.msra.mxu0 %v419
    %3252 = vmatprep.subr.mxu0 %v424
    %3253 = vmatpush1.msra.mxu0 %v423
    %3254 = vmatprep.subr.mxu0 %v428
    %3255 = vmatpush1.msra.mxu0 %v427
    %3256 = vmatprep.subr.mxu0 %v432
    %3257 = vmatpush1.msra.mxu0 %v431
    %3258 = vmatprep.subr.mxu0 %v436
    %3259 = vmatpush1.msra.mxu0 %v435
    %3260 = vmatprep.subr.mxu0 %v440
    %3261 = vmatpush1.msra.mxu0 %v439
    %3262 = vmatprep.subr.mxu0 %v444
    %3263 = vmatpush1.msra.mxu0 %v443
    %3264 = vmatprep.subr.mxu0 %v448
    %3265 = vmatpush1.msra.mxu0 %v447
    %3266 = vmatprep.subr.mxu0 %v452
    %3267 = vmatpush1.msra.mxu0 %v451
    %3268 = vmatprep.subr.mxu0 %v456
    %3269 = vmatpush1.msra.mxu0 %v455
    %3270 = vmatprep.subr.mxu0 0.0
    %3271 = vmatpush1.msra.mxu0 0.0
    %3272 = vmatprep.subr.mxu0 0.0
    %3273 = vmatpush1.msra.mxu0 0.0
    %3274 = vmatprep.subr.mxu0 0.0
    %3275 = vmatpush1.msra.mxu0 0.0
    %3276 = vmatprep.subr.mxu0 0.0
    %3277 = vmatpush1.msra.mxu0 0.0
    %3278 = vmatprep.subr.mxu0 0.0
    %3279 = vmatpush1.msra.mxu0 0.0
    %3280 = vmatprep.subr.mxu0 0.0
    %3281 = vmatpush1.msra.mxu0 0.0
    %3282 = vmatprep.subr.mxu0 0.0
    %3283 = vmatpush1.msra.mxu0 0.0
    %3284 = vmatprep.subr.mxu0 0.0
    %3285 = vmatpush1.msra.mxu0 0.0
    %3286 = vmatprep.subr.mxu0 0.0
    %3287 = vmatpush1.msra.mxu0 0.0
    %3288 = vmatprep.subr.mxu0 0.0
    %3289 = vmatpush1.msra.mxu0 0.0
    %3290 = vmatprep.subr.mxu0 0.0
    %3291 = vmatpush1.msra.mxu0 0.0
    %3292 = vmatprep.subr.mxu0 0.0
    %3293 = vmatpush1.msra.mxu0 0.0
    %3294 = vmatprep.subr.mxu0 0.0
    %3295 = vmatpush1.msra.mxu0 0.0
    %3296 = vmatprep.subr.mxu0 0.0
    %3297 = vmatpush1.msra.mxu0 0.0
    %3298 = vmatprep.subr.mxu0 0.0
    %3299 = vmatpush1.msra.mxu0 0.0
    %3300 = vmatprep.subr.mxu0 0.0
    %3301 = vmatpush1.msra.mxu0 0.0
    %3302 = vmatprep.mubr.f32.mxu0 0.0
    %3303 = vmatmul.mubr.f32.gmra.mrb[0].mxu0 %v2918
    %v3304 = vpop.f32.mrb[0].mxu0
    %v3305 = vadd.f32 0.0, %v3304
    %v3306 = vpop.f32.mrb[0].mxu0
    %v3307 = vadd.f32 0.0, %v3306
    %3308 = vdwg.mxu0
    %3309 = vmatprep.subr.mxu0 %v398
    %3310 = vmatpush1.msra.mxu0 %v397
    %3311 = vmatprep.subr.mxu0 %v402
    %3312 = vmatpush1.msra.mxu0 %v401
    %3313 = vmatprep.subr.mxu0 %v406
    %3314 = vmatpush1.msra.mxu0 %v405
    %3315 = vmatprep.subr.mxu0 %v410
    %3316 = vmatpush1.msra.mxu0 %v409
    %3317 = vmatprep.subr.mxu0 %v414
    %3318 = vmatpush1.msra.mxu0 %v413
    %3319 = vmatprep.subr.mxu0 %v418
    %3320 = vmatpush1.msra.mxu0 %v417
    %3321 = vmatprep.subr.mxu0 %v422
    %3322 = vmatpush1.msra.mxu0 %v421
    %3323 = vmatprep.subr.mxu0 %v426
    %3324 = vmatpush1.msra.mxu0 %v425
    %3325 = vmatprep.subr.mxu0 %v430
    %3326 = vmatpush1.msra.mxu0 %v429
    %3327 = vmatprep.subr.mxu0 %v434
    %3328 = vmatpush1.msra.mxu0 %v433
    %3329 = vmatprep.subr.mxu0 %v438
    %3330 = vmatpush1.msra.mxu0 %v437
    %3331 = vmatprep.subr.mxu0 %v442
    %3332 = vmatpush1.msra.mxu0 %v441
    %3333 = vmatprep.subr.mxu0 %v446
    %3334 = vmatpush1.msra.mxu0 %v445
    %3335 = vmatprep.subr.mxu0 %v450
    %3336 = vmatpush1.msra.mxu0 %v449
    %3337 = vmatprep.subr.mxu0 %v454
    %3338 = vmatpush1.msra.mxu0 %v453
    %3339 = vmatprep.subr.mxu0 %v458
    %3340 = vmatpush1.msra.mxu0 %v457
    %3341 = vmatprep.subr.mxu0 0.0
    %3342 = vmatpush1.msra.mxu0 0.0
    %3343 = vmatprep.subr.mxu0 0.0
    %3344 = vmatpush1.msra.mxu0 0.0
    %3345 = vmatprep.subr.mxu0 0.0
    %3346 = vmatpush1.msra.mxu0 0.0
    %3347 = vmatprep.subr.mxu0 0.0
    %3348 = vmatpush1.msra.mxu0 0.0
    %3349 = vmatprep.subr.mxu0 0.0
    %3350 = vmatpush1.msra.mxu0 0.0
    %3351 = vmatprep.subr.mxu0 0.0
    %3352 = vmatpush1.msra.mxu0 0.0
    %3353 = vmatprep.subr.mxu0 0.0
    %3354 = vmatpush1.msra.mxu0 0.0
    %3355 = vmatprep.subr.mxu0 0.0
    %3356 = vmatpush1.msra.mxu0 0.0
    %3357 = vmatprep.subr.mxu0 0.0
    %3358 = vmatpush1.msra.mxu0 0.0
    %3359 = vmatprep.subr.mxu0 0.0
    %3360 = vmatpush1.msra.mxu0 0.0
    %3361 = vmatprep.subr.mxu0 0.0
    %3362 = vmatpush1.msra.mxu0 0.0
    %3363 = vmatprep.subr.mxu0 0.0
    %3364 = vmatpush1.msra.mxu0 0.0
    %3365 = vmatprep.subr.mxu0 0.0
    %3366 = vmatpush1.msra.mxu0 0.0
    %3367 = vmatprep.subr.mxu0 0.0
    %3368 = vmatpush1.msra.mxu0 0.0
    %3369 = vmatprep.subr.mxu0 0.0
    %3370 = vmatpush1.msra.mxu0 0.0
    %3371 = vmatprep.subr.mxu0 0.0
    %3372 = vmatpush1.msra.mxu0 0.0
    %3373 = vmatprep.mubr.f32.mxu0 0.0
    %3374 = vmatmul.mubr.f32.gmra.mrb[0].mxu0 %v2918
    %v3375 = vpop.f32.mrb[0].mxu0
    %v3376 = vadd.f32 0.0, %v3375
    %v3377 = vpop.f32.mrb[0].mxu0
    %v3378 = vadd.f32 0.0, %v3377
    %3379 = vdwg.mxu0
    %v3380 = vadd.f32 %v3234, %v3305
    %v3381 = vadd.f32 %v3235, %v3307
    %v3382 = vadd.f32 %v3236, %v3376
    %v3383 = vadd.f32 %v3237, %v3378
    %v3384 = vxor.u32 %v3380, 2147483648
    %v3385 = vmul.f32 %v3384, 1.442695
    %v3386 = vpow.pop %v3385
    %v3387 = vadd.f32 %v3386, 1.0
    %v3388 = vrcp.pop %v3387
    %v3389 = vmul.f32 1.0, %v3388
    %v3390 = vxor.u32 %v3381, 2147483648
    %v3391 = vmul.f32 %v3390, 1.442695
    %v3392 = vpow.pop %v3391
    %v3393 = vadd.f32 %v3392, 1.0
    %v3394 = vrcp.pop %v3393
    %v3395 = vmul.f32 1.0, %v3394
    %v3396 = vtanh.pop %v3382
    %v3397 = vxor.u32 %v3383, 2147483648
    %v3398 = vmul.f32 %v3397, 1.442695
    %v3399 = vpow.pop %v3398
    %v3400 = vadd.f32 %v3399, 1.0
    %v3401 = vrcp.pop %v3400
    %v3402 = vmul.f32 1.0, %v3401
    %v3403 = vmul.f32 %v3395, %v2916
    %v3404 = vmul.f32 %v3389, %v3396
    %v3405 = vadd.f32 %v3403, %v3404
    %v3406 = vtanh.pop %v3405
    %v3407 = vmul.f32 %v3402, %v3406
    %3408 = vmatprep.subr.mxu0 %v460
    %3409 = vmatpush1.msra.mxu0 %v459
    %3410 = vmatprep.subr.mxu0 %v464
    %3411 = vmatpush1.msra.mxu0 %v463
    %3412 = vmatprep.subr.mxu0 %v468
    %3413 = vmatpush1.msra.mxu0 %v467
    %3414 = vmatprep.subr.mxu0 %v472
    %3415 = vmatpush1.msra.mxu0 %v471
    %3416 = vmatprep.subr.mxu0 %v476
    %3417 = vmatpush1.msra.mxu0 %v475
    %3418 = vmatprep.subr.mxu0 %v480
    %3419 = vmatpush1.msra.mxu0 %v479
    %3420 = vmatprep.subr.mxu0 %v484
    %3421 = vmatpush1.msra.mxu0 %v483
    %3422 = vmatprep.subr.mxu0 %v488
    %3423 = vmatpush1.msra.mxu0 %v487
    %3424 = vmatprep.subr.mxu0 %v492
    %3425 = vmatpush1.msra.mxu0 %v491
    %3426 = vmatprep.subr.mxu0 %v496
    %3427 = vmatpush1.msra.mxu0 %v495
    %3428 = vmatprep.subr.mxu0 %v500
    %3429 = vmatpush1.msra.mxu0 %v499
    %3430 = vmatprep.subr.mxu0 %v504
    %3431 = vmatpush1.msra.mxu0 %v503
    %3432 = vmatprep.subr.mxu0 %v508
    %3433 = vmatpush1.msra.mxu0 %v507
    %3434 = vmatprep.subr.mxu0 %v512
    %3435 = vmatpush1.msra.mxu0 %v511
    %3436 = vmatprep.subr.mxu0 %v516
    %3437 = vmatpush1.msra.mxu0 %v515
    %3438 = vmatprep.subr.mxu0 %v520
    %3439 = vmatpush1.msra.mxu0 %v519
    %3440 = vmatprep.subr.mxu0 0.0
    %3441 = vmatpush1.msra.mxu0 0.0
    %3442 = vmatprep.subr.mxu0 0.0
    %3443 = vmatpush1.msra.mxu0 0.0
    %3444 = vmatprep.subr.mxu0 0.0
    %3445 = vmatpush1.msra.mxu0 0.0
    %3446 = vmatprep.subr.mxu0 0.0
    %3447 = vmatpush1.msra.mxu0 0.0
    %3448 = vmatprep.subr.mxu0 0.0
    %3449 = vmatpush1.msra.mxu0 0.0
    %3450 = vmatprep.subr.mxu0 0.0
    %3451 = vmatpush1.msra.mxu0 0.0
    %3452 = vmatprep.subr.mxu0 0.0
    %3453 = vmatpush1.msra.mxu0 0.0
    %3454 = vmatprep.subr.mxu0 0.0
    %3455 = vmatpush1.msra.mxu0 0.0
    %3456 = vmatprep.subr.mxu0 0.0
    %3457 = vmatpush1.msra.mxu0 0.0
    %3458 = vmatprep.subr.mxu0 0.0
    %3459 = vmatpush1.msra.mxu0 0.0
    %3460 = vmatprep.subr.mxu0 0.0
    %3461 = vmatpush1.msra.mxu0 0.0
    %3462 = vmatprep.subr.mxu0 0.0
    %3463 = vmatpush1.msra.mxu0 0.0
    %3464 = vmatprep.subr.mxu0 0.0
    %3465 = vmatpush1.msra.mxu0 0.0
    %3466 = vmatprep.subr.mxu0 0.0
    %3467 = vmatpush1.msra.mxu0 0.0
    %3468 = vmatprep.subr.mxu0 0.0
    %3469 = vmatpush1.msra.mxu0 0.0
    %3470 = vmatprep.subr.mxu0 0.0
    %3471 = vmatpush1.msra.mxu0 0.0
    %3472 = vmatprep.mubr.f32.mxu0 0.0
    %3473 = vmatmul.mubr.f32.gmra.mrb[0].mxu0 %v2918
    %v3474 = vpop.f32.mrb[0].mxu0
    %v3475 = vadd.f32 %v946, %v3474
    %v3476 = vpop.f32.mrb[0].mxu0
    %v3477 = vadd.f32 %v950, %v3476
    %3478 = vdwg.mxu0
    %3479 = vmatprep.subr.mxu0 %v462
    %3480 = vmatpush1.msra.mxu0 %v461
    %3481 = vmatprep.subr.mxu0 %v466
    %3482 = vmatpush1.msra.mxu0 %v465
    %3483 = vmatprep.subr.mxu0 %v470
    %3484 = vmatpush1.msra.mxu0 %v469
    %3485 = vmatprep.subr.mxu0 %v474
    %3486 = vmatpush1.msra.mxu0 %v473
    %3487 = vmatprep.subr.mxu0 %v478
    %3488 = vmatpush1.msra.mxu0 %v477
    %3489 = vmatprep.subr.mxu0 %v482
    %3490 = vmatpush1.msra.mxu0 %v481
    %3491 = vmatprep.subr.mxu0 %v486
    %3492 = vmatpush1.msra.mxu0 %v485
    %3493 = vmatprep.subr.mxu0 %v490
    %3494 = vmatpush1.msra.mxu0 %v489
    %3495 = vmatprep.subr.mxu0 %v494
    %3496 = vmatpush1.msra.mxu0 %v493
    %3497 = vmatprep.subr.mxu0 %v498
    %3498 = vmatpush1.msra.mxu0 %v497
    %3499 = vmatprep.subr.mxu0 %v502
    %3500 = vmatpush1.msra.mxu0 %v501
    %3501 = vmatprep.subr.mxu0 %v506
    %3502 = vmatpush1.msra.mxu0 %v505
    %3503 = vmatprep.subr.mxu0 %v510
    %3504 = vmatpush1.msra.mxu0 %v509
    %3505 = vmatprep.subr.mxu0 %v514
    %3506 = vmatpush1.msra.mxu0 %v513
    %3507 = vmatprep.subr.mxu0 %v518
    %3508 = vmatpush1.msra.mxu0 %v517
    %3509 = vmatprep.subr.mxu0 %v522
    %3510 = vmatpush1.msra.mxu0 %v521
    %3511 = vmatprep.subr.mxu0 0.0
    %3512 = vmatpush1.msra.mxu0 0.0
    %3513 = vmatprep.subr.mxu0 0.0
    %3514 = vmatpush1.msra.mxu0 0.0
    %3515 = vmatprep.subr.mxu0 0.0
    %3516 = vmatpush1.msra.mxu0 0.0
    %3517 = vmatprep.subr.mxu0 0.0
    %3518 = vmatpush1.msra.mxu0 0.0
    %3519 = vmatprep.subr.mxu0 0.0
    %3520 = vmatpush1.msra.mxu0 0.0
    %3521 = vmatprep.subr.mxu0 0.0
    %3522 = vmatpush1.msra.mxu0 0.0
    %3523 = vmatprep.subr.mxu0 0.0
    %3524 = vmatpush1.msra.mxu0 0.0
    %3525 = vmatprep.subr.mxu0 0.0
    %3526 = vmatpush1.msra.mxu0 0.0
    %3527 = vmatprep.subr.mxu0 0.0
    %3528 = vmatpush1.msra.mxu0 0.0
    %3529 = vmatprep.subr.mxu0 0.0
    %3530 = vmatpush1.msra.mxu0 0.0
    %3531 = vmatprep.subr.mxu0 0.0
    %3532 = vmatpush1.msra.mxu0 0.0
    %3533 = vmatprep.subr.mxu0 0.0
    %3534 = vmatpush1.msra.mxu0 0.0
    %3535 = vmatprep.subr.mxu0 0.0
    %3536 = vmatpush1.msra.mxu0 0.0
    %3537 = vmatprep.subr.mxu0 0.0
    %3538 = vmatpush1.msra.mxu0 0.0
    %3539 = vmatprep.subr.mxu0 0.0
    %3540 = vmatpush1.msra.mxu0 0.0
    %3541 = vmatprep.subr.mxu0 0.0
    %3542 = vmatpush1.msra.mxu0 0.0
    %3543 = vmatprep.mubr.f32.mxu0 0.0
    %3544 = vmatmul.mubr.f32.gmra.mrb[0].mxu0 %v2918
    %v3545 = vpop.f32.mrb[0].mxu0
    %v3546 = vadd.f32 %v954, %v3545
    %v3547 = vpop.f32.mrb[0].mxu0
    %v3548 = vadd.f32 %v958, %v3547
    %3549 = vdwg.mxu0
    %3550 = vmatprep.subr.mxu0 %v524
    %3551 = vmatpush1.msra.mxu0 %v523
    %3552 = vmatprep.subr.mxu0 %v528
    %3553 = vmatpush1.msra.mxu0 %v527
    %3554 = vmatprep.subr.mxu0 %v532
    %3555 = vmatpush1.msra.mxu0 %v531
    %3556 = vmatprep.subr.mxu0 %v536
    %3557 = vmatpush1.msra.mxu0 %v535
    %3558 = vmatprep.subr.mxu0 %v540
    %3559 = vmatpush1.msra.mxu0 %v539
    %3560 = vmatprep.subr.mxu0 %v544
    %3561 = vmatpush1.msra.mxu0 %v543
    %3562 = vmatprep.subr.mxu0 %v548
    %3563 = vmatpush1.msra.mxu0 %v547
    %3564 = vmatprep.subr.mxu0 %v552
    %3565 = vmatpush1.msra.mxu0 %v551
    %3566 = vmatprep.subr.mxu0 %v556
    %3567 = vmatpush1.msra.mxu0 %v555
    %3568 = vmatprep.subr.mxu0 %v560
    %3569 = vmatpush1.msra.mxu0 %v559
    %3570 = vmatprep.subr.mxu0 %v564
    %3571 = vmatpush1.msra.mxu0 %v563
    %3572 = vmatprep.subr.mxu0 %v568
    %3573 = vmatpush1.msra.mxu0 %v567
    %3574 = vmatprep.subr.mxu0 %v572
    %3575 = vmatpush1.msra.mxu0 %v571
    %3576 = vmatprep.subr.mxu0 %v576
    %3577 = vmatpush1.msra.mxu0 %v575
    %3578 = vmatprep.subr.mxu0 %v580
    %3579 = vmatpush1.msra.mxu0 %v579
    %3580 = vmatprep.subr.mxu0 %v584
    %3581 = vmatpush1.msra.mxu0 %v583
    %3582 = vmatprep.subr.mxu0 0.0
    %3583 = vmatpush1.msra.mxu0 0.0
    %3584 = vmatprep.subr.mxu0 0.0
    %3585 = vmatpush1.msra.mxu0 0.0
    %3586 = vmatprep.subr.mxu0 0.0
    %3587 = vmatpush1.msra.mxu0 0.0
    %3588 = vmatprep.subr.mxu0 0.0
    %3589 = vmatpush1.msra.mxu0 0.0
    %3590 = vmatprep.subr.mxu0 0.0
    %3591 = vmatpush1.msra.mxu0 0.0
    %3592 = vmatprep.subr.mxu0 0.0
    %3593 = vmatpush1.msra.mxu0 0.0
    %3594 = vmatprep.subr.mxu0 0.0
    %3595 = vmatpush1.msra.mxu0 0.0
    %3596 = vmatprep.subr.mxu0 0.0
    %3597 = vmatpush1.msra.mxu0 0.0
    %3598 = vmatprep.subr.mxu0 0.0
    %3599 = vmatpush1.msra.mxu0 0.0
    %3600 = vmatprep.subr.mxu0 0.0
    %3601 = vmatpush1.msra.mxu0 0.0
    %3602 = vmatprep.subr.mxu0 0.0
    %3603 = vmatpush1.msra.mxu0 0.0
    %3604 = vmatprep.subr.mxu0 0.0
    %3605 = vmatpush1.msra.mxu0 0.0
    %3606 = vmatprep.subr.mxu0 0.0
    %3607 = vmatpush1.msra.mxu0 0.0
    %3608 = vmatprep.subr.mxu0 0.0
    %3609 = vmatpush1.msra.mxu0 0.0
    %3610 = vmatprep.subr.mxu0 0.0
    %3611 = vmatpush1.msra.mxu0 0.0
    %3612 = vmatprep.subr.mxu0 0.0
    %3613 = vmatpush1.msra.mxu0 0.0
    %3614 = vmatprep.mubr.f32.mxu0 0.0
    %3615 = vmatmul.mubr.f32.gmra.mrb[0].mxu0 %v3230
    %v3616 = vpop.f32.mrb[0].mxu0
    %v3617 = vadd.f32 0.0, %v3616
    %v3618 = vpop.f32.mrb[0].mxu0
    %v3619 = vadd.f32 0.0, %v3618
    %3620 = vdwg.mxu0
    %3621 = vmatprep.subr.mxu0 %v526
    %3622 = vmatpush1.msra.mxu0 %v525
    %3623 = vmatprep.subr.mxu0 %v530
    %3624 = vmatpush1.msra.mxu0 %v529
    %3625 = vmatprep.subr.mxu0 %v534
    %3626 = vmatpush1.msra.mxu0 %v533
    %3627 = vmatprep.subr.mxu0 %v538
    %3628 = vmatpush1.msra.mxu0 %v537
    %3629 = vmatprep.subr.mxu0 %v542
    %3630 = vmatpush1.msra.mxu0 %v541
    %3631 = vmatprep.subr.mxu0 %v546
    %3632 = vmatpush1.msra.mxu0 %v545
    %3633 = vmatprep.subr.mxu0 %v550
    %3634 = vmatpush1.msra.mxu0 %v549
    %3635 = vmatprep.subr.mxu0 %v554
    %3636 = vmatpush1.msra.mxu0 %v553
    %3637 = vmatprep.subr.mxu0 %v558
    %3638 = vmatpush1.msra.mxu0 %v557
    %3639 = vmatprep.subr.mxu0 %v562
    %3640 = vmatpush1.msra.mxu0 %v561
    %3641 = vmatprep.subr.mxu0 %v566
    %3642 = vmatpush1.msra.mxu0 %v565
    %3643 = vmatprep.subr.mxu0 %v570
    %3644 = vmatpush1.msra.mxu0 %v569
    %3645 = vmatprep.subr.mxu0 %v574
    %3646 = vmatpush1.msra.mxu0 %v573
    %3647 = vmatprep.subr.mxu0 %v578
    %3648 = vmatpush1.msra.mxu0 %v577
    %3649 = vmatprep.subr.mxu0 %v582
    %3650 = vmatpush1.msra.mxu0 %v581
    %3651 = vmatprep.subr.mxu0 %v586
    %3652 = vmatpush1.msra.mxu0 %v585
    %3653 = vmatprep.subr.mxu0 0.0
    %3654 = vmatpush1.msra.mxu0 0.0
    %3655 = vmatprep.subr.mxu0 0.0
    %3656 = vmatpush1.msra.mxu0 0.0
    %3657 = vmatprep.subr.mxu0 0.0
    %3658 = vmatpush1.msra.mxu0 0.0
    %3659 = vmatprep.subr.mxu0 0.0
    %3660 = vmatpush1.msra.mxu0 0.0
    %3661 = vmatprep.subr.mxu0 0.0
    %3662 = vmatpush1.msra.mxu0 0.0
    %3663 = vmatprep.subr.mxu0 0.0
    %3664 = vmatpush1.msra.mxu0 0.0
    %3665 = vmatprep.subr.mxu0 0.0
    %3666 = vmatpush1.msra.mxu0 0.0
    %3667 = vmatprep.subr.mxu0 0.0
    %3668 = vmatpush1.msra.mxu0 0.0
    %3669 = vmatprep.subr.mxu0 0.0
    %3670 = vmatpush1.msra.mxu0 0.0
    %3671 = vmatprep.subr.mxu0 0.0
    %3672 = vmatpush1.msra.mxu0 0.0
    %3673 = vmatprep.subr.mxu0 0.0
    %3674 = vmatpush1.msra.mxu0 0.0
    %3675 = vmatprep.subr.mxu0 0.0
    %3676 = vmatpush1.msra.mxu0 0.0
    %3677 = vmatprep.subr.mxu0 0.0
    %3678 = vmatpush1.msra.mxu0 0.0
    %3679 = vmatprep.subr.mxu0 0.0
    %3680 = vmatpush1.msra.mxu0 0.0
    %3681 = vmatprep.subr.mxu0 0.0
    %3682 = vmatpush1.msra.mxu0 0.0
    %3683 = vmatprep.subr.mxu0 0.0
    %3684 = vmatpush1.msra.mxu0 0.0
    %3685 = vmatprep.mubr.f32.mxu0 0.0
    %3686 = vmatmul.mubr.f32.gmra.mrb[0].mxu0 %v3230
    %v3687 = vpop.f32.mrb[0].mxu0
    %v3688 = vadd.f32 0.0, %v3687
    %v3689 = vpop.f32.mrb[0].mxu0
    %v3690 = vadd.f32 0.0, %v3689
    %3691 = vdwg.mxu0
    %v3692 = vadd.f32 %v3475, %v3617
    %v3693 = vadd.f32 %v3477, %v3619
    %v3694 = vadd.f32 %v3546, %v3688
    %v3695 = vadd.f32 %v3548, %v3690
    %v3696 = vxor.u32 %v3692, 2147483648
    %v3697 = vmul.f32 %v3696, 1.442695
    %v3698 = vpow.pop %v3697
    %v3699 = vadd.f32 %v3698, 1.0
    %v3700 = vrcp.pop %v3699
    %v3701 = vmul.f32 1.0, %v3700
    %v3702 = vxor.u32 %v3693, 2147483648
    %v3703 = vmul.f32 %v3702, 1.442695
    %v3704 = vpow.pop %v3703
    %v3705 = vadd.f32 %v3704, 1.0
    %v3706 = vrcp.pop %v3705
    %v3707 = vmul.f32 1.0, %v3706
    %v3708 = vtanh.pop %v3694
    %v3709 = vxor.u32 %v3695, 2147483648
    %v3710 = vmul.f32 %v3709, 1.442695
    %v3711 = vpow.pop %v3710
    %v3712 = vadd.f32 %v3711, 1.0
    %v3713 = vrcp.pop %v3712
    %v3714 = vmul.f32 1.0, %v3713
    %v3715 = vmul.f32 %v3707, %v3228
    %v3716 = vmul.f32 %v3701, %v3708
    %v3717 = vadd.f32 %v3715, %v3716
    %v3718 = vtanh.pop %v3717
    %v3719 = vmul.f32 %v3714, %v3718
    %s3720 = smul.u32 7, 4
    %s3721 = smul.addr %s3720, 8
    %s3722 = scalar_lea.vmem [#allocation2], %s3721
    %v3723 = vld [vmem:[%s3722] sm:$0xff]
    %v3724 = vld [vmem:[%s3722 + $0x8] sm:$0xff]
    %v3725 = vld [vmem:[%s3722 + $0x10] sm:$0xff]
    %v3726 = vld [vmem:[%s3722 + $0x18] sm:$0xff]
    %3727 = vmatprep.subr.mxu0 %v396
    %3728 = vmatpush1.msra.mxu0 %v395
    %3729 = vmatprep.subr.mxu0 %v400
    %3730 = vmatpush1.msra.mxu0 %v399
    %3731 = vmatprep.subr.mxu0 %v404
    %3732 = vmatpush1.msra.mxu0 %v403
    %3733 = vmatprep.subr.mxu0 %v408
    %3734 = vmatpush1.msra.mxu0 %v407
    %3735 = vmatprep.subr.mxu0 %v412
    %3736 = vmatpush1.msra.mxu0 %v411
    %3737 = vmatprep.subr.mxu0 %v416
    %3738 = vmatpush1.msra.mxu0 %v415
    %3739 = vmatprep.subr.mxu0 %v420
    %3740 = vmatpush1.msra.mxu0 %v419
    %3741 = vmatprep.subr.mxu0 %v424
    %3742 = vmatpush1.msra.mxu0 %v423
    %3743 = vmatprep.subr.mxu0 %v428
    %3744 = vmatpush1.msra.mxu0 %v427
    %3745 = vmatprep.subr.mxu0 %v432
    %3746 = vmatpush1.msra.mxu0 %v431
    %3747 = vmatprep.subr.mxu0 %v436
    %3748 = vmatpush1.msra.mxu0 %v435
    %3749 = vmatprep.subr.mxu0 %v440
    %3750 = vmatpush1.msra.mxu0 %v439
    %3751 = vmatprep.subr.mxu0 %v444
    %3752 = vmatpush1.msra.mxu0 %v443
    %3753 = vmatprep.subr.mxu0 %v448
    %3754 = vmatpush1.msra.mxu0 %v447
    %3755 = vmatprep.subr.mxu0 %v452
    %3756 = vmatpush1.msra.mxu0 %v451
    %3757 = vmatprep.subr.mxu0 %v456
    %3758 = vmatpush1.msra.mxu0 %v455
    %3759 = vmatprep.subr.mxu0 0.0
    %3760 = vmatpush1.msra.mxu0 0.0
    %3761 = vmatprep.subr.mxu0 0.0
    %3762 = vmatpush1.msra.mxu0 0.0
    %3763 = vmatprep.subr.mxu0 0.0
    %3764 = vmatpush1.msra.mxu0 0.0
    %3765 = vmatprep.subr.mxu0 0.0
    %3766 = vmatpush1.msra.mxu0 0.0
    %3767 = vmatprep.subr.mxu0 0.0
    %3768 = vmatpush1.msra.mxu0 0.0
    %3769 = vmatprep.subr.mxu0 0.0
    %3770 = vmatpush1.msra.mxu0 0.0
    %3771 = vmatprep.subr.mxu0 0.0
    %3772 = vmatpush1.msra.mxu0 0.0
    %3773 = vmatprep.subr.mxu0 0.0
    %3774 = vmatpush1.msra.mxu0 0.0
    %3775 = vmatprep.subr.mxu0 0.0
    %3776 = vmatpush1.msra.mxu0 0.0
    %3777 = vmatprep.subr.mxu0 0.0
    %3778 = vmatpush1.msra.mxu0 0.0
    %3779 = vmatprep.subr.mxu0 0.0
    %3780 = vmatpush1.msra.mxu0 0.0
    %3781 = vmatprep.subr.mxu0 0.0
    %3782 = vmatpush1.msra.mxu0 0.0
    %3783 = vmatprep.subr.mxu0 0.0
    %3784 = vmatpush1.msra.mxu0 0.0
    %3785 = vmatprep.subr.mxu0 0.0
    %3786 = vmatpush1.msra.mxu0 0.0
    %3787 = vmatprep.subr.mxu0 0.0
    %3788 = vmatpush1.msra.mxu0 0.0
    %3789 = vmatprep.subr.mxu0 0.0
    %3790 = vmatpush1.msra.mxu0 0.0
    %3791 = vmatprep.mubr.f32.mxu0 0.0
    %3792 = vmatmul.mubr.f32.gmra.mrb[0].mxu0 %v3407
    %v3793 = vpop.f32.mrb[0].mxu0
    %v3794 = vadd.f32 0.0, %v3793
    %v3795 = vpop.f32.mrb[0].mxu0
    %v3796 = vadd.f32 0.0, %v3795
    %3797 = vdwg.mxu0
    %3798 = vmatprep.subr.mxu0 %v398
    %3799 = vmatpush1.msra.mxu0 %v397
    %3800 = vmatprep.subr.mxu0 %v402
    %3801 = vmatpush1.msra.mxu0 %v401
    %3802 = vmatprep.subr.mxu0 %v406
    %3803 = vmatpush1.msra.mxu0 %v405
    %3804 = vmatprep.subr.mxu0 %v410
    %3805 = vmatpush1.msra.mxu0 %v409
    %3806 = vmatprep.subr.mxu0 %v414
    %3807 = vmatpush1.msra.mxu0 %v413
    %3808 = vmatprep.subr.mxu0 %v418
    %3809 = vmatpush1.msra.mxu0 %v417
    %3810 = vmatprep.subr.mxu0 %v422
    %3811 = vmatpush1.msra.mxu0 %v421
    %3812 = vmatprep.subr.mxu0 %v426
    %3813 = vmatpush1.msra.mxu0 %v425
    %3814 = vmatprep.subr.mxu0 %v430
    %3815 = vmatpush1.msra.mxu0 %v429
    %3816 = vmatprep.subr.mxu0 %v434
    %3817 = vmatpush1.msra.mxu0 %v433
    %3818 = vmatprep.subr.mxu0 %v438
    %3819 = vmatpush1.msra.mxu0 %v437
    %3820 = vmatprep.subr.mxu0 %v442
    %3821 = vmatpush1.msra.mxu0 %v441
    %3822 = vmatprep.subr.mxu0 %v446
    %3823 = vmatpush1.msra.mxu0 %v445
    %3824 = vmatprep.subr.mxu0 %v450
    %3825 = vmatpush1.msra.mxu0 %v449
    %3826 = vmatprep.subr.mxu0 %v454
    %3827 = vmatpush1.msra.mxu0 %v453
    %3828 = vmatprep.subr.mxu0 %v458
    %3829 = vmatpush1.msra.mxu0 %v457
    %3830 = vmatprep.subr.mxu0 0.0
    %3831 = vmatpush1.msra.mxu0 0.0
    %3832 = vmatprep.subr.mxu0 0.0
    %3833 = vmatpush1.msra.mxu0 0.0
    %3834 = vmatprep.subr.mxu0 0.0
    %3835 = vmatpush1.msra.mxu0 0.0
    %3836 = vmatprep.subr.mxu0 0.0
    %3837 = vmatpush1.msra.mxu0 0.0
    %3838 = vmatprep.subr.mxu0 0.0
    %3839 = vmatpush1.msra.mxu0 0.0
    %3840 = vmatprep.subr.mxu0 0.0
    %3841 = vmatpush1.msra.mxu0 0.0
    %3842 = vmatprep.subr.mxu0 0.0
    %3843 = vmatpush1.msra.mxu0 0.0
    %3844 = vmatprep.subr.mxu0 0.0
    %3845 = vmatpush1.msra.mxu0 0.0
    %3846 = vmatprep.subr.mxu0 0.0
    %3847 = vmatpush1.msra.mxu0 0.0
    %3848 = vmatprep.subr.mxu0 0.0
    %3849 = vmatpush1.msra.mxu0 0.0
    %3850 = vmatprep.subr.mxu0 0.0
    %3851 = vmatpush1.msra.mxu0 0.0
    %3852 = vmatprep.subr.mxu0 0.0
    %3853 = vmatpush1.msra.mxu0 0.0
    %3854 = vmatprep.subr.mxu0 0.0
    %3855 = vmatpush1.msra.mxu0 0.0
    %3856 = vmatprep.subr.mxu0 0.0
    %3857 = vmatpush1.msra.mxu0 0.0
    %3858 = vmatprep.subr.mxu0 0.0
    %3859 = vmatpush1.msra.mxu0 0.0
    %3860 = vmatprep.subr.mxu0 0.0
    %3861 = vmatpush1.msra.mxu0 0.0
    %3862 = vmatprep.mubr.f32.mxu0 0.0
    %3863 = vmatmul.mubr.f32.gmra.mrb[0].mxu0 %v3407
    %v3864 = vpop.f32.mrb[0].mxu0
    %v3865 = vadd.f32 0.0, %v3864
    %v3866 = vpop.f32.mrb[0].mxu0
    %v3867 = vadd.f32 0.0, %v3866
    %3868 = vdwg.mxu0
    %v3869 = vadd.f32 %v3723, %v3794
    %v3870 = vadd.f32 %v3724, %v3796
    %v3871 = vadd.f32 %v3725, %v3865
    %v3872 = vadd.f32 %v3726, %v3867
    %v3873 = vxor.u32 %v3869, 2147483648
    %v3874 = vmul.f32 %v3873, 1.442695
    %v3875 = vpow.pop %v3874
    %v3876 = vadd.f32 %v3875, 1.0
    %v3877 = vrcp.pop %v3876
    %v3878 = vmul.f32 1.0, %v3877
    %v3879 = vxor.u32 %v3870, 2147483648
    %v3880 = vmul.f32 %v3879, 1.442695
    %v3881 = vpow.pop %v3880
    %v3882 = vadd.f32 %v3881, 1.0
    %v3883 = vrcp.pop %v3882
    %v3884 = vmul.f32 1.0, %v3883
    %v3885 = vtanh.pop %v3871
    %v3886 = vxor.u32 %v3872, 2147483648
    %v3887 = vmul.f32 %v3886, 1.442695
    %v3888 = vpow.pop %v3887
    %v3889 = vadd.f32 %v3888, 1.0
    %v3890 = vrcp.pop %v3889
    %v3891 = vmul.f32 1.0, %v3890
    %v3892 = vmul.f32 %v3884, %v3405
    %v3893 = vmul.f32 %v3878, %v3885
    %v3894 = vadd.f32 %v3892, %v3893
    %v3895 = vtanh.pop %v3894
    %v3896 = vmul.f32 %v3891, %v3895
    %3897 = vmatprep.subr.mxu0 %v460
    %3898 = vmatpush1.msra.mxu0 %v459
    %3899 = vmatprep.subr.mxu0 %v464
    %3900 = vmatpush1.msra.mxu0 %v463
    %3901 = vmatprep.subr.mxu0 %v468
    %3902 = vmatpush1.msra.mxu0 %v467
    %3903 = vmatprep.subr.mxu0 %v472
    %3904 = vmatpush1.msra.mxu0 %v471
    %3905 = vmatprep.subr.mxu0 %v476
    %3906 = vmatpush1.msra.mxu0 %v475
    %3907 = vmatprep.subr.mxu0 %v480
    %3908 = vmatpush1.msra.mxu0 %v479
    %3909 = vmatprep.subr.mxu0 %v484
    %3910 = vmatpush1.msra.mxu0 %v483
    %3911 = vmatprep.subr.mxu0 %v488
    %3912 = vmatpush1.msra.mxu0 %v487
    %3913 = vmatprep.subr.mxu0 %v492
    %3914 = vmatpush1.msra.mxu0 %v491
    %3915 = vmatprep.subr.mxu0 %v496
    %3916 = vmatpush1.msra.mxu0 %v495
    %3917 = vmatprep.subr.mxu0 %v500
    %3918 = vmatpush1.msra.mxu0 %v499
    %3919 = vmatprep.subr.mxu0 %v504
    %3920 = vmatpush1.msra.mxu0 %v503
    %3921 = vmatprep.subr.mxu0 %v508
    %3922 = vmatpush1.msra.mxu0 %v507
    %3923 = vmatprep.subr.mxu0 %v512
    %3924 = vmatpush1.msra.mxu0 %v511
    %3925 = vmatprep.subr.mxu0 %v516
    %3926 = vmatpush1.msra.mxu0 %v515
    %3927 = vmatprep.subr.mxu0 %v520
    %3928 = vmatpush1.msra.mxu0 %v519
    %3929 = vmatprep.subr.mxu0 0.0
    %3930 = vmatpush1.msra.mxu0 0.0
    %3931 = vmatprep.subr.mxu0 0.0
    %3932 = vmatpush1.msra.mxu0 0.0
    %3933 = vmatprep.subr.mxu0 0.0
    %3934 = vmatpush1.msra.mxu0 0.0
    %3935 = vmatprep.subr.mxu0 0.0
    %3936 = vmatpush1.msra.mxu0 0.0
    %3937 = vmatprep.subr.mxu0 0.0
    %3938 = vmatpush1.msra.mxu0 0.0
    %3939 = vmatprep.subr.mxu0 0.0
    %3940 = vmatpush1.msra.mxu0 0.0
    %3941 = vmatprep.subr.mxu0 0.0
    %3942 = vmatpush1.msra.mxu0 0.0
    %3943 = vmatprep.subr.mxu0 0.0
    %3944 = vmatpush1.msra.mxu0 0.0
    %3945 = vmatprep.subr.mxu0 0.0
    %3946 = vmatpush1.msra.mxu0 0.0
    %3947 = vmatprep.subr.mxu0 0.0
    %3948 = vmatpush1.msra.mxu0 0.0
    %3949 = vmatprep.subr.mxu0 0.0
    %3950 = vmatpush1.msra.mxu0 0.0
    %3951 = vmatprep.subr.mxu0 0.0
    %3952 = vmatpush1.msra.mxu0 0.0
    %3953 = vmatprep.subr.mxu0 0.0
    %3954 = vmatpush1.msra.mxu0 0.0
    %3955 = vmatprep.subr.mxu0 0.0
    %3956 = vmatpush1.msra.mxu0 0.0
    %3957 = vmatprep.subr.mxu0 0.0
    %3958 = vmatpush1.msra.mxu0 0.0
    %3959 = vmatprep.subr.mxu0 0.0
    %3960 = vmatpush1.msra.mxu0 0.0
    %3961 = vmatprep.mubr.f32.mxu0 0.0
    %3962 = vmatmul.mubr.f32.gmra.mrb[0].mxu0 %v3407
    %v3963 = vpop.f32.mrb[0].mxu0
    %v3964 = vadd.f32 %v946, %v3963
    %v3965 = vpop.f32.mrb[0].mxu0
    %v3966 = vadd.f32 %v950, %v3965
    %3967 = vdwg.mxu0
    %3968 = vmatprep.subr.mxu0 %v462
    %3969 = vmatpush1.msra.mxu0 %v461
    %3970 = vmatprep.subr.mxu0 %v466
    %3971 = vmatpush1.msra.mxu0 %v465
    %3972 = vmatprep.subr.mxu0 %v470
    %3973 = vmatpush1.msra.mxu0 %v469
    %3974 = vmatprep.subr.mxu0 %v474
    %3975 = vmatpush1.msra.mxu0 %v473
    %3976 = vmatprep.subr.mxu0 %v478
    %3977 = vmatpush1.msra.mxu0 %v477
    %3978 = vmatprep.subr.mxu0 %v482
    %3979 = vmatpush1.msra.mxu0 %v481
    %3980 = vmatprep.subr.mxu0 %v486
    %3981 = vmatpush1.msra.mxu0 %v485
    %3982 = vmatprep.subr.mxu0 %v490
    %3983 = vmatpush1.msra.mxu0 %v489
    %3984 = vmatprep.subr.mxu0 %v494
    %3985 = vmatpush1.msra.mxu0 %v493
    %3986 = vmatprep.subr.mxu0 %v498
    %3987 = vmatpush1.msra.mxu0 %v497
    %3988 = vmatprep.subr.mxu0 %v502
    %3989 = vmatpush1.msra.mxu0 %v501
    %3990 = vmatprep.subr.mxu0 %v506
    %3991 = vmatpush1.msra.mxu0 %v505
    %3992 = vmatprep.subr.mxu0 %v510
    %3993 = vmatpush1.msra.mxu0 %v509
    %3994 = vmatprep.subr.mxu0 %v514
    %3995 = vmatpush1.msra.mxu0 %v513
    %3996 = vmatprep.subr.mxu0 %v518
    %3997 = vmatpush1.msra.mxu0 %v517
    %3998 = vmatprep.subr.mxu0 %v522
    %3999 = vmatpush1.msra.mxu0 %v521
    %4000 = vmatprep.subr.mxu0 0.0
    %4001 = vmatpush1.msra.mxu0 0.0
    %4002 = vmatprep.subr.mxu0 0.0
    %4003 = vmatpush1.msra.mxu0 0.0
    %4004 = vmatprep.subr.mxu0 0.0
    %4005 = vmatpush1.msra.mxu0 0.0
    %4006 = vmatprep.subr.mxu0 0.0
    %4007 = vmatpush1.msra.mxu0 0.0
    %4008 = vmatprep.subr.mxu0 0.0
    %4009 = vmatpush1.msra.mxu0 0.0
    %4010 = vmatprep.subr.mxu0 0.0
    %4011 = vmatpush1.msra.mxu0 0.0
    %4012 = vmatprep.subr.mxu0 0.0
    %4013 = vmatpush1.msra.mxu0 0.0
    %4014 = vmatprep.subr.mxu0 0.0
    %4015 = vmatpush1.msra.mxu0 0.0
    %4016 = vmatprep.subr.mxu0 0.0
    %4017 = vmatpush1.msra.mxu0 0.0
    %4018 = vmatprep.subr.mxu0 0.0
    %4019 = vmatpush1.msra.mxu0 0.0
    %4020 = vmatprep.subr.mxu0 0.0
    %4021 = vmatpush1.msra.mxu0 0.0
    %4022 = vmatprep.subr.mxu0 0.0
    %4023 = vmatpush1.msra.mxu0 0.0
    %4024 = vmatprep.subr.mxu0 0.0
    %4025 = vmatpush1.msra.mxu0 0.0
    %4026 = vmatprep.subr.mxu0 0.0
    %4027 = vmatpush1.msra.mxu0 0.0
    %4028 = vmatprep.subr.mxu0 0.0
    %4029 = vmatpush1.msra.mxu0 0.0
    %4030 = vmatprep.subr.mxu0 0.0
    %4031 = vmatpush1.msra.mxu0 0.0
    %4032 = vmatprep.mubr.f32.mxu0 0.0
    %4033 = vmatmul.mubr.f32.gmra.mrb[0].mxu0 %v3407
    %v4034 = vpop.f32.mrb[0].mxu0
    %v4035 = vadd.f32 %v954, %v4034
    %v4036 = vpop.f32.mrb[0].mxu0
    %v4037 = vadd.f32 %v958, %v4036
    %4038 = vdwg.mxu0
    %4039 = vmatprep.subr.mxu0 %v524
    %4040 = vmatpush1.msra.mxu0 %v523
    %4041 = vmatprep.subr.mxu0 %v528
    %4042 = vmatpush1.msra.mxu0 %v527
    %4043 = vmatprep.subr.mxu0 %v532
    %4044 = vmatpush1.msra.mxu0 %v531
    %4045 = vmatprep.subr.mxu0 %v536
    %4046 = vmatpush1.msra.mxu0 %v535
    %4047 = vmatprep.subr.mxu0 %v540
    %4048 = vmatpush1.msra.mxu0 %v539
    %4049 = vmatprep.subr.mxu0 %v544
    %4050 = vmatpush1.msra.mxu0 %v543
    %4051 = vmatprep.subr.mxu0 %v548
    %4052 = vmatpush1.msra.mxu0 %v547
    %4053 = vmatprep.subr.mxu0 %v552
    %4054 = vmatpush1.msra.mxu0 %v551
    %4055 = vmatprep.subr.mxu0 %v556
    %4056 = vmatpush1.msra.mxu0 %v555
    %4057 = vmatprep.subr.mxu0 %v560
    %4058 = vmatpush1.msra.mxu0 %v559
    %4059 = vmatprep.subr.mxu0 %v564
    %4060 = vmatpush1.msra.mxu0 %v563
    %4061 = vmatprep.subr.mxu0 %v568
    %4062 = vmatpush1.msra.mxu0 %v567
    %4063 = vmatprep.subr.mxu0 %v572
    %4064 = vmatpush1.msra.mxu0 %v571
    %4065 = vmatprep.subr.mxu0 %v576
    %4066 = vmatpush1.msra.mxu0 %v575
    %4067 = vmatprep.subr.mxu0 %v580
    %4068 = vmatpush1.msra.mxu0 %v579
    %4069 = vmatprep.subr.mxu0 %v584
    %4070 = vmatpush1.msra.mxu0 %v583
    %4071 = vmatprep.subr.mxu0 0.0
    %4072 = vmatpush1.msra.mxu0 0.0
    %4073 = vmatprep.subr.mxu0 0.0
    %4074 = vmatpush1.msra.mxu0 0.0
    %4075 = vmatprep.subr.mxu0 0.0
    %4076 = vmatpush1.msra.mxu0 0.0
    %4077 = vmatprep.subr.mxu0 0.0
    %4078 = vmatpush1.msra.mxu0 0.0
    %4079 = vmatprep.subr.mxu0 0.0
    %4080 = vmatpush1.msra.mxu0 0.0
    %4081 = vmatprep.subr.mxu0 0.0
    %4082 = vmatpush1.msra.mxu0 0.0
    %4083 = vmatprep.subr.mxu0 0.0
    %4084 = vmatpush1.msra.mxu0 0.0
    %4085 = vmatprep.subr.mxu0 0.0
    %4086 = vmatpush1.msra.mxu0 0.0
    %4087 = vmatprep.subr.mxu0 0.0
    %4088 = vmatpush1.msra.mxu0 0.0
    %4089 = vmatprep.subr.mxu0 0.0
    %4090 = vmatpush1.msra.mxu0 0.0
    %4091 = vmatprep.subr.mxu0 0.0
    %4092 = vmatpush1.msra.mxu0 0.0
    %4093 = vmatprep.subr.mxu0 0.0
    %4094 = vmatpush1.msra.mxu0 0.0
    %4095 = vmatprep.subr.mxu0 0.0
    %4096 = vmatpush1.msra.mxu0 0.0
    %4097 = vmatprep.subr.mxu0 0.0
    %4098 = vmatpush1.msra.mxu0 0.0
    %4099 = vmatprep.subr.mxu0 0.0
    %4100 = vmatpush1.msra.mxu0 0.0
    %4101 = vmatprep.subr.mxu0 0.0
    %4102 = vmatpush1.msra.mxu0 0.0
    %4103 = vmatprep.mubr.f32.mxu0 0.0
    %4104 = vmatmul.mubr.f32.gmra.mrb[0].mxu0 %v3719
    %v4105 = vpop.f32.mrb[0].mxu0
    %v4106 = vadd.f32 0.0, %v4105
    %v4107 = vpop.f32.mrb[0].mxu0
    %v4108 = vadd.f32 0.0, %v4107
    %4109 = vdwg.mxu0
    %4110 = vmatprep.subr.mxu0 %v526
    %4111 = vmatpush1.msra.mxu0 %v525
    %4112 = vmatprep.subr.mxu0 %v530
    %4113 = vmatpush1.msra.mxu0 %v529
    %4114 = vmatprep.subr.mxu0 %v534
    %4115 = vmatpush1.msra.mxu0 %v533
    %4116 = vmatprep.subr.mxu0 %v538
    %4117 = vmatpush1.msra.mxu0 %v537
    %4118 = vmatprep.subr.mxu0 %v542
    %4119 = vmatpush1.msra.mxu0 %v541
    %4120 = vmatprep.subr.mxu0 %v546
    %4121 = vmatpush1.msra.mxu0 %v545
    %4122 = vmatprep.subr.mxu0 %v550
    %4123 = vmatpush1.msra.mxu0 %v549
    %4124 = vmatprep.subr.mxu0 %v554
    %4125 = vmatpush1.msra.mxu0 %v553
    %4126 = vmatprep.subr.mxu0 %v558
    %4127 = vmatpush1.msra.mxu0 %v557
    %4128 = vmatprep.subr.mxu0 %v562
    %4129 = vmatpush1.msra.mxu0 %v561
    %4130 = vmatprep.subr.mxu0 %v566
    %4131 = vmatpush1.msra.mxu0 %v565
    %4132 = vmatprep.subr.mxu0 %v570
    %4133 = vmatpush1.msra.mxu0 %v569
    %4134 = vmatprep.subr.mxu0 %v574
    %4135 = vmatpush1.msra.mxu0 %v573
    %4136 = vmatprep.subr.mxu0 %v578
    %4137 = vmatpush1.msra.mxu0 %v577
    %4138 = vmatprep.subr.mxu0 %v582
    %4139 = vmatpush1.msra.mxu0 %v581
    %4140 = vmatprep.subr.mxu0 %v586
    %4141 = vmatpush1.msra.mxu0 %v585
    %4142 = vmatprep.subr.mxu0 0.0
    %4143 = vmatpush1.msra.mxu0 0.0
    %4144 = vmatprep.subr.mxu0 0.0
    %4145 = vmatpush1.msra.mxu0 0.0
    %4146 = vmatprep.subr.mxu0 0.0
    %4147 = vmatpush1.msra.mxu0 0.0
    %4148 = vmatprep.subr.mxu0 0.0
    %4149 = vmatpush1.msra.mxu0 0.0
    %4150 = vmatprep.subr.mxu0 0.0
    %4151 = vmatpush1.msra.mxu0 0.0
    %4152 = vmatprep.subr.mxu0 0.0
    %4153 = vmatpush1.msra.mxu0 0.0
    %4154 = vmatprep.subr.mxu0 0.0
    %4155 = vmatpush1.msra.mxu0 0.0
    %4156 = vmatprep.subr.mxu0 0.0
    %4157 = vmatpush1.msra.mxu0 0.0
    %4158 = vmatprep.subr.mxu0 0.0
    %4159 = vmatpush1.msra.mxu0 0.0
    %4160 = vmatprep.subr.mxu0 0.0
    %4161 = vmatpush1.msra.mxu0 0.0
    %4162 = vmatprep.subr.mxu0 0.0
    %4163 = vmatpush1.msra.mxu0 0.0
    %4164 = vmatprep.subr.mxu0 0.0
    %4165 = vmatpush1.msra.mxu0 0.0
    %4166 = vmatprep.subr.mxu0 0.0
    %4167 = vmatpush1.msra.mxu0 0.0
    %4168 = vmatprep.subr.mxu0 0.0
    %4169 = vmatpush1.msra.mxu0 0.0
    %4170 = vmatprep.subr.mxu0 0.0
    %4171 = vmatpush1.msra.mxu0 0.0
    %4172 = vmatprep.subr.mxu0 0.0
    %4173 = vmatpush1.msra.mxu0 0.0
    %4174 = vmatprep.mubr.f32.mxu0 0.0
    %4175 = vmatmul.mubr.f32.gmra.mrb[0].mxu0 %v3719
    %v4176 = vpop.f32.mrb[0].mxu0
    %v4177 = vadd.f32 0.0, %v4176
    %v4178 = vpop.f32.mrb[0].mxu0
    %v4179 = vadd.f32 0.0, %v4178
    %4180 = vdwg.mxu0
    %v4181 = vadd.f32 %v3964, %v4106
    %v4182 = vadd.f32 %v3966, %v4108
    %v4183 = vadd.f32 %v4035, %v4177
    %v4184 = vadd.f32 %v4037, %v4179
    %v4185 = vxor.u32 %v4181, 2147483648
    %v4186 = vmul.f32 %v4185, 1.442695
    %v4187 = vpow.pop %v4186
    %v4188 = vadd.f32 %v4187, 1.0
    %v4189 = vrcp.pop %v4188
    %v4190 = vmul.f32 1.0, %v4189
    %v4191 = vxor.u32 %v4182, 2147483648
    %v4192 = vmul.f32 %v4191, 1.442695
    %v4193 = vpow.pop %v4192
    %v4194 = vadd.f32 %v4193, 1.0
    %v4195 = vrcp.pop %v4194
    %v4196 = vmul.f32 1.0, %v4195
    %v4197 = vtanh.pop %v4183
    %v4198 = vxor.u32 %v4184, 2147483648
    %v4199 = vmul.f32 %v4198, 1.442695
    %v4200 = vpow.pop %v4199
    %v4201 = vadd.f32 %v4200, 1.0
    %v4202 = vrcp.pop %v4201
    %v4203 = vmul.f32 1.0, %v4202
    %v4204 = vmul.f32 %v4196, %v3717
    %v4205 = vmul.f32 %v4190, %v4197
    %v4206 = vadd.f32 %v4204, %v4205
    %v4207 = vtanh.pop %v4206
    %v4208 = vmul.f32 %v4203, %v4207
    %4209 = vmatprep.subr.mxu0 %v460
    %4210 = vmatpush1.msra.mxu0 %v459
    %4211 = vmatprep.subr.mxu0 %v464
    %4212 = vmatpush1.msra.mxu0 %v463
    %4213 = vmatprep.subr.mxu0 %v468
    %4214 = vmatpush1.msra.mxu0 %v467
    %4215 = vmatprep.subr.mxu0 %v472
    %4216 = vmatpush1.msra.mxu0 %v471
    %4217 = vmatprep.subr.mxu0 %v476
    %4218 = vmatpush1.msra.mxu0 %v475
    %4219 = vmatprep.subr.mxu0 %v480
    %4220 = vmatpush1.msra.mxu0 %v479
    %4221 = vmatprep.subr.mxu0 %v484
    %4222 = vmatpush1.msra.mxu0 %v483
    %4223 = vmatprep.subr.mxu0 %v488
    %4224 = vmatpush1.msra.mxu0 %v487
    %4225 = vmatprep.subr.mxu0 %v492
    %4226 = vmatpush1.msra.mxu0 %v491
    %4227 = vmatprep.subr.mxu0 %v496
    %4228 = vmatpush1.msra.mxu0 %v495
    %4229 = vmatprep.subr.mxu0 %v500
    %4230 = vmatpush1.msra.mxu0 %v499
    %4231 = vmatprep.subr.mxu0 %v504
    %4232 = vmatpush1.msra.mxu0 %v503
    %4233 = vmatprep.subr.mxu0 %v508
    %4234 = vmatpush1.msra.mxu0 %v507
    %4235 = vmatprep.subr.mxu0 %v512
    %4236 = vmatpush1.msra.mxu0 %v511
    %4237 = vmatprep.subr.mxu0 %v516
    %4238 = vmatpush1.msra.mxu0 %v515
    %4239 = vmatprep.subr.mxu0 %v520
    %4240 = vmatpush1.msra.mxu0 %v519
    %4241 = vmatprep.subr.mxu0 0.0
    %4242 = vmatpush1.msra.mxu0 0.0
    %4243 = vmatprep.subr.mxu0 0.0
    %4244 = vmatpush1.msra.mxu0 0.0
    %4245 = vmatprep.subr.mxu0 0.0
    %4246 = vmatpush1.msra.mxu0 0.0
    %4247 = vmatprep.subr.mxu0 0.0
    %4248 = vmatpush1.msra.mxu0 0.0
    %4249 = vmatprep.subr.mxu0 0.0
    %4250 = vmatpush1.msra.mxu0 0.0
    %4251 = vmatprep.subr.mxu0 0.0
    %4252 = vmatpush1.msra.mxu0 0.0
    %4253 = vmatprep.subr.mxu0 0.0
    %4254 = vmatpush1.msra.mxu0 0.0
    %4255 = vmatprep.subr.mxu0 0.0
    %4256 = vmatpush1.msra.mxu0 0.0
    %4257 = vmatprep.subr.mxu0 0.0
    %4258 = vmatpush1.msra.mxu0 0.0
    %4259 = vmatprep.subr.mxu0 0.0
    %4260 = vmatpush1.msra.mxu0 0.0
    %4261 = vmatprep.subr.mxu0 0.0
    %4262 = vmatpush1.msra.mxu0 0.0
    %4263 = vmatprep.subr.mxu0 0.0
    %4264 = vmatpush1.msra.mxu0 0.0
    %4265 = vmatprep.subr.mxu0 0.0
    %4266 = vmatpush1.msra.mxu0 0.0
    %4267 = vmatprep.subr.mxu0 0.0
    %4268 = vmatpush1.msra.mxu0 0.0
    %4269 = vmatprep.subr.mxu0 0.0
    %4270 = vmatpush1.msra.mxu0 0.0
    %4271 = vmatprep.subr.mxu0 0.0
    %4272 = vmatpush1.msra.mxu0 0.0
    %4273 = vmatprep.mubr.f32.mxu0 0.0
    %4274 = vmatmul.mubr.f32.gmra.mrb[0].mxu0 %v3896
    %v4275 = vpop.f32.mrb[0].mxu0
    %v4276 = vadd.f32 %v946, %v4275
    %v4277 = vpop.f32.mrb[0].mxu0
    %v4278 = vadd.f32 %v950, %v4277
    %4279 = vdwg.mxu0
    %4280 = vmatprep.subr.mxu0 %v462
    %4281 = vmatpush1.msra.mxu0 %v461
    %4282 = vmatprep.subr.mxu0 %v466
    %4283 = vmatpush1.msra.mxu0 %v465
    %4284 = vmatprep.subr.mxu0 %v470
    %4285 = vmatpush1.msra.mxu0 %v469
    %4286 = vmatprep.subr.mxu0 %v474
    %4287 = vmatpush1.msra.mxu0 %v473
    %4288 = vmatprep.subr.mxu0 %v478
    %4289 = vmatpush1.msra.mxu0 %v477
    %4290 = vmatprep.subr.mxu0 %v482
    %4291 = vmatpush1.msra.mxu0 %v481
    %4292 = vmatprep.subr.mxu0 %v486
    %4293 = vmatpush1.msra.mxu0 %v485
    %4294 = vmatprep.subr.mxu0 %v490
    %4295 = vmatpush1.msra.mxu0 %v489
    %4296 = vmatprep.subr.mxu0 %v494
    %4297 = vmatpush1.msra.mxu0 %v493
    %4298 = vmatprep.subr.mxu0 %v498
    %4299 = vmatpush1.msra.mxu0 %v497
    %4300 = vmatprep.subr.mxu0 %v502
    %4301 = vmatpush1.msra.mxu0 %v501
    %4302 = vmatprep.subr.mxu0 %v506
    %4303 = vmatpush1.msra.mxu0 %v505
    %4304 = vmatprep.subr.mxu0 %v510
    %4305 = vmatpush1.msra.mxu0 %v509
    %4306 = vmatprep.subr.mxu0 %v514
    %4307 = vmatpush1.msra.mxu0 %v513
    %4308 = vmatprep.subr.mxu0 %v518
    %4309 = vmatpush1.msra.mxu0 %v517
    %4310 = vmatprep.subr.mxu0 %v522
    %4311 = vmatpush1.msra.mxu0 %v521
    %4312 = vmatprep.subr.mxu0 0.0
    %4313 = vmatpush1.msra.mxu0 0.0
    %4314 = vmatprep.subr.mxu0 0.0
    %4315 = vmatpush1.msra.mxu0 0.0
    %4316 = vmatprep.subr.mxu0 0.0
    %4317 = vmatpush1.msra.mxu0 0.0
    %4318 = vmatprep.subr.mxu0 0.0
    %4319 = vmatpush1.msra.mxu0 0.0
    %4320 = vmatprep.subr.mxu0 0.0
    %4321 = vmatpush1.msra.mxu0 0.0
    %4322 = vmatprep.subr.mxu0 0.0
    %4323 = vmatpush1.msra.mxu0 0.0
    %4324 = vmatprep.subr.mxu0 0.0
    %4325 = vmatpush1.msra.mxu0 0.0
    %4326 = vmatprep.subr.mxu0 0.0
    %4327 = vmatpush1.msra.mxu0 0.0
    %4328 = vmatprep.subr.mxu0 0.0
    %4329 = vmatpush1.msra.mxu0 0.0
    %4330 = vmatprep.subr.mxu0 0.0
    %4331 = vmatpush1.msra.mxu0 0.0
    %4332 = vmatprep.subr.mxu0 0.0
    %4333 = vmatpush1.msra.mxu0 0.0
    %4334 = vmatprep.subr.mxu0 0.0
    %4335 = vmatpush1.msra.mxu0 0.0
    %4336 = vmatprep.subr.mxu0 0.0
    %4337 = vmatpush1.msra.mxu0 0.0
    %4338 = vmatprep.subr.mxu0 0.0
    %4339 = vmatpush1.msra.mxu0 0.0
    %4340 = vmatprep.subr.mxu0 0.0
    %4341 = vmatpush1.msra.mxu0 0.0
    %4342 = vmatprep.subr.mxu0 0.0
    %4343 = vmatpush1.msra.mxu0 0.0
    %4344 = vmatprep.mubr.f32.mxu0 0.0
    %4345 = vmatmul.mubr.f32.gmra.mrb[0].mxu0 %v3896
    %v4346 = vpop.f32.mrb[0].mxu0
    %v4347 = vadd.f32 %v954, %v4346
    %v4348 = vpop.f32.mrb[0].mxu0
    %v4349 = vadd.f32 %v958, %v4348
    %4350 = vdwg.mxu0
    %4351 = vmatprep.subr.mxu0 %v524
    %4352 = vmatpush1.msra.mxu0 %v523
    %4353 = vmatprep.subr.mxu0 %v528
    %4354 = vmatpush1.msra.mxu0 %v527
    %4355 = vmatprep.subr.mxu0 %v532
    %4356 = vmatpush1.msra.mxu0 %v531
    %4357 = vmatprep.subr.mxu0 %v536
    %4358 = vmatpush1.msra.mxu0 %v535
    %4359 = vmatprep.subr.mxu0 %v540
    %4360 = vmatpush1.msra.mxu0 %v539
    %4361 = vmatprep.subr.mxu0 %v544
    %4362 = vmatpush1.msra.mxu0 %v543
    %4363 = vmatprep.subr.mxu0 %v548
    %4364 = vmatpush1.msra.mxu0 %v547
    %4365 = vmatprep.subr.mxu0 %v552
    %4366 = vmatpush1.msra.mxu0 %v551
    %4367 = vmatprep.subr.mxu0 %v556
    %4368 = vmatpush1.msra.mxu0 %v555
    %4369 = vmatprep.subr.mxu0 %v560
    %4370 = vmatpush1.msra.mxu0 %v559
    %4371 = vmatprep.subr.mxu0 %v564
    %4372 = vmatpush1.msra.mxu0 %v563
    %4373 = vmatprep.subr.mxu0 %v568
    %4374 = vmatpush1.msra.mxu0 %v567
    %4375 = vmatprep.subr.mxu0 %v572
    %4376 = vmatpush1.msra.mxu0 %v571
    %4377 = vmatprep.subr.mxu0 %v576
    %4378 = vmatpush1.msra.mxu0 %v575
    %4379 = vmatprep.subr.mxu0 %v580
    %4380 = vmatpush1.msra.mxu0 %v579
    %4381 = vmatprep.subr.mxu0 %v584
    %4382 = vmatpush1.msra.mxu0 %v583
    %4383 = vmatprep.subr.mxu0 0.0
    %4384 = vmatpush1.msra.mxu0 0.0
    %4385 = vmatprep.subr.mxu0 0.0
    %4386 = vmatpush1.msra.mxu0 0.0
    %4387 = vmatprep.subr.mxu0 0.0
    %4388 = vmatpush1.msra.mxu0 0.0
    %4389 = vmatprep.subr.mxu0 0.0
    %4390 = vmatpush1.msra.mxu0 0.0
    %4391 = vmatprep.subr.mxu0 0.0
    %4392 = vmatpush1.msra.mxu0 0.0
    %4393 = vmatprep.subr.mxu0 0.0
    %4394 = vmatpush1.msra.mxu0 0.0
    %4395 = vmatprep.subr.mxu0 0.0
    %4396 = vmatpush1.msra.mxu0 0.0
    %4397 = vmatprep.subr.mxu0 0.0
    %4398 = vmatpush1.msra.mxu0 0.0
    %4399 = vmatprep.subr.mxu0 0.0
    %4400 = vmatpush1.msra.mxu0 0.0
    %4401 = vmatprep.subr.mxu0 0.0
    %4402 = vmatpush1.msra.mxu0 0.0
    %4403 = vmatprep.subr.mxu0 0.0
    %4404 = vmatpush1.msra.mxu0 0.0
    %4405 = vmatprep.subr.mxu0 0.0
    %4406 = vmatpush1.msra.mxu0 0.0
    %4407 = vmatprep.subr.mxu0 0.0
    %4408 = vmatpush1.msra.mxu0 0.0
    %4409 = vmatprep.subr.mxu0 0.0
    %4410 = vmatpush1.msra.mxu0 0.0
    %4411 = vmatprep.subr.mxu0 0.0
    %4412 = vmatpush1.msra.mxu0 0.0
    %4413 = vmatprep.subr.mxu0 0.0
    %4414 = vmatpush1.msra.mxu0 0.0
    %4415 = vmatprep.mubr.f32.mxu0 0.0
    %4416 = vmatmul.mubr.f32.gmra.mrb[0].mxu0 %v4208
    %v4417 = vpop.f32.mrb[0].mxu0
    %v4418 = vadd.f32 0.0, %v4417
    %v4419 = vpop.f32.mrb[0].mxu0
    %v4420 = vadd.f32 0.0, %v4419
    %4421 = vdwg.mxu0
    %4422 = vmatprep.subr.mxu0 %v526
    %4423 = vmatpush1.msra.mxu0 %v525
    %4424 = vmatprep.subr.mxu0 %v530
    %4425 = vmatpush1.msra.mxu0 %v529
    %4426 = vmatprep.subr.mxu0 %v534
    %4427 = vmatpush1.msra.mxu0 %v533
    %4428 = vmatprep.subr.mxu0 %v538
    %4429 = vmatpush1.msra.mxu0 %v537
    %4430 = vmatprep.subr.mxu0 %v542
    %4431 = vmatpush1.msra.mxu0 %v541
    %4432 = vmatprep.subr.mxu0 %v546
    %4433 = vmatpush1.msra.mxu0 %v545
    %4434 = vmatprep.subr.mxu0 %v550
    %4435 = vmatpush1.msra.mxu0 %v549
    %4436 = vmatprep.subr.mxu0 %v554
    %4437 = vmatpush1.msra.mxu0 %v553
    %4438 = vmatprep.subr.mxu0 %v558
    %4439 = vmatpush1.msra.mxu0 %v557
    %4440 = vmatprep.subr.mxu0 %v562
    %4441 = vmatpush1.msra.mxu0 %v561
    %4442 = vmatprep.subr.mxu0 %v566
    %4443 = vmatpush1.msra.mxu0 %v565
    %4444 = vmatprep.subr.mxu0 %v570
    %4445 = vmatpush1.msra.mxu0 %v569
    %4446 = vmatprep.subr.mxu0 %v574
    %4447 = vmatpush1.msra.mxu0 %v573
    %4448 = vmatprep.subr.mxu0 %v578
    %4449 = vmatpush1.msra.mxu0 %v577
    %4450 = vmatprep.subr.mxu0 %v582
    %4451 = vmatpush1.msra.mxu0 %v581
    %4452 = vmatprep.subr.mxu0 %v586
    %4453 = vmatpush1.msra.mxu0 %v585
    %4454 = vmatprep.subr.mxu0 0.0
    %4455 = vmatpush1.msra.mxu0 0.0
    %4456 = vmatprep.subr.mxu0 0.0
    %4457 = vmatpush1.msra.mxu0 0.0
    %4458 = vmatprep.subr.mxu0 0.0
    %4459 = vmatpush1.msra.mxu0 0.0
    %4460 = vmatprep.subr.mxu0 0.0
    %4461 = vmatpush1.msra.mxu0 0.0
    %4462 = vmatprep.subr.mxu0 0.0
    %4463 = vmatpush1.msra.mxu0 0.0
    %4464 = vmatprep.subr.mxu0 0.0
    %4465 = vmatpush1.msra.mxu0 0.0
    %4466 = vmatprep.subr.mxu0 0.0
    %4467 = vmatpush1.msra.mxu0 0.0
    %4468 = vmatprep.subr.mxu0 0.0
    %4469 = vmatpush1.msra.mxu0 0.0
    %4470 = vmatprep.subr.mxu0 0.0
    %4471 = vmatpush1.msra.mxu0 0.0
    %4472 = vmatprep.subr.mxu0 0.0
    %4473 = vmatpush1.msra.mxu0 0.0
    %4474 = vmatprep.subr.mxu0 0.0
    %4475 = vmatpush1.msra.mxu0 0.0
    %4476 = vmatprep.subr.mxu0 0.0
    %4477 = vmatpush1.msra.mxu0 0.0
    %4478 = vmatprep.subr.mxu0 0.0
    %4479 = vmatpush1.msra.mxu0 0.0
    %4480 = vmatprep.subr.mxu0 0.0
    %4481 = vmatpush1.msra.mxu0 0.0
    %4482 = vmatprep.subr.mxu0 0.0
    %4483 = vmatpush1.msra.mxu0 0.0
    %4484 = vmatprep.subr.mxu0 0.0
    %4485 = vmatpush1.msra.mxu0 0.0
    %4486 = vmatprep.mubr.f32.mxu0 0.0
    %4487 = vmatmul.mubr.f32.gmra.mrb[0].mxu0 %v4208
    %v4488 = vpop.f32.mrb[0].mxu0
    %v4489 = vadd.f32 0.0, %v4488
    %v4490 = vpop.f32.mrb[0].mxu0
    %v4491 = vadd.f32 0.0, %v4490
    %4492 = vdwg.mxu0
    %v4493 = vadd.f32 %v4276, %v4418
    %v4494 = vadd.f32 %v4278, %v4420
    %v4495 = vadd.f32 %v4347, %v4489
    %v4496 = vadd.f32 %v4349, %v4491
    %v4497 = vxor.u32 %v4493, 2147483648
    %v4498 = vmul.f32 %v4497, 1.442695
    %v4499 = vpow.pop %v4498
    %v4500 = vadd.f32 %v4499, 1.0
    %v4501 = vrcp.pop %v4500
    %v4502 = vmul.f32 1.0, %v4501
    %v4503 = vxor.u32 %v4494, 2147483648
    %v4504 = vmul.f32 %v4503, 1.442695
    %v4505 = vpow.pop %v4504
    %v4506 = vadd.f32 %v4505, 1.0
    %v4507 = vrcp.pop %v4506
    %v4508 = vmul.f32 1.0, %v4507
    %v4509 = vtanh.pop %v4495
    %v4510 = vxor.u32 %v4496, 2147483648
    %v4511 = vmul.f32 %v4510, 1.442695
    %v4512 = vpow.pop %v4511
    %v4513 = vadd.f32 %v4512, 1.0
    %v4514 = vrcp.pop %v4513
    %v4515 = vmul.f32 1.0, %v4514
    %v4516 = vmul.f32 %v4508, %v4206
    %v4517 = vmul.f32 %v4502, %v4509
    %v4518 = vadd.f32 %v4516, %v4517
    %v4519 = vtanh.pop %v4518
    %v4520 = vmul.f32 %v4515, %v4519
    %v4521 = vld [vmem:[%s7] sm:$0xff]
    %v4522 = vld [vmem:[%s7 + $0x8] sm:$0xff]
    %v4523 = vld [vmem:[%s7 + $0x10] sm:$0xff]
    %v4524 = vld [vmem:[%s7 + $0x18] sm:$0xff]
    %v4525 = vld [vmem:[%s7 + $0x20] sm:$0xff]
    %v4526 = vld [vmem:[%s7 + $0x28] sm:$0xff]
    %v4527 = vld [vmem:[%s7 + $0x30] sm:$0xff]
    %v4528 = vld [vmem:[%s7 + $0x38] sm:$0xff]
    %v4529 = vld [vmem:[%s7 + $0x40] sm:$0xff]
    %v4530 = vld [vmem:[%s7 + $0x48] sm:$0xff]
    %v4531 = vld [vmem:[%s7 + $0x50] sm:$0xff]
    %v4532 = vld [vmem:[%s7 + $0x58] sm:$0xff]
    %v4533 = vld [vmem:[%s7 + $0x60] sm:$0xff]
    %v4534 = vld [vmem:[%s7 + $0x68] sm:$0xff]
    %v4535 = vld [vmem:[%s7 + $0x70] sm:$0xff]
    %v4536 = vld [vmem:[%s7 + $0x78] sm:$0xff]
    %v4537 = vld [vmem:[%s8] sm:$0x1]
    %v4539 = vlaneseq
    %v4540 = vshrl.u32 %v4539, 7
    %v4541 = vsub.s32 0, %v4540
    %v4542 = vrot.slane %v4537, %v4541
    %4544 = vmatprep.subr.mxu0 0.0
    %4545 = vmatpush1.msra.mxu0 %v4521
    %4546 = vmatprep.subr.mxu0 0.0
    %4547 = vmatpush1.msra.mxu0 %v4522
    %4548 = vmatprep.subr.mxu0 0.0
    %4549 = vmatpush1.msra.mxu0 %v4523
    %4550 = vmatprep.subr.mxu0 0.0
    %4551 = vmatpush1.msra.mxu0 %v4524
    %4552 = vmatprep.subr.mxu0 0.0
    %4553 = vmatpush1.msra.mxu0 %v4525
    %4554 = vmatprep.subr.mxu0 0.0
    %4555 = vmatpush1.msra.mxu0 %v4526
    %4556 = vmatprep.subr.mxu0 0.0
    %4557 = vmatpush1.msra.mxu0 %v4527
    %4558 = vmatprep.subr.mxu0 0.0
    %4559 = vmatpush1.msra.mxu0 %v4528
    %4560 = vmatprep.subr.mxu0 0.0
    %4561 = vmatpush1.msra.mxu0 %v4529
    %4562 = vmatprep.subr.mxu0 0.0
    %4563 = vmatpush1.msra.mxu0 %v4530
    %4564 = vmatprep.subr.mxu0 0.0
    %4565 = vmatpush1.msra.mxu0 %v4531
    %4566 = vmatprep.subr.mxu0 0.0
    %4567 = vmatpush1.msra.mxu0 %v4532
    %4568 = vmatprep.subr.mxu0 0.0
    %4569 = vmatpush1.msra.mxu0 %v4533
    %4570 = vmatprep.subr.mxu0 0.0
    %4571 = vmatpush1.msra.mxu0 %v4534
    %4572 = vmatprep.subr.mxu0 0.0
    %4573 = vmatpush1.msra.mxu0 %v4535
    %4574 = vmatprep.subr.mxu0 0.0
    %4575 = vmatpush1.msra.mxu0 %v4536
    %4576 = vmatprep.subr.mxu0 0.0
    %4577 = vmatpush1.msra.mxu0 0.0
    %4578 = vmatprep.subr.mxu0 0.0
    %4579 = vmatpush1.msra.mxu0 0.0
    %4580 = vmatprep.subr.mxu0 0.0
    %4581 = vmatpush1.msra.mxu0 0.0
    %4582 = vmatprep.subr.mxu0 0.0
    %4583 = vmatpush1.msra.mxu0 0.0
    %4584 = vmatprep.subr.mxu0 0.0
    %4585 = vmatpush1.msra.mxu0 0.0
    %4586 = vmatprep.subr.mxu0 0.0
    %4587 = vmatpush1.msra.mxu0 0.0
    %4588 = vmatprep.subr.mxu0 0.0
    %4589 = vmatpush1.msra.mxu0 0.0
    %4590 = vmatprep.subr.mxu0 0.0
    %4591 = vmatpush1.msra.mxu0 0.0
    %4592 = vmatprep.subr.mxu0 0.0
    %4593 = vmatpush1.msra.mxu0 0.0
    %4594 = vmatprep.subr.mxu0 0.0
    %4595 = vmatpush1.msra.mxu0 0.0
    %4596 = vmatprep.subr.mxu0 0.0
    %4597 = vmatpush1.msra.mxu0 0.0
    %4598 = vmatprep.subr.mxu0 0.0
    %4599 = vmatpush1.msra.mxu0 0.0
    %4600 = vmatprep.subr.mxu0 0.0
    %4601 = vmatpush1.msra.mxu0 0.0
    %4602 = vmatprep.subr.mxu0 0.0
    %4603 = vmatpush1.msra.mxu0 0.0
    %4604 = vmatprep.subr.mxu0 0.0
    %4605 = vmatpush1.msra.mxu0 0.0
    %4606 = vmatprep.subr.mxu0 0.0
    %4607 = vmatpush1.msra.mxu0 0.0
    %4608 = vmatprep.mubr.f32.mxu0 0.0
    %4609 = vmatmul.mubr.f32.gmra.mrb[0].mxu0 %v4520
    %v4610 = vpop.f32.mrb[0].mxu0
    %v4611 = vadd.f32 %v4542, %v4610
    %v4612 = vpop.f32.mrb[0].mxu0
    %4613 = vdwg.mxu0
    %vm4614 = vcmask 64512
    %v4615 = vsel %vm4614, %v4611, -inf
    %4616 = vmax.xlane.f32.xlu0 %v4615
    %v4617 = vpop.xlane.xlu0 %4616
    %v4618 = vsub.f32 %v4611, %v4617
    %v4619 = vmul.f32 %v4618, 1.442695
    %v4620 = vpow.pop %v4619
    %v4621 = vsel %vm4614, %v4620, 0.0
    %4622 = vadd.xlane.f32.xlu0 %v4621
    %v4623 = vpop.xlane.xlu0 %4622
    %v4624 = vlog2.pop %v4623
    %v4625 = vmul.f32 %v4624, 0.6931472
    %v4626 = vsub.f32 %v4618, %v4625
    %4627 = vst.msk [vmem:[#allocation9] sm:$0xff] %vm4614, %v4626
    // Predicated region
    $region50: #{tpu_custom_call.1} parent=1 // pred_check
      _
    $region51: #{tpu_custom_call.1} parent=1 // pred_check_branch
      %4629 = sbr.rel (0) target = $region53
    $region52: #{tpu_custom_call.1} parent=1 // pred_region
      %s4631 = ssub.s32 128, 128
      %4632 = vsyncadd [#allocation5], %s4631
      %s4634 = sshll.u32 [#allocation9], 4
      %s4635 = int_to_ptr.vmem [resolvable:$true] %s4634
      %4637 = dma.vmem_to_hbm [thread:$0]  %s4635, 128, %s9, [#allocation5]
    $region53: #{tpu_custom_call.1} parent=1 // pred_fallthru
      _
    // Predicated region
    $region54: #{tpu_custom_call.1} parent=1 // pred_check
      _
    $region55: #{tpu_custom_call.1} parent=1 // pred_check_branch
      %4639 = sbr.rel (0) target = $region57
    $region56: #{tpu_custom_call.1} parent=1 // pred_region
      %4640 = dma.done [#allocation5], 128
    $region57: #{tpu_custom_call.1} parent=1 // pred_fallthru
      _
    %4641 = vsyncpa [#allocation4], 1
    %4642 = vsyncpa [#allocation7], 1
    %4643 = vsyncpa [#allocation5], 1

</llo_original>
